<compile_context>
chip_gen: v7x
topology: tpu7x:2x2x1
jax: 0.10.0
libtpu: 0.0.40
codegen_flags: <defaults>
</compile_context>

<pallas_src>
import functools

import jax
import jax.numpy as jnp
from jax import lax
from jax.experimental import pallas as pl
from jax.experimental.pallas import tpu as pltpu


# ---------------------------------------------------------------------------
# Pallas kernels
# ---------------------------------------------------------------------------
def _conv_taps_silu_kernel(z_ref, w_ref, b_ref, o_ref, *, shifts, r_out):
    """im2col-free conv+BN+SiLU: sum of shifted (r_out, Cin') @ (Cin', Cout) GEMMs.

    z_ref : (A*A, Cin')  bf16   flattened (padded / phase-packed) activation
    w_ref : (T, Cin', Cout) bf16  per-tap folded weights
    b_ref : (1, Cout)    f32    folded BN bias
    o_ref : (r_out, Cout) bf16  inflated-row output (wrap-around rows dropped in XLA)
    """
    cout = w_ref.shape[-1]
    acc = jnp.zeros((r_out, cout), jnp.float32)
    for t, s in enumerate(shifts):                       # unrolled: 4 or 9 taps
        acc = acc + jnp.dot(z_ref[s:s + r_out, :], w_ref[t],
                            preferred_element_type=jnp.float32)
    acc = acc + b_ref[...]                               # f32 bias on f32 accumulator
    acc = acc * jax.nn.sigmoid(acc)                      # SiLU in f32 (EUP slot)
    o_ref[...] = acc.astype(o_ref.dtype)


def _conv_taps_silu_head_kernel(z_ref, w_ref, b_ref, wh_ref, bh_ref, o_ref, *,
                                shifts, r_out):
    """Fused last conv+BN+SiLU and 1x1 detect head.

    The head GEMM is computed transposed, (no, C) x (M, C)^T -> (no, M), so the large
    spatial dim is the lane dim of the store and the output is already channel-first.
    """
    cout = w_ref.shape[-1]
    acc = jnp.zeros((r_out, cout), jnp.float32)
    for t, s in enumerate(shifts):
        acc = acc + jnp.dot(z_ref[s:s + r_out, :], w_ref[t],
                            preferred_element_type=jnp.float32)
    acc = acc + b_ref[...]
    h = acc * jax.nn.sigmoid(acc)                        # SiLU in f32
    out = lax.dot_general(wh_ref[...], h.astype(wh_ref.dtype),
                          dimension_numbers=(((1,), (1,)), ((), ())),
                          preferred_element_type=jnp.float32)        # (no, r_out)
    out = out + bh_ref[...]                              # (no, 1) broadcast over lanes
    o_ref[...] = out.astype(o_ref.dtype)                 # bf16 store (halved writeback)


# ---------------------------------------------------------------------------
# Pallas wrappers (grid over batch; whole image = one tile at these sizes)
# ---------------------------------------------------------------------------
def _compiler_params():
    # Explicit VMEM budget (fits v5e 16MiB-default / v7x 64MiB-physical comfortably).
    return pltpu.CompilerParams(
        dimension_semantics=("parallel",),               # B>=2 -> both v7x TCs busy
        vmem_limit_bytes=32 * 1024 * 1024,
    )


def conv3x3_bn_silu_s2(x_nhwc, w_taps, bias, *, single_buffer=True):
    """3x3 stride-2 pad-1 conv + folded BN + SiLU.

    x_nhwc: (B, H, W, C) bf16 -> (B, H/2, W/2, Cout) bf16.
    The stride-2 conv is done as 4 shifted stride-1 taps on the space-to-depth
    phase-packed padded input (pure layout rearrangement, no data inflation).
    """
    B, H, W, C = x_nhwc.shape
    OH, OW = H // 2, W // 2
    A = H // 2 + 1                                       # spatial extent after s2d(pad(x))
    xp = jnp.pad(x_nhwc, ((0, 0), (1, 1), (1, 1), (0, 0)))
    z = (xp.reshape(B, A, 2, A, 2, C)
           .transpose(0, 1, 3, 2, 4, 5)                  # (B, a, b, pa, pb, c)
           .reshape(B, A * A, 4 * C))                    # inflated rows r = a*A + b
    cin4 = 4 * C
    cout = w_taps.shape[-1]
    r_out = (OH - 1) * A + OW                            # taps fit exactly in A*A rows
    shifts = tuple(a * A + bcol for a in range(2) for bcol in range(2))
    wmode = pl.Buffered(1) if single_buffer else None    # weights never change across grid

    out = pl.pallas_call(
        functools.partial(_conv_taps_silu_kernel, shifts=shifts, r_out=r_out),
        out_shape=jax.ShapeDtypeStruct((B, r_out, cout), jnp.bfloat16),
        grid=(B,),
        in_specs=[
            pl.BlockSpec((None, A * A, cin4), lambda i: (i, 0, 0)),
            pl.BlockSpec((4, cin4, cout), lambda i: (0, 0, 0), pipeline_mode=wmode),
            pl.BlockSpec((1, cout), lambda i: (0, 0), pipeline_mode=wmode),
        ],
        out_specs=pl.BlockSpec((None, r_out, cout), lambda i: (i, 0, 0)),
        compiler_params=_compiler_params(),
    )(z, w_taps, bias)

    # Drop the (A - OW) wrap-around columns; trivial layout ops in XLA.
    out = jnp.pad(out, ((0, 0), (0, OH * A - r_out), (0, 0)))
    out = out.reshape(B, OH, A, cout)[:, :, :OW, :]
    return out                                           # (B, OH, OW, Cout) bf16


def conv3x3_bn_silu_head(x_nhwc, w_taps, bias, wh_t, bh, *, single_buffer=True):
    """Fused: 3x3 stride-1 pad-1 conv + folded BN + SiLU + 1x1 detect head.

    x_nhwc: (B, H, W, C) bf16 -> (B, no, H*W) bf16 (channel-first, like the torch head).
    """
    B, H, W, C = x_nhwc.shape
    OH, OW = H, W
    P = H + 2
    xp = jnp.pad(x_nhwc, ((0, 0), (1, 1), (1, 1), (0, 0))).reshape(B, P * P, C)
    cout = w_taps.shape[-1]
    no = wh_t.shape[0]
    r_out = (OH - 1) * P + OW
    shifts = tuple(di * P + dj for di in range(3) for dj in range(3))
    wmode = pl.Buffered(1) if single_buffer else None

    out = pl.pallas_call(
        functools.partial(_conv_taps_silu_head_kernel, shifts=shifts, r_out=r_out),
        out_shape=jax.ShapeDtypeStruct((B, no, r_out), jnp.bfloat16),
        grid=(B,),
        in_specs=[
            pl.BlockSpec((None, P * P, C), lambda i: (i, 0, 0)),
            pl.BlockSpec((9, C, cout), lambda i: (0, 0, 0), pipeline_mode=wmode),
            pl.BlockSpec((1, cout), lambda i: (0, 0), pipeline_mode=wmode),
            pl.BlockSpec((no, C), lambda i: (0, 0), pipeline_mode=wmode),
            pl.BlockSpec((no, 1), lambda i: (0, 0), pipeline_mode=wmode),
        ],
        out_specs=pl.BlockSpec((None, no, r_out), lambda i: (i, 0, 0)),
        compiler_params=_compiler_params(),
    )(xp, w_taps, bias, wh_t, bh)

    out = jnp.pad(out, ((0, 0), (0, 0), (0, OH * P - r_out)))
    out = out.reshape(B, no, OH, P)[..., :OW].reshape(B, no, OH * OW)
    return out                                           # (B, no, OH*OW) bf16


# ---------------------------------------------------------------------------
# Parameter construction: BN folding + weight-tap rearrangement (done ONCE)
# ---------------------------------------------------------------------------
def _stride2_weight_taps(w_hwio):
    """(3,3,Cin,Cout) -> (4, 4*Cin, Cout): taps for the space-to-depth'd input.

    Phase flattening order (pa, pb, ci) matches the activation's s2d packing.
    """
    kh, kw, cin, cout = w_hwio.shape
    taps = []
    for a in range(2):
        for b in range(2):
            tap = jnp.zeros((2, 2, cin, cout), w_hwio.dtype)
            for pa in range(2):
                for pb in range(2):
                    di, dj = 2 * a + pa, 2 * b + pb
                    if di < kh and dj < kw:
                        tap = tap.at[pa, pb].set(w_hwio[di, dj])
            taps.append(tap.reshape(4 * cin, cout))
    return jnp.stack(taps, axis=0)


def fold_params(params, eps=1e-3):
    """Fold BN into conv weights once, rearrange into per-tap GEMM weights, cast bf16.

    eps=1e-3 matches ultralytics' Conv BatchNorm (not torch.nn.BatchNorm2d's 1e-5).
    """
    folded = {"convs": [], "no": params["no"]}
    for (w, gamma, beta, mean, var), stride in zip(params["convs"], params["strides"]):
        cout, cin = w.shape[0], w.shape[1]
        scale = gamma / jnp.sqrt(var + eps)                       # (Cout,)
        w_f = w * scale[:, None, None, None]                      # (Cout, Cin, 3, 3)
        w_hwio = jnp.transpose(w_f, (2, 3, 1, 0))                 # (KH, KW, Cin, Cout)
        if stride == 2:
            w_taps = _stride2_weight_taps(w_hwio)                 # (4, 4*Cin, Cout)
        else:
            w_taps = w_hwio.reshape(9, cin, cout)                 # (9, Cin, Cout)
        bias = (beta - mean * scale).reshape(1, cout)
        folded["convs"].append((w_taps.astype(jnp.bfloat16), bias.astype(jnp.float32)))
    no, cin = params["head_w"].shape[0], params["head_w"].shape[1]
    wh_t = params["head_w"].reshape(no, cin).astype(jnp.bfloat16)  # (no, Cin): transposed GEMM
    bh = params["head_b"].reshape(no, 1).astype(jnp.float32)
    folded["head"] = (wh_t, bh)
    return folded


def init_params(key):
    nc = 4                      # num classes (small synthetic head)
    no = nc + 5                 # (x, y, w, h, obj, classes) raw outputs per location
    dims = [(3, 8), (8, 16), (16, 16)]
    params = {"convs": [], "strides": [2, 2, 1], "nc": nc, "no": no}
    for idx, (cin, cout) in enumerate(dims):
        key, kw = jax.random.split(key)
        w = jax.random.normal(kw, (cout, cin, 3, 3), jnp.float32) * 0.1
        gamma = jnp.ones((cout,), jnp.float32)
        beta = jnp.zeros((cout,), jnp.float32)
        mean = jnp.full((cout,), 0.01 * idx, jnp.float32)
        var = jnp.ones((cout,), jnp.float32)
        params["convs"].append((w, gamma, beta, mean, var))
    key, kh = jax.random.split(key)
    params["head_w"] = jax.random.normal(kh, (no, 16, 1, 1), jnp.float32) * 0.1
    params["head_b"] = jnp.zeros((no,), jnp.float32)
    return params


# ---------------------------------------------------------------------------
# Forward pass and float32 XLA reference (for tolerance checking)
# ---------------------------------------------------------------------------
def yolo_forward(folded, x_nchw, *, single_buffer=True):
    """x: (B, 3, H, W) NCHW (PyTorch boundary) -> raw predictions (B, no, H/4 * W/4)."""
    x = jnp.transpose(x_nchw, (0, 2, 3, 1)).astype(jnp.bfloat16)   # one boundary transpose
    (w1, b1), (w2, b2), (w3, b3) = folded["convs"]
    wh_t, bh = folded["head"]
    x = conv3x3_bn_silu_s2(x, w1, b1, single_buffer=single_buffer)   # (B, H/2, W/2, 8)
    x = conv3x3_bn_silu_s2(x, w2, b2, single_buffer=single_buffer)   # (B, H/4, W/4, 16)
    p = conv3x3_bn_silu_head(x, w3, b3, wh_t, bh, single_buffer=single_buffer)
    return p.astype(jnp.float32)                                     # (B, no, H/4*W/4)


def reference_forward(params, x_nchw, eps=1e-3):
    """Pure-XLA float32 reference (conv + BN + SiLU + 1x1 head)."""
    x = x_nchw.astype(jnp.float32)
    for (w, gamma, beta, mean, var), stride in zip(params["convs"], params["strides"]):
        y = lax.conv_general_dilated(
            x, w, window_strides=(stride, stride), padding=((1, 1), (1, 1)),
            dimension_numbers=("NCHW", "OIHW", "NCHW"))
        y = (y - mean[None, :, None, None]) / jnp.sqrt(var[None, :, None, None] + eps)
        y = y * gamma[None, :, None, None] + beta[None, :, None, None]
        x = y * jax.nn.sigmoid(y)
    no = params["no"]
    wh = params["head_w"].reshape(no, -1)
    out = jnp.einsum("oc,bchw->bohw", wh, x) + params["head_b"][None, :, None, None]
    return out.reshape(out.shape[0], no, -1)


if __name__ == "__main__":
    key = jax.random.PRNGKey(0)
    key, kx = jax.random.split(key)
    x = jax.random.normal(kx, (2, 3, 16, 16), jnp.float32)           # NCHW, like PyTorch

    params = init_params(key)
    folded = fold_params(params)                                     # BN fold + tap pack, once

    def run(single_buffer):
        fwd = jax.jit(functools.partial(yolo_forward, folded,
                                        single_buffer=single_buffer))
        out = fwd(x)
        jax.block_until_ready(out)
        return out

    try:
        out = run(True)          # resident weights single-buffered (pl.Buffered(1))
    except Exception:            # perf hint only: fall back to default double buffering
        out = run(False)

    assert out.shape == (2, params["no"], 4 * 4), out.shape
    assert bool(jnp.all(jnp.isfinite(out)))

    # bf16 MXU path vs float32 XLA reference: expect ~1e-2-level deviation.
    ref = reference_forward(params, x)
    assert bool(jnp.allclose(out, ref, rtol=2e-1, atol=5e-2)), (
        "max abs err = %f" % float(jnp.max(jnp.abs(out - ref))))

    print("KERNEL_OK")
</pallas_src>

<mosaic_0001>
module attributes {stable_mosaic.version = 11 : i64} {
  func.func @_conv_taps_silu_kernel(%arg0: i32, %arg1: memref<1x81x12xbf16, #tpu.memory_space<vmem>>, %arg2: memref<4x12x8xbf16, #tpu.memory_space<vmem>>, %arg3: memref<1x8xf32, #tpu.memory_space<vmem>>, %arg4: memref<1x71x8xbf16, #tpu.memory_space<vmem>>) attributes {dimension_semantics = [#tpu.dimension_semantics<parallel>], iteration_bounds = array<i64: 2>, scalar_prefetch = 0 : i64, scratch_operands = 0 : i64, tpu.core_type = #tpu.core_type<tc>, window_params = [{transform_indices = @transform_0, window_bounds = array<i64: 1, 81, 12>}, {pipeline_mode = #tpu.pipeline_mode<synchronous>, transform_indices = @transform_1, window_bounds = array<i64: 4, 12, 8>}, {pipeline_mode = #tpu.pipeline_mode<synchronous>, transform_indices = @transform_2, window_bounds = array<i64: 1, 8>}, {transform_indices = @transform_3, window_bounds = array<i64: 1, 71, 8>}]} {
    %cst = arith.constant 0.000000e+00 : f32
    %0 = vector.broadcast %cst : f32 to vector<71x8xf32>
    %c0 = arith.constant 0 : index
    %c0_0 = arith.constant 0 : index
    %c0_1 = arith.constant 0 : index
    %1 = vector.load %arg1[%c0, %c0_0, %c0_1] : memref<1x81x12xbf16, #tpu.memory_space<vmem>>, vector<1x71x12xbf16>
    %2 = vector.shape_cast %1 : vector<1x71x12xbf16> to vector<71x12xbf16>
    %c0_2 = arith.constant 0 : index
    %c0_3 = arith.constant 0 : index
    %c0_4 = arith.constant 0 : index
    %3 = vector.load %arg2[%c0_2, %c0_3, %c0_4] : memref<4x12x8xbf16, #tpu.memory_space<vmem>>, vector<1x12x8xbf16>
    %4 = vector.shape_cast %3 : vector<1x12x8xbf16> to vector<12x8xbf16>
    %cst_5 = arith.constant dense<0.000000e+00> : vector<71x8xf32>
    %5 = tpu.matmul %2, %4, %cst_5 {dimension_numbers = #tpu.dot_dimension_numbers<[1], [0], [0], [1], [0, 0, 1, 1], [], []>} : vector<71x12xbf16>, vector<12x8xbf16>, vector<71x8xf32> -> vector<71x8xf32>
    %6 = arith.addf %0, %5 : vector<71x8xf32>
    %c0_6 = arith.constant 0 : index
    %c1 = arith.constant 1 : index
    %c0_7 = arith.constant 0 : index
    %7 = vector.load %arg1[%c0_6, %c1, %c0_7] : memref<1x81x12xbf16, #tpu.memory_space<vmem>>, vector<1x71x12xbf16>
    %8 = vector.shape_cast %7 : vector<1x71x12xbf16> to vector<71x12xbf16>
    %c1_8 = arith.constant 1 : index
    %c0_9 = arith.constant 0 : index
    %c0_10 = arith.constant 0 : index
    %9 = vector.load %arg2[%c1_8, %c0_9, %c0_10] : memref<4x12x8xbf16, #tpu.memory_space<vmem>>, vector<1x12x8xbf16>
    %10 = vector.shape_cast %9 : vector<1x12x8xbf16> to vector<12x8xbf16>
    %cst_11 = arith.constant dense<0.000000e+00> : vector<71x8xf32>
    %11 = tpu.matmul %8, %10, %cst_11 {dimension_numbers = #tpu.dot_dimension_numbers<[1], [0], [0], [1], [0, 0, 1, 1], [], []>} : vector<71x12xbf16>, vector<12x8xbf16>, vector<71x8xf32> -> vector<71x8xf32>
    %12 = arith.addf %6, %11 : vector<71x8xf32>
    %c0_12 = arith.constant 0 : index
    %c9 = arith.constant 9 : index
    %c0_13 = arith.constant 0 : index
    %13 = vector.load %arg1[%c0_12, %c9, %c0_13] : memref<1x81x12xbf16, #tpu.memory_space<vmem>>, vector<1x71x12xbf16>
    %14 = vector.shape_cast %13 : vector<1x71x12xbf16> to vector<71x12xbf16>
    %c2 = arith.constant 2 : index
    %c0_14 = arith.constant 0 : index
    %c0_15 = arith.constant 0 : index
    %15 = vector.load %arg2[%c2, %c0_14, %c0_15] : memref<4x12x8xbf16, #tpu.memory_space<vmem>>, vector<1x12x8xbf16>
    %16 = vector.shape_cast %15 : vector<1x12x8xbf16> to vector<12x8xbf16>
    %cst_16 = arith.constant dense<0.000000e+00> : vector<71x8xf32>
    %17 = tpu.matmul %14, %16, %cst_16 {dimension_numbers = #tpu.dot_dimension_numbers<[1], [0], [0], [1], [0, 0, 1, 1], [], []>} : vector<71x12xbf16>, vector<12x8xbf16>, vector<71x8xf32> -> vector<71x8xf32>
    %18 = arith.addf %12, %17 : vector<71x8xf32>
    %c0_17 = arith.constant 0 : index
    %c10 = arith.constant 10 : index
    %c0_18 = arith.constant 0 : index
    %19 = vector.load %arg1[%c0_17, %c10, %c0_18] : memref<1x81x12xbf16, #tpu.memory_space<vmem>>, vector<1x71x12xbf16>
    %20 = vector.shape_cast %19 : vector<1x71x12xbf16> to vector<71x12xbf16>
    %c3 = arith.constant 3 : index
    %c0_19 = arith.constant 0 : index
    %c0_20 = arith.constant 0 : index
    %21 = vector.load %arg2[%c3, %c0_19, %c0_20] : memref<4x12x8xbf16, #tpu.memory_space<vmem>>, vector<1x12x8xbf16>
    %22 = vector.shape_cast %21 : vector<1x12x8xbf16> to vector<12x8xbf16>
    %cst_21 = arith.constant dense<0.000000e+00> : vector<71x8xf32>
    %23 = tpu.matmul %20, %22, %cst_21 {dimension_numbers = #tpu.dot_dimension_numbers<[1], [0], [0], [1], [0, 0, 1, 1], [], []>} : vector<71x12xbf16>, vector<12x8xbf16>, vector<71x8xf32> -> vector<71x8xf32>
    %24 = arith.addf %18, %23 : vector<71x8xf32>
    %c0_22 = arith.constant 0 : index
    %c0_23 = arith.constant 0 : index
    %25 = vector.load %arg3[%c0_22, %c0_23] : memref<1x8xf32, #tpu.memory_space<vmem>>, vector<1x8xf32>
    %26 = vector.broadcast %25 : vector<1x8xf32> to vector<71x8xf32>
    %27 = arith.addf %24, %26 : vector<71x8xf32>
    %28 = arith.negf %27 : vector<71x8xf32>
    %29 = math.exp %28 : vector<71x8xf32>
    %cst_24 = arith.constant 1.000000e+00 : f32
    %30 = vector.broadcast %cst_24 : f32 to vector<71x8xf32>
    %31 = arith.addf %30, %29 : vector<71x8xf32>
    %32 = arith.divf %30, %31 : vector<71x8xf32>
    %33 = arith.mulf %27, %32 : vector<71x8xf32>
    %34 = arith.truncf %33 : vector<71x8xf32> to vector<71x8xbf16>
    %c0_25 = arith.constant 0 : index
    %c0_26 = arith.constant 0 : index
    %c0_27 = arith.constant 0 : index
    %35 = vector.load %arg4[%c0_25, %c0_26, %c0_27] : memref<1x71x8xbf16, #tpu.memory_space<vmem>>, vector<1x71x8xbf16>
    %36 = vector.shape_cast %35 : vector<1x71x8xbf16> to vector<71x8xbf16>
    %37 = vector.shape_cast %34 : vector<71x8xbf16> to vector<1x71x8xbf16>
    tpu.vector_store %arg4[%c0_25, %c0_26, %c0_27], %37 {strides = array<i32>} : memref<1x71x8xbf16, #tpu.memory_space<vmem>>, vector<1x71x8xbf16>,
    return
  }
  func.func @transform_0(%arg0: i32) -> (i32, i32, i32) {
    %c0_i32 = arith.constant 0 : i32
    %c0_i32_0 = arith.constant 0 : i32
    %c0_i32_1 = arith.constant 0 : i32
    return %arg0, %c0_i32, %c0_i32_0 : i32, i32, i32
  }
  func.func @transform_1(%arg0: i32) -> (i32, i32, i32) {
    %c0_i32 = arith.constant 0 : i32
    %c0_i32_0 = arith.constant 0 : i32
    %c0_i32_1 = arith.constant 0 : i32
    %c0_i32_2 = arith.constant 0 : i32
    return %c0_i32, %c0_i32_0, %c0_i32_1 : i32, i32, i32
  }
  func.func @transform_2(%arg0: i32) -> (i32, i32) {
    %c0_i32 = arith.constant 0 : i32
    %c0_i32_0 = arith.constant 0 : i32
    %c0_i32_1 = arith.constant 0 : i32
    return %c0_i32, %c0_i32_0 : i32, i32
  }
  func.func @transform_3(%arg0: i32) -> (i32, i32, i32) {
    %c0_i32 = arith.constant 0 : i32
    %c0_i32_0 = arith.constant 0 : i32
    %c0_i32_1 = arith.constant 0 : i32
    return %arg0, %c0_i32, %c0_i32_0 : i32, i32, i32
  }
}

module attributes {stable_mosaic.version = 11 : i64} {
  func.func @_conv_taps_silu_head_kernel(%arg0: i32, %arg1: memref<1x36x16xbf16, #tpu.memory_space<vmem>>, %arg2: memref<9x16x16xbf16, #tpu.memory_space<vmem>>, %arg3: memref<1x16xf32, #tpu.memory_space<vmem>>, %arg4: memref<9x16xbf16, #tpu.memory_space<vmem>>, %arg5: memref<9x1xf32, #tpu.memory_space<vmem>>, %arg6: memref<1x9x22xbf16, #tpu.memory_space<vmem>>) attributes {dimension_semantics = [#tpu.dimension_semantics<parallel>], iteration_bounds = array<i64: 2>, scalar_prefetch = 0 : i64, scratch_operands = 0 : i64, tpu.core_type = #tpu.core_type<tc>, window_params = [{transform_indices = @transform_0, window_bounds = array<i64: 1, 36, 16>}, {pipeline_mode = #tpu.pipeline_mode<synchronous>, transform_indices = @transform_1, window_bounds = array<i64: 9, 16, 16>}, {pipeline_mode = #tpu.pipeline_mode<synchronous>, transform_indices = @transform_2, window_bounds = array<i64: 1, 16>}, {pipeline_mode = #tpu.pipeline_mode<synchronous>, transform_indices = @transform_3, window_bounds = array<i64: 9, 16>}, {pipeline_mode = #tpu.pipeline_mode<synchronous>, transform_indices = @transform_4, window_bounds = array<i64: 9, 1>}, {transform_indices = @transform_5, window_bounds = array<i64: 1, 9, 22>}]} {
    %cst = arith.constant 0.000000e+00 : f32
    %0 = vector.broadcast %cst : f32 to vector<22x16xf32>
    %c0 = arith.constant 0 : index
    %c0_0 = arith.constant 0 : index
    %c0_1 = arith.constant 0 : index
    %1 = vector.load %arg1[%c0, %c0_0, %c0_1] : memref<1x36x16xbf16, #tpu.memory_space<vmem>>, vector<1x22x16xbf16>
    %2 = vector.shape_cast %1 : vector<1x22x16xbf16> to vector<22x16xbf16>
    %c0_2 = arith.constant 0 : index
    %c0_3 = arith.constant 0 : index
    %c0_4 = arith.constant 0 : index
    %3 = vector.load %arg2[%c0_2, %c0_3, %c0_4] : memref<9x16x16xbf16, #tpu.memory_space<vmem>>, vector<1x16x16xbf16>
    %4 = vector.shape_cast %3 : vector<1x16x16xbf16> to vector<16x16xbf16>
    %cst_5 = arith.constant dense<0.000000e+00> : vector<22x16xf32>
    %5 = tpu.matmul %2, %4, %cst_5 {dimension_numbers = #tpu.dot_dimension_numbers<[1], [0], [0], [1], [0, 0, 1, 1], [], []>} : vector<22x16xbf16>, vector<16x16xbf16>, vector<22x16xf32> -> vector<22x16xf32>
    %6 = arith.addf %0, %5 : vector<22x16xf32>
    %c0_6 = arith.constant 0 : index
    %c1 = arith.constant 1 : index
    %c0_7 = arith.constant 0 : index
    %7 = vector.load %arg1[%c0_6, %c1, %c0_7] : memref<1x36x16xbf16, #tpu.memory_space<vmem>>, vector<1x22x16xbf16>
    %8 = vector.shape_cast %7 : vector<1x22x16xbf16> to vector<22x16xbf16>
    %c1_8 = arith.constant 1 : index
    %c0_9 = arith.constant 0 : index
    %c0_10 = arith.constant 0 : index
    %9 = vector.load %arg2[%c1_8, %c0_9, %c0_10] : memref<9x16x16xbf16, #tpu.memory_space<vmem>>, vector<1x16x16xbf16>
    %10 = vector.shape_cast %9 : vector<1x16x16xbf16> to vector<16x16xbf16>
    %cst_11 = arith.constant dense<0.000000e+00> : vector<22x16xf32>
    %11 = tpu.matmul %8, %10, %cst_11 {dimension_numbers = #tpu.dot_dimension_numbers<[1], [0], [0], [1], [0, 0, 1, 1], [], []>} : vector<22x16xbf16>, vector<16x16xbf16>, vector<22x16xf32> -> vector<22x16xf32>
    %12 = arith.addf %6, %11 : vector<22x16xf32>
    %c0_12 = arith.constant 0 : index
    %c2 = arith.constant 2 : index
    %c0_13 = arith.constant 0 : index
    %13 = vector.load %arg1[%c0_12, %c2, %c0_13] : memref<1x36x16xbf16, #tpu.memory_space<vmem>>, vector<1x22x16xbf16>
    %14 = vector.shape_cast %13 : vector<1x22x16xbf16> to vector<22x16xbf16>
    %c2_14 = arith.constant 2 : index
    %c0_15 = arith.constant 0 : index
    %c0_16 = arith.constant 0 : index
    %15 = vector.load %arg2[%c2_14, %c0_15, %c0_16] : memref<9x16x16xbf16, #tpu.memory_space<vmem>>, vector<1x16x16xbf16>
    %16 = vector.shape_cast %15 : vector<1x16x16xbf16> to vector<16x16xbf16>
    %cst_17 = arith.constant dense<0.000000e+00> : vector<22x16xf32>
    %17 = tpu.matmul %14, %16, %cst_17 {dimension_numbers = #tpu.dot_dimension_numbers<[1], [0], [0], [1], [0, 0, 1, 1], [], []>} : vector<22x16xbf16>, vector<16x16xbf16>, vector<22x16xf32> -> vector<22x16xf32>
    %18 = arith.addf %12, %17 : vector<22x16xf32>
    %c0_18 = arith.constant 0 : index
    %c6 = arith.constant 6 : index
    %c0_19 = arith.constant 0 : index
    %19 = vector.load %arg1[%c0_18, %c6, %c0_19] : memref<1x36x16xbf16, #tpu.memory_space<vmem>>, vector<1x22x16xbf16>
    %20 = vector.shape_cast %19 : vector<1x22x16xbf16> to vector<22x16xbf16>
    %c3 = arith.constant 3 : index
    %c0_20 = arith.constant 0 : index
    %c0_21 = arith.constant 0 : index
    %21 = vector.load %arg2[%c3, %c0_20, %c0_21] : memref<9x16x16xbf16, #tpu.memory_space<vmem>>, vector<1x16x16xbf16>
    %22 = vector.shape_cast %21 : vector<1x16x16xbf16> to vector<16x16xbf16>
    %cst_22 = arith.constant dense<0.000000e+00> : vector<22x16xf32>
    %23 = tpu.matmul %20, %22, %cst_22 {dimension_numbers = #tpu.dot_dimension_numbers<[1], [0], [0], [1], [0, 0, 1, 1], [], []>} : vector<22x16xbf16>, vector<16x16xbf16>, vector<22x16xf32> -> vector<22x16xf32>
    %24 = arith.addf %18, %23 : vector<22x16xf32>
    %c0_23 = arith.constant 0 : index
    %c7 = arith.constant 7 : index
    %c0_24 = arith.constant 0 : index
    %25 = vector.load %arg1[%c0_23, %c7, %c0_24] : memref<1x36x16xbf16, #tpu.memory_space<vmem>>, vector<1x22x16xbf16>
    %26 = vector.shape_cast %25 : vector<1x22x16xbf16> to vector<22x16xbf16>
    %c4 = arith.constant 4 : index
    %c0_25 = arith.constant 0 : index
    %c0_26 = arith.constant 0 : index
    %27 = vector.load %arg2[%c4, %c0_25, %c0_26] : memref<9x16x16xbf16, #tpu.memory_space<vmem>>, vector<1x16x16xbf16>
    %28 = vector.shape_cast %27 : vector<1x16x16xbf16> to vector<16x16xbf16>
    %cst_27 = arith.constant dense<0.000000e+00> : vector<22x16xf32>
    %29 = tpu.matmul %26, %28, %cst_27 {dimension_numbers = #tpu.dot_dimension_numbers<[1], [0], [0], [1], [0, 0, 1, 1], [], []>} : vector<22x16xbf16>, vector<16x16xbf16>, vector<22x16xf32> -> vector<22x16xf32>
    %30 = arith.addf %24, %29 : vector<22x16xf32>
    %c0_28 = arith.constant 0 : index
    %c8 = arith.constant 8 : index
    %c0_29 = arith.constant 0 : index
    %31 = vector.load %arg1[%c0_28, %c8, %c0_29] : memref<1x36x16xbf16, #tpu.memory_space<vmem>>, vector<1x22x16xbf16>
    %32 = vector.shape_cast %31 : vector<1x22x16xbf16> to vector<22x16xbf16>
    %c5 = arith.constant 5 : index
    %c0_30 = arith.constant 0 : index
    %c0_31 = arith.constant 0 : index
    %33 = vector.load %arg2[%c5, %c0_30, %c0_31] : memref<9x16x16xbf16, #tpu.memory_space<vmem>>, vector<1x16x16xbf16>
    %34 = vector.shape_cast %33 : vector<1x16x16xbf16> to vector<16x16xbf16>
    %cst_32 = arith.constant dense<0.000000e+00> : vector<22x16xf32>
    %35 = tpu.matmul %32, %34, %cst_32 {dimension_numbers = #tpu.dot_dimension_numbers<[1], [0], [0], [1], [0, 0, 1, 1], [], []>} : vector<22x16xbf16>, vector<16x16xbf16>, vector<22x16xf32> -> vector<22x16xf32>
    %36 = arith.addf %30, %35 : vector<22x16xf32>
    %c0_33 = arith.constant 0 : index
    %c12 = arith.constant 12 : index
    %c0_34 = arith.constant 0 : index
    %37 = vector.load %arg1[%c0_33, %c12, %c0_34] : memref<1x36x16xbf16, #tpu.memory_space<vmem>>, vector<1x22x16xbf16>
    %38 = vector.shape_cast %37 : vector<1x22x16xbf16> to vector<22x16xbf16>
    %c6_35 = arith.constant 6 : index
    %c0_36 = arith.constant 0 : index
    %c0_37 = arith.constant 0 : index
    %39 = vector.load %arg2[%c6_35, %c0_36, %c0_37] : memref<9x16x16xbf16, #tpu.memory_space<vmem>>, vector<1x16x16xbf16>
    %40 = vector.shape_cast %39 : vector<1x16x16xbf16> to vector<16x16xbf16>
    %cst_38 = arith.constant dense<0.000000e+00> : vector<22x16xf32>
    %41 = tpu.matmul %38, %40, %cst_38 {dimension_numbers = #tpu.dot_dimension_numbers<[1], [0], [0], [1], [0, 0, 1, 1], [], []>} : vector<22x16xbf16>, vector<16x16xbf16>, vector<22x16xf32> -> vector<22x16xf32>
    %42 = arith.addf %36, %41 : vector<22x16xf32>
    %c0_39 = arith.constant 0 : index
    %c13 = arith.constant 13 : index
    %c0_40 = arith.constant 0 : index
    %43 = vector.load %arg1[%c0_39, %c13, %c0_40] : memref<1x36x16xbf16, #tpu.memory_space<vmem>>, vector<1x22x16xbf16>
    %44 = vector.shape_cast %43 : vector<1x22x16xbf16> to vector<22x16xbf16>
    %c7_41 = arith.constant 7 : index
    %c0_42 = arith.constant 0 : index
    %c0_43 = arith.constant 0 : index
    %45 = vector.load %arg2[%c7_41, %c0_42, %c0_43] : memref<9x16x16xbf16, #tpu.memory_space<vmem>>, vector<1x16x16xbf16>
    %46 = vector.shape_cast %45 : vector<1x16x16xbf16> to vector<16x16xbf16>
    %cst_44 = arith.constant dense<0.000000e+00> : vector<22x16xf32>
    %47 = tpu.matmul %44, %46, %cst_44 {dimension_numbers = #tpu.dot_dimension_numbers<[1], [0], [0], [1], [0, 0, 1, 1], [], []>} : vector<22x16xbf16>, vector<16x16xbf16>, vector<22x16xf32> -> vector<22x16xf32>
    %48 = arith.addf %42, %47 : vector<22x16xf32>
    %c0_45 = arith.constant 0 : index
    %c14 = arith.constant 14 : index
    %c0_46 = arith.constant 0 : index
    %49 = vector.load %arg1[%c0_45, %c14, %c0_46] : memref<1x36x16xbf16, #tpu.memory_space<vmem>>, vector<1x22x16xbf16>
    %50 = vector.shape_cast %49 : vector<1x22x16xbf16> to vector<22x16xbf16>
    %c8_47 = arith.constant 8 : index
    %c0_48 = arith.constant 0 : index
    %c0_49 = arith.constant 0 : index
    %51 = vector.load %arg2[%c8_47, %c0_48, %c0_49] : memref<9x16x16xbf16, #tpu.memory_space<vmem>>, vector<1x16x16xbf16>
    %52 = vector.shape_cast %51 : vector<1x16x16xbf16> to vector<16x16xbf16>
    %cst_50 = arith.constant dense<0.000000e+00> : vector<22x16xf32>
    %53 = tpu.matmul %50, %52, %cst_50 {dimension_numbers = #tpu.dot_dimension_numbers<[1], [0], [0], [1], [0, 0, 1, 1], [], []>} : vector<22x16xbf16>, vector<16x16xbf16>, vector<22x16xf32> -> vector<22x16xf32>
    %54 = arith.addf %48, %53 : vector<22x16xf32>
    %c0_51 = arith.constant 0 : index
    %c0_52 = arith.constant 0 : index
    %55 = vector.load %arg3[%c0_51, %c0_52] : memref<1x16xf32, #tpu.memory_space<vmem>>, vector<1x16xf32>
    %56 = vector.broadcast %55 : vector<1x16xf32> to vector<22x16xf32>
    %57 = arith.addf %54, %56 : vector<22x16xf32>
    %58 = arith.negf %57 : vector<22x16xf32>
    %59 = math.exp %58 : vector<22x16xf32>
    %cst_53 = arith.constant 1.000000e+00 : f32
    %60 = vector.broadcast %cst_53 : f32 to vector<22x16xf32>
    %61 = arith.addf %60, %59 : vector<22x16xf32>
    %62 = arith.divf %60, %61 : vector<22x16xf32>
    %63 = arith.mulf %57, %62 : vector<22x16xf32>
    %c0_54 = arith.constant 0 : index
    %c0_55 = arith.constant 0 : index
    %64 = vector.load %arg4[%c0_54, %c0_55] : memref<9x16xbf16, #tpu.memory_space<vmem>>, vector<9x16xbf16>
    %65 = arith.truncf %63 : vector<22x16xf32> to vector<22x16xbf16>
    %cst_56 = arith.constant dense<0.000000e+00> : vector<9x22xf32>
    %66 = tpu.matmul %64, %65, %cst_56 {dimension_numbers = #tpu.dot_dimension_numbers<[1], [1], [0], [0], [0, 0, 1, 0], [], []>} : vector<9x16xbf16>, vector<22x16xbf16>, vector<9x22xf32> -> vector<9x22xf32>
    %c0_57 = arith.constant 0 : index
    %c0_58 = arith.constant 0 : index
    %67 = vector.load %arg5[%c0_57, %c0_58] : memref<9x1xf32, #tpu.memory_space<vmem>>, vector<9x1xf32>
    %68 = vector.broadcast %67 : vector<9x1xf32> to vector<9x22xf32>
    %69 = arith.addf %66, %68 : vector<9x22xf32>
    %70 = arith.truncf %69 : vector<9x22xf32> to vector<9x22xbf16>
    %c0_59 = arith.constant 0 : index
    %c0_60 = arith.constant 0 : index
    %c0_61 = arith.constant 0 : index
    %71 = vector.load %arg6[%c0_59, %c0_60, %c0_61] : memref<1x9x22xbf16, #tpu.memory_space<vmem>>, vector<1x9x22xbf16>
    %72 = vector.shape_cast %71 : vector<1x9x22xbf16> to vector<9x22xbf16>
    %73 = vector.shape_cast %70 : vector<9x22xbf16> to vector<1x9x22xbf16>
    tpu.vector_store %arg6[%c0_59, %c0_60, %c0_61], %73 {strides = array<i32>} : memref<1x9x22xbf16, #tpu.memory_space<vmem>>, vector<1x9x22xbf16>,
    return
  }
  func.func @transform_0(%arg0: i32) -> (i32, i32, i32) {
    %c0_i32 = arith.constant 0 : i32
    %c0_i32_0 = arith.constant 0 : i32
    %c0_i32_1 = arith.constant 0 : i32
    return %arg0, %c0_i32, %c0_i32_0 : i32, i32, i32
  }
  func.func @transform_1(%arg0: i32) -> (i32, i32, i32) {
    %c0_i32 = arith.constant 0 : i32
    %c0_i32_0 = arith.constant 0 : i32
    %c0_i32_1 = arith.constant 0 : i32
    %c0_i32_2 = arith.constant 0 : i32
    return %c0_i32, %c0_i32_0, %c0_i32_1 : i32, i32, i32
  }
  func.func @transform_2(%arg0: i32) -> (i32, i32) {
    %c0_i32 = arith.constant 0 : i32
    %c0_i32_0 = arith.constant 0 : i32
    %c0_i32_1 = arith.constant 0 : i32
    return %c0_i32, %c0_i32_0 : i32, i32
  }
  func.func @transform_3(%arg0: i32) -> (i32, i32) {
    %c0_i32 = arith.constant 0 : i32
    %c0_i32_0 = arith.constant 0 : i32
    %c0_i32_1 = arith.constant 0 : i32
    return %c0_i32, %c0_i32_0 : i32, i32
  }
  func.func @transform_4(%arg0: i32) -> (i32, i32) {
    %c0_i32 = arith.constant 0 : i32
    %c0_i32_0 = arith.constant 0 : i32
    %c0_i32_1 = arith.constant 0 : i32
    return %c0_i32, %c0_i32_0 : i32, i32
  }
  func.func @transform_5(%arg0: i32) -> (i32, i32, i32) {
    %c0_i32 = arith.constant 0 : i32
    %c0_i32_0 = arith.constant 0 : i32
    %c0_i32_1 = arith.constant 0 : i32
    return %arg0, %c0_i32, %c0_i32_0 : i32, i32, i32
  }
}

module attributes {stable_mosaic.version = 11 : i64} {
  func.func @_conv_taps_silu_kernel(%arg0: i32, %arg1: memref<1x25x32xbf16, #tpu.memory_space<vmem>>, %arg2: memref<4x32x16xbf16, #tpu.memory_space<vmem>>, %arg3: memref<1x16xf32, #tpu.memory_space<vmem>>, %arg4: memref<1x19x16xbf16, #tpu.memory_space<vmem>>) attributes {dimension_semantics = [#tpu.dimension_semantics<parallel>], iteration_bounds = array<i64: 2>, scalar_prefetch = 0 : i64, scratch_operands = 0 : i64, tpu.core_type = #tpu.core_type<tc>, window_params = [{transform_indices = @transform_0, window_bounds = array<i64: 1, 25, 32>}, {pipeline_mode = #tpu.pipeline_mode<synchronous>, transform_indices = @transform_1, window_bounds = array<i64: 4, 32, 16>}, {pipeline_mode = #tpu.pipeline_mode<synchronous>, transform_indices = @transform_2, window_bounds = array<i64: 1, 16>}, {transform_indices = @transform_3, window_bounds = array<i64: 1, 19, 16>}]} {
    %cst = arith.constant 0.000000e+00 : f32
    %0 = vector.broadcast %cst : f32 to vector<19x16xf32>
    %c0 = arith.constant 0 : index
    %c0_0 = arith.constant 0 : index
    %c0_1 = arith.constant 0 : index
    %1 = vector.load %arg1[%c0, %c0_0, %c0_1] : memref<1x25x32xbf16, #tpu.memory_space<vmem>>, vector<1x19x32xbf16>
    %2 = vector.shape_cast %1 : vector<1x19x32xbf16> to vector<19x32xbf16>
    %c0_2 = arith.constant 0 : index
    %c0_3 = arith.constant 0 : index
    %c0_4 = arith.constant 0 : index
    %3 = vector.load %arg2[%c0_2, %c0_3, %c0_4] : memref<4x32x16xbf16, #tpu.memory_space<vmem>>, vector<1x32x16xbf16>
    %4 = vector.shape_cast %3 : vector<1x32x16xbf16> to vector<32x16xbf16>
    %cst_5 = arith.constant dense<0.000000e+00> : vector<19x16xf32>
    %5 = tpu.matmul %2, %4, %cst_5 {dimension_numbers = #tpu.dot_dimension_numbers<[1], [0], [0], [1], [0, 0, 1, 1], [], []>} : vector<19x32xbf16>, vector<32x16xbf16>, vector<19x16xf32> -> vector<19x16xf32>
    %6 = arith.addf %0, %5 : vector<19x16xf32>
    %c0_6 = arith.constant 0 : index
    %c1 = arith.constant 1 : index
    %c0_7 = arith.constant 0 : index
    %7 = vector.load %arg1[%c0_6, %c1, %c0_7] : memref<1x25x32xbf16, #tpu.memory_space<vmem>>, vector<1x19x32xbf16>
    %8 = vector.shape_cast %7 : vector<1x19x32xbf16> to vector<19x32xbf16>
    %c1_8 = arith.constant 1 : index
    %c0_9 = arith.constant 0 : index
    %c0_10 = arith.constant 0 : index
    %9 = vector.load %arg2[%c1_8, %c0_9, %c0_10] : memref<4x32x16xbf16, #tpu.memory_space<vmem>>, vector<1x32x16xbf16>
    %10 = vector.shape_cast %9 : vector<1x32x16xbf16> to vector<32x16xbf16>
    %cst_11 = arith.constant dense<0.000000e+00> : vector<19x16xf32>
    %11 = tpu.matmul %8, %10, %cst_11 {dimension_numbers = #tpu.dot_dimension_numbers<[1], [0], [0], [1], [0, 0, 1, 1], [], []>} : vector<19x32xbf16>, vector<32x16xbf16>, vector<19x16xf32> -> vector<19x16xf32>
    %12 = arith.addf %6, %11 : vector<19x16xf32>
    %c0_12 = arith.constant 0 : index
    %c5 = arith.constant 5 : index
    %c0_13 = arith.constant 0 : index
    %13 = vector.load %arg1[%c0_12, %c5, %c0_13] : memref<1x25x32xbf16, #tpu.memory_space<vmem>>, vector<1x19x32xbf16>
    %14 = vector.shape_cast %13 : vector<1x19x32xbf16> to vector<19x32xbf16>
    %c2 = arith.constant 2 : index
    %c0_14 = arith.constant 0 : index
    %c0_15 = arith.constant 0 : index
    %15 = vector.load %arg2[%c2, %c0_14, %c0_15] : memref<4x32x16xbf16, #tpu.memory_space<vmem>>, vector<1x32x16xbf16>
    %16 = vector.shape_cast %15 : vector<1x32x16xbf16> to vector<32x16xbf16>
    %cst_16 = arith.constant dense<0.000000e+00> : vector<19x16xf32>
    %17 = tpu.matmul %14, %16, %cst_16 {dimension_numbers = #tpu.dot_dimension_numbers<[1], [0], [0], [1], [0, 0, 1, 1], [], []>} : vector<19x32xbf16>, vector<32x16xbf16>, vector<19x16xf32> -> vector<19x16xf32>
    %18 = arith.addf %12, %17 : vector<19x16xf32>
    %c0_17 = arith.constant 0 : index
    %c6 = arith.constant 6 : index
    %c0_18 = arith.constant 0 : index
    %19 = vector.load %arg1[%c0_17, %c6, %c0_18] : memref<1x25x32xbf16, #tpu.memory_space<vmem>>, vector<1x19x32xbf16>
    %20 = vector.shape_cast %19 : vector<1x19x32xbf16> to vector<19x32xbf16>
    %c3 = arith.constant 3 : index
    %c0_19 = arith.constant 0 : index
    %c0_20 = arith.constant 0 : index
    %21 = vector.load %arg2[%c3, %c0_19, %c0_20] : memref<4x32x16xbf16, #tpu.memory_space<vmem>>, vector<1x32x16xbf16>
    %22 = vector.shape_cast %21 : vector<1x32x16xbf16> to vector<32x16xbf16>
    %cst_21 = arith.constant dense<0.000000e+00> : vector<19x16xf32>
    %23 = tpu.matmul %20, %22, %cst_21 {dimension_numbers = #tpu.dot_dimension_numbers<[1], [0], [0], [1], [0, 0, 1, 1], [], []>} : vector<19x32xbf16>, vector<32x16xbf16>, vector<19x16xf32> -> vector<19x16xf32>
    %24 = arith.addf %18, %23 : vector<19x16xf32>
    %c0_22 = arith.constant 0 : index
    %c0_23 = arith.constant 0 : index
    %25 = vector.load %arg3[%c0_22, %c0_23] : memref<1x16xf32, #tpu.memory_space<vmem>>, vector<1x16xf32>
    %26 = vector.broadcast %25 : vector<1x16xf32> to vector<19x16xf32>
    %27 = arith.addf %24, %26 : vector<19x16xf32>
    %28 = arith.negf %27 : vector<19x16xf32>
    %29 = math.exp %28 : vector<19x16xf32>
    %cst_24 = arith.constant 1.000000e+00 : f32
    %30 = vector.broadcast %cst_24 : f32 to vector<19x16xf32>
    %31 = arith.addf %30, %29 : vector<19x16xf32>
    %32 = arith.divf %30, %31 : vector<19x16xf32>
    %33 = arith.mulf %27, %32 : vector<19x16xf32>
    %34 = arith.truncf %33 : vector<19x16xf32> to vector<19x16xbf16>
    %c0_25 = arith.constant 0 : index
    %c0_26 = arith.constant 0 : index
    %c0_27 = arith.constant 0 : index
    %35 = vector.load %arg4[%c0_25, %c0_26, %c0_27] : memref<1x19x16xbf16, #tpu.memory_space<vmem>>, vector<1x19x16xbf16>
    %36 = vector.shape_cast %35 : vector<1x19x16xbf16> to vector<19x16xbf16>
    %37 = vector.shape_cast %34 : vector<19x16xbf16> to vector<1x19x16xbf16>
    tpu.vector_store %arg4[%c0_25, %c0_26, %c0_27], %37 {strides = array<i32>} : memref<1x19x16xbf16, #tpu.memory_space<vmem>>, vector<1x19x16xbf16>,
    return
  }
  func.func @transform_0(%arg0: i32) -> (i32, i32, i32) {
    %c0_i32 = arith.constant 0 : i32
    %c0_i32_0 = arith.constant 0 : i32
    %c0_i32_1 = arith.constant 0 : i32
    return %arg0, %c0_i32, %c0_i32_0 : i32, i32, i32
  }
  func.func @transform_1(%arg0: i32) -> (i32, i32, i32) {
    %c0_i32 = arith.constant 0 : i32
    %c0_i32_0 = arith.constant 0 : i32
    %c0_i32_1 = arith.constant 0 : i32
    %c0_i32_2 = arith.constant 0 : i32
    return %c0_i32, %c0_i32_0, %c0_i32_1 : i32, i32, i32
  }
  func.func @transform_2(%arg0: i32) -> (i32, i32) {
    %c0_i32 = arith.constant 0 : i32
    %c0_i32_0 = arith.constant 0 : i32
    %c0_i32_1 = arith.constant 0 : i32
    return %c0_i32, %c0_i32_0 : i32, i32
  }
  func.func @transform_3(%arg0: i32) -> (i32, i32, i32) {
    %c0_i32 = arith.constant 0 : i32
    %c0_i32_0 = arith.constant 0 : i32
    %c0_i32_1 = arith.constant 0 : i32
    return %arg0, %c0_i32, %c0_i32_0 : i32, i32, i32
  }
}

module attributes {stable_mosaic.version = 11 : i64} {
  func.func @_conv_taps_silu_kernel(%arg0: i32, %arg1: memref<1x81x12xbf16, #tpu.memory_space<vmem>>, %arg2: memref<4x12x8xbf16, #tpu.memory_space<vmem>>, %arg3: memref<1x8xf32, #tpu.memory_space<vmem>>, %arg4: memref<1x71x8xbf16, #tpu.memory_space<vmem>>) attributes {dimension_semantics = [#tpu.dimension_semantics<parallel>], iteration_bounds = array<i64: 2>, scalar_prefetch = 0 : i64, scratch_operands = 0 : i64, tpu.core_type = #tpu.core_type<tc>, window_params = [{transform_indices = @transform_0, window_bounds = array<i64: 1, 81, 12>}, {pipeline_mode = #tpu.pipeline_mode<synchronous>, transform_indices = @transform_1, window_bounds = array<i64: 4, 12, 8>}, {pipeline_mode = #tpu.pipeline_mode<synchronous>, transform_indices = @transform_2, window_bounds = array<i64: 1, 8>}, {transform_indices = @transform_3, window_bounds = array<i64: 1, 71, 8>}]} {
    %cst = arith.constant 0.000000e+00 : f32
    %0 = vector.broadcast %cst : f32 to vector<71x8xf32>
    %c0 = arith.constant 0 : index
    %c0_0 = arith.constant 0 : index
    %c0_1 = arith.constant 0 : index
    %1 = vector.load %arg1[%c0, %c0_0, %c0_1] : memref<1x81x12xbf16, #tpu.memory_space<vmem>>, vector<1x71x12xbf16>
    %2 = vector.shape_cast %1 : vector<1x71x12xbf16> to vector<71x12xbf16>
    %c0_2 = arith.constant 0 : index
    %c0_3 = arith.constant 0 : index
    %c0_4 = arith.constant 0 : index
    %3 = vector.load %arg2[%c0_2, %c0_3, %c0_4] : memref<4x12x8xbf16, #tpu.memory_space<vmem>>, vector<1x12x8xbf16>
    %4 = vector.shape_cast %3 : vector<1x12x8xbf16> to vector<12x8xbf16>
    %cst_5 = arith.constant dense<0.000000e+00> : vector<71x8xf32>
    %5 = tpu.matmul %2, %4, %cst_5 {dimension_numbers = #tpu.dot_dimension_numbers<[1], [0], [0], [1], [0, 0, 1, 1], [], []>} : vector<71x12xbf16>, vector<12x8xbf16>, vector<71x8xf32> -> vector<71x8xf32>
    %6 = arith.addf %0, %5 : vector<71x8xf32>
    %c0_6 = arith.constant 0 : index
    %c1 = arith.constant 1 : index
    %c0_7 = arith.constant 0 : index
    %7 = vector.load %arg1[%c0_6, %c1, %c0_7] : memref<1x81x12xbf16, #tpu.memory_space<vmem>>, vector<1x71x12xbf16>
    %8 = vector.shape_cast %7 : vector<1x71x12xbf16> to vector<71x12xbf16>
    %c1_8 = arith.constant 1 : index
    %c0_9 = arith.constant 0 : index
    %c0_10 = arith.constant 0 : index
    %9 = vector.load %arg2[%c1_8, %c0_9, %c0_10] : memref<4x12x8xbf16, #tpu.memory_space<vmem>>, vector<1x12x8xbf16>
    %10 = vector.shape_cast %9 : vector<1x12x8xbf16> to vector<12x8xbf16>
    %cst_11 = arith.constant dense<0.000000e+00> : vector<71x8xf32>
    %11 = tpu.matmul %8, %10, %cst_11 {dimension_numbers = #tpu.dot_dimension_numbers<[1], [0], [0], [1], [0, 0, 1, 1], [], []>} : vector<71x12xbf16>, vector<12x8xbf16>, vector<71x8xf32> -> vector<71x8xf32>
    %12 = arith.addf %6, %11 : vector<71x8xf32>
    %c0_12 = arith.constant 0 : index
    %c9 = arith.constant 9 : index
    %c0_13 = arith.constant 0 : index
    %13 = vector.load %arg1[%c0_12, %c9, %c0_13] : memref<1x81x12xbf16, #tpu.memory_space<vmem>>, vector<1x71x12xbf16>
    %14 = vector.shape_cast %13 : vector<1x71x12xbf16> to vector<71x12xbf16>
    %c2 = arith.constant 2 : index
    %c0_14 = arith.constant 0 : index
    %c0_15 = arith.constant 0 : index
    %15 = vector.load %arg2[%c2, %c0_14, %c0_15] : memref<4x12x8xbf16, #tpu.memory_space<vmem>>, vector<1x12x8xbf16>
    %16 = vector.shape_cast %15 : vector<1x12x8xbf16> to vector<12x8xbf16>
    %cst_16 = arith.constant dense<0.000000e+00> : vector<71x8xf32>
    %17 = tpu.matmul %14, %16, %cst_16 {dimension_numbers = #tpu.dot_dimension_numbers<[1], [0], [0], [1], [0, 0, 1, 1], [], []>} : vector<71x12xbf16>, vector<12x8xbf16>, vector<71x8xf32> -> vector<71x8xf32>
    %18 = arith.addf %12, %17 : vector<71x8xf32>
    %c0_17 = arith.constant 0 : index
    %c10 = arith.constant 10 : index
    %c0_18 = arith.constant 0 : index
    %19 = vector.load %arg1[%c0_17, %c10, %c0_18] : memref<1x81x12xbf16, #tpu.memory_space<vmem>>, vector<1x71x12xbf16>
    %20 = vector.shape_cast %19 : vector<1x71x12xbf16> to vector<71x12xbf16>
    %c3 = arith.constant 3 : index
    %c0_19 = arith.constant 0 : index
    %c0_20 = arith.constant 0 : index
    %21 = vector.load %arg2[%c3, %c0_19, %c0_20] : memref<4x12x8xbf16, #tpu.memory_space<vmem>>, vector<1x12x8xbf16>
    %22 = vector.shape_cast %21 : vector<1x12x8xbf16> to vector<12x8xbf16>
    %cst_21 = arith.constant dense<0.000000e+00> : vector<71x8xf32>
    %23 = tpu.matmul %20, %22, %cst_21 {dimension_numbers = #tpu.dot_dimension_numbers<[1], [0], [0], [1], [0, 0, 1, 1], [], []>} : vector<71x12xbf16>, vector<12x8xbf16>, vector<71x8xf32> -> vector<71x8xf32>
    %24 = arith.addf %18, %23 : vector<71x8xf32>
    %c0_22 = arith.constant 0 : index
    %c0_23 = arith.constant 0 : index
    %25 = vector.load %arg3[%c0_22, %c0_23] : memref<1x8xf32, #tpu.memory_space<vmem>>, vector<1x8xf32>
    %26 = vector.broadcast %25 : vector<1x8xf32> to vector<71x8xf32>
    %27 = arith.addf %24, %26 : vector<71x8xf32>
    %28 = arith.negf %27 : vector<71x8xf32>
    %29 = math.exp %28 : vector<71x8xf32>
    %cst_24 = arith.constant 1.000000e+00 : f32
    %30 = vector.broadcast %cst_24 : f32 to vector<71x8xf32>
    %31 = arith.addf %30, %29 : vector<71x8xf32>
    %32 = arith.divf %30, %31 : vector<71x8xf32>
    %33 = arith.mulf %27, %32 : vector<71x8xf32>
    %34 = arith.truncf %33 : vector<71x8xf32> to vector<71x8xbf16>
    %c0_25 = arith.constant 0 : index
    %c0_26 = arith.constant 0 : index
    %c0_27 = arith.constant 0 : index
    %35 = vector.load %arg4[%c0_25, %c0_26, %c0_27] : memref<1x71x8xbf16, #tpu.memory_space<vmem>>, vector<1x71x8xbf16>
    %36 = vector.shape_cast %35 : vector<1x71x8xbf16> to vector<71x8xbf16>
    %37 = vector.shape_cast %34 : vector<71x8xbf16> to vector<1x71x8xbf16>
    tpu.vector_store %arg4[%c0_25, %c0_26, %c0_27], %37 {strides = array<i32>} : memref<1x71x8xbf16, #tpu.memory_space<vmem>>, vector<1x71x8xbf16>,
    return
  }
  func.func @transform_0(%arg0: i32) -> (i32, i32, i32) {
    %c0_i32 = arith.constant 0 : i32
    %c0_i32_0 = arith.constant 0 : i32
    %c0_i32_1 = arith.constant 0 : i32
    return %arg0, %c0_i32, %c0_i32_0 : i32, i32, i32
  }
  func.func @transform_1(%arg0: i32) -> (i32, i32, i32) {
    %c0_i32 = arith.constant 0 : i32
    %c0_i32_0 = arith.constant 0 : i32
    %c0_i32_1 = arith.constant 0 : i32
    %c0_i32_2 = arith.constant 0 : i32
    return %c0_i32, %c0_i32_0, %c0_i32_1 : i32, i32, i32
  }
  func.func @transform_2(%arg0: i32) -> (i32, i32) {
    %c0_i32 = arith.constant 0 : i32
    %c0_i32_0 = arith.constant 0 : i32
    %c0_i32_1 = arith.constant 0 : i32
    return %c0_i32, %c0_i32_0 : i32, i32
  }
  func.func @transform_3(%arg0: i32) -> (i32, i32, i32) {
    %c0_i32 = arith.constant 0 : i32
    %c0_i32_0 = arith.constant 0 : i32
    %c0_i32_1 = arith.constant 0 : i32
    return %arg0, %c0_i32, %c0_i32_0 : i32, i32, i32
  }
}

module attributes {stable_mosaic.version = 11 : i64} {
  func.func @_conv_taps_silu_kernel(%arg0: i32, %arg1: memref<1x25x32xbf16, #tpu.memory_space<vmem>>, %arg2: memref<4x32x16xbf16, #tpu.memory_space<vmem>>, %arg3: memref<1x16xf32, #tpu.memory_space<vmem>>, %arg4: memref<1x19x16xbf16, #tpu.memory_space<vmem>>) attributes {dimension_semantics = [#tpu.dimension_semantics<parallel>], iteration_bounds = array<i64: 2>, scalar_prefetch = 0 : i64, scratch_operands = 0 : i64, tpu.core_type = #tpu.core_type<tc>, window_params = [{transform_indices = @transform_0, window_bounds = array<i64: 1, 25, 32>}, {pipeline_mode = #tpu.pipeline_mode<synchronous>, transform_indices = @transform_1, window_bounds = array<i64: 4, 32, 16>}, {pipeline_mode = #tpu.pipeline_mode<synchronous>, transform_indices = @transform_2, window_bounds = array<i64: 1, 16>}, {transform_indices = @transform_3, window_bounds = array<i64: 1, 19, 16>}]} {
    %cst = arith.constant 0.000000e+00 : f32
    %0 = vector.broadcast %cst : f32 to vector<19x16xf32>
    %c0 = arith.constant 0 : index
    %c0_0 = arith.constant 0 : index
    %c0_1 = arith.constant 0 : index
    %1 = vector.load %arg1[%c0, %c0_0, %c0_1] : memref<1x25x32xbf16, #tpu.memory_space<vmem>>, vector<1x19x32xbf16>
    %2 = vector.shape_cast %1 : vector<1x19x32xbf16> to vector<19x32xbf16>
    %c0_2 = arith.constant 0 : index
    %c0_3 = arith.constant 0 : index
    %c0_4 = arith.constant 0 : index
    %3 = vector.load %arg2[%c0_2, %c0_3, %c0_4] : memref<4x32x16xbf16, #tpu.memory_space<vmem>>, vector<1x32x16xbf16>
    %4 = vector.shape_cast %3 : vector<1x32x16xbf16> to vector<32x16xbf16>
    %cst_5 = arith.constant dense<0.000000e+00> : vector<19x16xf32>
    %5 = tpu.matmul %2, %4, %cst_5 {dimension_numbers = #tpu.dot_dimension_numbers<[1], [0], [0], [1], [0, 0, 1, 1], [], []>} : vector<19x32xbf16>, vector<32x16xbf16>, vector<19x16xf32> -> vector<19x16xf32>
    %6 = arith.addf %0, %5 : vector<19x16xf32>
    %c0_6 = arith.constant 0 : index
    %c1 = arith.constant 1 : index
    %c0_7 = arith.constant 0 : index
    %7 = vector.load %arg1[%c0_6, %c1, %c0_7] : memref<1x25x32xbf16, #tpu.memory_space<vmem>>, vector<1x19x32xbf16>
    %8 = vector.shape_cast %7 : vector<1x19x32xbf16> to vector<19x32xbf16>
    %c1_8 = arith.constant 1 : index
    %c0_9 = arith.constant 0 : index
    %c0_10 = arith.constant 0 : index
    %9 = vector.load %arg2[%c1_8, %c0_9, %c0_10] : memref<4x32x16xbf16, #tpu.memory_space<vmem>>, vector<1x32x16xbf16>
    %10 = vector.shape_cast %9 : vector<1x32x16xbf16> to vector<32x16xbf16>
    %cst_11 = arith.constant dense<0.000000e+00> : vector<19x16xf32>
    %11 = tpu.matmul %8, %10, %cst_11 {dimension_numbers = #tpu.dot_dimension_numbers<[1], [0], [0], [1], [0, 0, 1, 1], [], []>} : vector<19x32xbf16>, vector<32x16xbf16>, vector<19x16xf32> -> vector<19x16xf32>
    %12 = arith.addf %6, %11 : vector<19x16xf32>
    %c0_12 = arith.constant 0 : index
    %c5 = arith.constant 5 : index
    %c0_13 = arith.constant 0 : index
    %13 = vector.load %arg1[%c0_12, %c5, %c0_13] : memref<1x25x32xbf16, #tpu.memory_space<vmem>>, vector<1x19x32xbf16>
    %14 = vector.shape_cast %13 : vector<1x19x32xbf16> to vector<19x32xbf16>
    %c2 = arith.constant 2 : index
    %c0_14 = arith.constant 0 : index
    %c0_15 = arith.constant 0 : index
    %15 = vector.load %arg2[%c2, %c0_14, %c0_15] : memref<4x32x16xbf16, #tpu.memory_space<vmem>>, vector<1x32x16xbf16>
    %16 = vector.shape_cast %15 : vector<1x32x16xbf16> to vector<32x16xbf16>
    %cst_16 = arith.constant dense<0.000000e+00> : vector<19x16xf32>
    %17 = tpu.matmul %14, %16, %cst_16 {dimension_numbers = #tpu.dot_dimension_numbers<[1], [0], [0], [1], [0, 0, 1, 1], [], []>} : vector<19x32xbf16>, vector<32x16xbf16>, vector<19x16xf32> -> vector<19x16xf32>
    %18 = arith.addf %12, %17 : vector<19x16xf32>
    %c0_17 = arith.constant 0 : index
    %c6 = arith.constant 6 : index
    %c0_18 = arith.constant 0 : index
    %19 = vector.load %arg1[%c0_17, %c6, %c0_18] : memref<1x25x32xbf16, #tpu.memory_space<vmem>>, vector<1x19x32xbf16>
    %20 = vector.shape_cast %19 : vector<1x19x32xbf16> to vector<19x32xbf16>
    %c3 = arith.constant 3 : index
    %c0_19 = arith.constant 0 : index
    %c0_20 = arith.constant 0 : index
    %21 = vector.load %arg2[%c3, %c0_19, %c0_20] : memref<4x32x16xbf16, #tpu.memory_space<vmem>>, vector<1x32x16xbf16>
    %22 = vector.shape_cast %21 : vector<1x32x16xbf16> to vector<32x16xbf16>
    %cst_21 = arith.constant dense<0.000000e+00> : vector<19x16xf32>
    %23 = tpu.matmul %20, %22, %cst_21 {dimension_numbers = #tpu.dot_dimension_numbers<[1], [0], [0], [1], [0, 0, 1, 1], [], []>} : vector<19x32xbf16>, vector<32x16xbf16>, vector<19x16xf32> -> vector<19x16xf32>
    %24 = arith.addf %18, %23 : vector<19x16xf32>
    %c0_22 = arith.constant 0 : index
    %c0_23 = arith.constant 0 : index
    %25 = vector.load %arg3[%c0_22, %c0_23] : memref<1x16xf32, #tpu.memory_space<vmem>>, vector<1x16xf32>
    %26 = vector.broadcast %25 : vector<1x16xf32> to vector<19x16xf32>
    %27 = arith.addf %24, %26 : vector<19x16xf32>
    %28 = arith.negf %27 : vector<19x16xf32>
    %29 = math.exp %28 : vector<19x16xf32>
    %cst_24 = arith.constant 1.000000e+00 : f32
    %30 = vector.broadcast %cst_24 : f32 to vector<19x16xf32>
    %31 = arith.addf %30, %29 : vector<19x16xf32>
    %32 = arith.divf %30, %31 : vector<19x16xf32>
    %33 = arith.mulf %27, %32 : vector<19x16xf32>
    %34 = arith.truncf %33 : vector<19x16xf32> to vector<19x16xbf16>
    %c0_25 = arith.constant 0 : index
    %c0_26 = arith.constant 0 : index
    %c0_27 = arith.constant 0 : index
    %35 = vector.load %arg4[%c0_25, %c0_26, %c0_27] : memref<1x19x16xbf16, #tpu.memory_space<vmem>>, vector<1x19x16xbf16>
    %36 = vector.shape_cast %35 : vector<1x19x16xbf16> to vector<19x16xbf16>
    %37 = vector.shape_cast %34 : vector<19x16xbf16> to vector<1x19x16xbf16>
    tpu.vector_store %arg4[%c0_25, %c0_26, %c0_27], %37 {strides = array<i32>} : memref<1x19x16xbf16, #tpu.memory_space<vmem>>, vector<1x19x16xbf16>,
    return
  }
  func.func @transform_0(%arg0: i32) -> (i32, i32, i32) {
    %c0_i32 = arith.constant 0 : i32
    %c0_i32_0 = arith.constant 0 : i32
    %c0_i32_1 = arith.constant 0 : i32
    return %arg0, %c0_i32, %c0_i32_0 : i32, i32, i32
  }
  func.func @transform_1(%arg0: i32) -> (i32, i32, i32) {
    %c0_i32 = arith.constant 0 : i32
    %c0_i32_0 = arith.constant 0 : i32
    %c0_i32_1 = arith.constant 0 : i32
    %c0_i32_2 = arith.constant 0 : i32
    return %c0_i32, %c0_i32_0, %c0_i32_1 : i32, i32, i32
  }
  func.func @transform_2(%arg0: i32) -> (i32, i32) {
    %c0_i32 = arith.constant 0 : i32
    %c0_i32_0 = arith.constant 0 : i32
    %c0_i32_1 = arith.constant 0 : i32
    return %c0_i32, %c0_i32_0 : i32, i32
  }
  func.func @transform_3(%arg0: i32) -> (i32, i32, i32) {
    %c0_i32 = arith.constant 0 : i32
    %c0_i32_0 = arith.constant 0 : i32
    %c0_i32_1 = arith.constant 0 : i32
    return %arg0, %c0_i32, %c0_i32_0 : i32, i32, i32
  }
}

module attributes {stable_mosaic.version = 11 : i64} {
  func.func @_conv_taps_silu_head_kernel(%arg0: i32, %arg1: memref<1x36x16xbf16, #tpu.memory_space<vmem>>, %arg2: memref<9x16x16xbf16, #tpu.memory_space<vmem>>, %arg3: memref<1x16xf32, #tpu.memory_space<vmem>>, %arg4: memref<9x16xbf16, #tpu.memory_space<vmem>>, %arg5: memref<9x1xf32, #tpu.memory_space<vmem>>, %arg6: memref<1x9x22xbf16, #tpu.memory_space<vmem>>) attributes {dimension_semantics = [#tpu.dimension_semantics<parallel>], iteration_bounds = array<i64: 2>, scalar_prefetch = 0 : i64, scratch_operands = 0 : i64, tpu.core_type = #tpu.core_type<tc>, window_params = [{transform_indices = @transform_0, window_bounds = array<i64: 1, 36, 16>}, {pipeline_mode = #tpu.pipeline_mode<synchronous>, transform_indices = @transform_1, window_bounds = array<i64: 9, 16, 16>}, {pipeline_mode = #tpu.pipeline_mode<synchronous>, transform_indices = @transform_2, window_bounds = array<i64: 1, 16>}, {pipeline_mode = #tpu.pipeline_mode<synchronous>, transform_indices = @transform_3, window_bounds = array<i64: 9, 16>}, {pipeline_mode = #tpu.pipeline_mode<synchronous>, transform_indices = @transform_4, window_bounds = array<i64: 9, 1>}, {transform_indices = @transform_5, window_bounds = array<i64: 1, 9, 22>}]} {
    %cst = arith.constant 0.000000e+00 : f32
    %0 = vector.broadcast %cst : f32 to vector<22x16xf32>
    %c0 = arith.constant 0 : index
    %c0_0 = arith.constant 0 : index
    %c0_1 = arith.constant 0 : index
    %1 = vector.load %arg1[%c0, %c0_0, %c0_1] : memref<1x36x16xbf16, #tpu.memory_space<vmem>>, vector<1x22x16xbf16>
    %2 = vector.shape_cast %1 : vector<1x22x16xbf16> to vector<22x16xbf16>
    %c0_2 = arith.constant 0 : index
    %c0_3 = arith.constant 0 : index
    %c0_4 = arith.constant 0 : index
    %3 = vector.load %arg2[%c0_2, %c0_3, %c0_4] : memref<9x16x16xbf16, #tpu.memory_space<vmem>>, vector<1x16x16xbf16>
    %4 = vector.shape_cast %3 : vector<1x16x16xbf16> to vector<16x16xbf16>
    %cst_5 = arith.constant dense<0.000000e+00> : vector<22x16xf32>
    %5 = tpu.matmul %2, %4, %cst_5 {dimension_numbers = #tpu.dot_dimension_numbers<[1], [0], [0], [1], [0, 0, 1, 1], [], []>} : vector<22x16xbf16>, vector<16x16xbf16>, vector<22x16xf32> -> vector<22x16xf32>
    %6 = arith.addf %0, %5 : vector<22x16xf32>
    %c0_6 = arith.constant 0 : index
    %c1 = arith.constant 1 : index
    %c0_7 = arith.constant 0 : index
    %7 = vector.load %arg1[%c0_6, %c1, %c0_7] : memref<1x36x16xbf16, #tpu.memory_space<vmem>>, vector<1x22x16xbf16>
    %8 = vector.shape_cast %7 : vector<1x22x16xbf16> to vector<22x16xbf16>
    %c1_8 = arith.constant 1 : index
    %c0_9 = arith.constant 0 : index
    %c0_10 = arith.constant 0 : index
    %9 = vector.load %arg2[%c1_8, %c0_9, %c0_10] : memref<9x16x16xbf16, #tpu.memory_space<vmem>>, vector<1x16x16xbf16>
    %10 = vector.shape_cast %9 : vector<1x16x16xbf16> to vector<16x16xbf16>
    %cst_11 = arith.constant dense<0.000000e+00> : vector<22x16xf32>
    %11 = tpu.matmul %8, %10, %cst_11 {dimension_numbers = #tpu.dot_dimension_numbers<[1], [0], [0], [1], [0, 0, 1, 1], [], []>} : vector<22x16xbf16>, vector<16x16xbf16>, vector<22x16xf32> -> vector<22x16xf32>
    %12 = arith.addf %6, %11 : vector<22x16xf32>
    %c0_12 = arith.constant 0 : index
    %c2 = arith.constant 2 : index
    %c0_13 = arith.constant 0 : index
    %13 = vector.load %arg1[%c0_12, %c2, %c0_13] : memref<1x36x16xbf16, #tpu.memory_space<vmem>>, vector<1x22x16xbf16>
    %14 = vector.shape_cast %13 : vector<1x22x16xbf16> to vector<22x16xbf16>
    %c2_14 = arith.constant 2 : index
    %c0_15 = arith.constant 0 : index
    %c0_16 = arith.constant 0 : index
    %15 = vector.load %arg2[%c2_14, %c0_15, %c0_16] : memref<9x16x16xbf16, #tpu.memory_space<vmem>>, vector<1x16x16xbf16>
    %16 = vector.shape_cast %15 : vector<1x16x16xbf16> to vector<16x16xbf16>
    %cst_17 = arith.constant dense<0.000000e+00> : vector<22x16xf32>
    %17 = tpu.matmul %14, %16, %cst_17 {dimension_numbers = #tpu.dot_dimension_numbers<[1], [0], [0], [1], [0, 0, 1, 1], [], []>} : vector<22x16xbf16>, vector<16x16xbf16>, vector<22x16xf32> -> vector<22x16xf32>
    %18 = arith.addf %12, %17 : vector<22x16xf32>
    %c0_18 = arith.constant 0 : index
    %c6 = arith.constant 6 : index
    %c0_19 = arith.constant 0 : index
    %19 = vector.load %arg1[%c0_18, %c6, %c0_19] : memref<1x36x16xbf16, #tpu.memory_space<vmem>>, vector<1x22x16xbf16>
    %20 = vector.shape_cast %19 : vector<1x22x16xbf16> to vector<22x16xbf16>
    %c3 = arith.constant 3 : index
    %c0_20 = arith.constant 0 : index
    %c0_21 = arith.constant 0 : index
    %21 = vector.load %arg2[%c3, %c0_20, %c0_21] : memref<9x16x16xbf16, #tpu.memory_space<vmem>>, vector<1x16x16xbf16>
    %22 = vector.shape_cast %21 : vector<1x16x16xbf16> to vector<16x16xbf16>
    %cst_22 = arith.constant dense<0.000000e+00> : vector<22x16xf32>
    %23 = tpu.matmul %20, %22, %cst_22 {dimension_numbers = #tpu.dot_dimension_numbers<[1], [0], [0], [1], [0, 0, 1, 1], [], []>} : vector<22x16xbf16>, vector<16x16xbf16>, vector<22x16xf32> -> vector<22x16xf32>
    %24 = arith.addf %18, %23 : vector<22x16xf32>
    %c0_23 = arith.constant 0 : index
    %c7 = arith.constant 7 : index
    %c0_24 = arith.constant 0 : index
    %25 = vector.load %arg1[%c0_23, %c7, %c0_24] : memref<1x36x16xbf16, #tpu.memory_space<vmem>>, vector<1x22x16xbf16>
    %26 = vector.shape_cast %25 : vector<1x22x16xbf16> to vector<22x16xbf16>
    %c4 = arith.constant 4 : index
    %c0_25 = arith.constant 0 : index
    %c0_26 = arith.constant 0 : index
    %27 = vector.load %arg2[%c4, %c0_25, %c0_26] : memref<9x16x16xbf16, #tpu.memory_space<vmem>>, vector<1x16x16xbf16>
    %28 = vector.shape_cast %27 : vector<1x16x16xbf16> to vector<16x16xbf16>
    %cst_27 = arith.constant dense<0.000000e+00> : vector<22x16xf32>
    %29 = tpu.matmul %26, %28, %cst_27 {dimension_numbers = #tpu.dot_dimension_numbers<[1], [0], [0], [1], [0, 0, 1, 1], [], []>} : vector<22x16xbf16>, vector<16x16xbf16>, vector<22x16xf32> -> vector<22x16xf32>
    %30 = arith.addf %24, %29 : vector<22x16xf32>
    %c0_28 = arith.constant 0 : index
    %c8 = arith.constant 8 : index
    %c0_29 = arith.constant 0 : index
    %31 = vector.load %arg1[%c0_28, %c8, %c0_29] : memref<1x36x16xbf16, #tpu.memory_space<vmem>>, vector<1x22x16xbf16>
    %32 = vector.shape_cast %31 : vector<1x22x16xbf16> to vector<22x16xbf16>
    %c5 = arith.constant 5 : index
    %c0_30 = arith.constant 0 : index
    %c0_31 = arith.constant 0 : index
    %33 = vector.load %arg2[%c5, %c0_30, %c0_31] : memref<9x16x16xbf16, #tpu.memory_space<vmem>>, vector<1x16x16xbf16>
    %34 = vector.shape_cast %33 : vector<1x16x16xbf16> to vector<16x16xbf16>
    %cst_32 = arith.constant dense<0.000000e+00> : vector<22x16xf32>
    %35 = tpu.matmul %32, %34, %cst_32 {dimension_numbers = #tpu.dot_dimension_numbers<[1], [0], [0], [1], [0, 0, 1, 1], [], []>} : vector<22x16xbf16>, vector<16x16xbf16>, vector<22x16xf32> -> vector<22x16xf32>
    %36 = arith.addf %30, %35 : vector<22x16xf32>
    %c0_33 = arith.constant 0 : index
    %c12 = arith.constant 12 : index
    %c0_34 = arith.constant 0 : index
    %37 = vector.load %arg1[%c0_33, %c12, %c0_34] : memref<1x36x16xbf16, #tpu.memory_space<vmem>>, vector<1x22x16xbf16>
    %38 = vector.shape_cast %37 : vector<1x22x16xbf16> to vector<22x16xbf16>
    %c6_35 = arith.constant 6 : index
    %c0_36 = arith.constant 0 : index
    %c0_37 = arith.constant 0 : index
    %39 = vector.load %arg2[%c6_35, %c0_36, %c0_37] : memref<9x16x16xbf16, #tpu.memory_space<vmem>>, vector<1x16x16xbf16>
    %40 = vector.shape_cast %39 : vector<1x16x16xbf16> to vector<16x16xbf16>
    %cst_38 = arith.constant dense<0.000000e+00> : vector<22x16xf32>
    %41 = tpu.matmul %38, %40, %cst_38 {dimension_numbers = #tpu.dot_dimension_numbers<[1], [0], [0], [1], [0, 0, 1, 1], [], []>} : vector<22x16xbf16>, vector<16x16xbf16>, vector<22x16xf32> -> vector<22x16xf32>
    %42 = arith.addf %36, %41 : vector<22x16xf32>
    %c0_39 = arith.constant 0 : index
    %c13 = arith.constant 13 : index
    %c0_40 = arith.constant 0 : index
    %43 = vector.load %arg1[%c0_39, %c13, %c0_40] : memref<1x36x16xbf16, #tpu.memory_space<vmem>>, vector<1x22x16xbf16>
    %44 = vector.shape_cast %43 : vector<1x22x16xbf16> to vector<22x16xbf16>
    %c7_41 = arith.constant 7 : index
    %c0_42 = arith.constant 0 : index
    %c0_43 = arith.constant 0 : index
    %45 = vector.load %arg2[%c7_41, %c0_42, %c0_43] : memref<9x16x16xbf16, #tpu.memory_space<vmem>>, vector<1x16x16xbf16>
    %46 = vector.shape_cast %45 : vector<1x16x16xbf16> to vector<16x16xbf16>
    %cst_44 = arith.constant dense<0.000000e+00> : vector<22x16xf32>
    %47 = tpu.matmul %44, %46, %cst_44 {dimension_numbers = #tpu.dot_dimension_numbers<[1], [0], [0], [1], [0, 0, 1, 1], [], []>} : vector<22x16xbf16>, vector<16x16xbf16>, vector<22x16xf32> -> vector<22x16xf32>
    %48 = arith.addf %42, %47 : vector<22x16xf32>
    %c0_45 = arith.constant 0 : index
    %c14 = arith.constant 14 : index
    %c0_46 = arith.constant 0 : index
    %49 = vector.load %arg1[%c0_45, %c14, %c0_46] : memref<1x36x16xbf16, #tpu.memory_space<vmem>>, vector<1x22x16xbf16>
    %50 = vector.shape_cast %49 : vector<1x22x16xbf16> to vector<22x16xbf16>
    %c8_47 = arith.constant 8 : index
    %c0_48 = arith.constant 0 : index
    %c0_49 = arith.constant 0 : index
    %51 = vector.load %arg2[%c8_47, %c0_48, %c0_49] : memref<9x16x16xbf16, #tpu.memory_space<vmem>>, vector<1x16x16xbf16>
    %52 = vector.shape_cast %51 : vector<1x16x16xbf16> to vector<16x16xbf16>
    %cst_50 = arith.constant dense<0.000000e+00> : vector<22x16xf32>
    %53 = tpu.matmul %50, %52, %cst_50 {dimension_numbers = #tpu.dot_dimension_numbers<[1], [0], [0], [1], [0, 0, 1, 1], [], []>} : vector<22x16xbf16>, vector<16x16xbf16>, vector<22x16xf32> -> vector<22x16xf32>
    %54 = arith.addf %48, %53 : vector<22x16xf32>
    %c0_51 = arith.constant 0 : index
    %c0_52 = arith.constant 0 : index
    %55 = vector.load %arg3[%c0_51, %c0_52] : memref<1x16xf32, #tpu.memory_space<vmem>>, vector<1x16xf32>
    %56 = vector.broadcast %55 : vector<1x16xf32> to vector<22x16xf32>
    %57 = arith.addf %54, %56 : vector<22x16xf32>
    %58 = arith.negf %57 : vector<22x16xf32>
    %59 = math.exp %58 : vector<22x16xf32>
    %cst_53 = arith.constant 1.000000e+00 : f32
    %60 = vector.broadcast %cst_53 : f32 to vector<22x16xf32>
    %61 = arith.addf %60, %59 : vector<22x16xf32>
    %62 = arith.divf %60, %61 : vector<22x16xf32>
    %63 = arith.mulf %57, %62 : vector<22x16xf32>
    %c0_54 = arith.constant 0 : index
    %c0_55 = arith.constant 0 : index
    %64 = vector.load %arg4[%c0_54, %c0_55] : memref<9x16xbf16, #tpu.memory_space<vmem>>, vector<9x16xbf16>
    %65 = arith.truncf %63 : vector<22x16xf32> to vector<22x16xbf16>
    %cst_56 = arith.constant dense<0.000000e+00> : vector<9x22xf32>
    %66 = tpu.matmul %64, %65, %cst_56 {dimension_numbers = #tpu.dot_dimension_numbers<[1], [1], [0], [0], [0, 0, 1, 0], [], []>} : vector<9x16xbf16>, vector<22x16xbf16>, vector<9x22xf32> -> vector<9x22xf32>
    %c0_57 = arith.constant 0 : index
    %c0_58 = arith.constant 0 : index
    %67 = vector.load %arg5[%c0_57, %c0_58] : memref<9x1xf32, #tpu.memory_space<vmem>>, vector<9x1xf32>
    %68 = vector.broadcast %67 : vector<9x1xf32> to vector<9x22xf32>
    %69 = arith.addf %66, %68 : vector<9x22xf32>
    %70 = arith.truncf %69 : vector<9x22xf32> to vector<9x22xbf16>
    %c0_59 = arith.constant 0 : index
    %c0_60 = arith.constant 0 : index
    %c0_61 = arith.constant 0 : index
    %71 = vector.load %arg6[%c0_59, %c0_60, %c0_61] : memref<1x9x22xbf16, #tpu.memory_space<vmem>>, vector<1x9x22xbf16>
    %72 = vector.shape_cast %71 : vector<1x9x22xbf16> to vector<9x22xbf16>
    %73 = vector.shape_cast %70 : vector<9x22xbf16> to vector<1x9x22xbf16>
    tpu.vector_store %arg6[%c0_59, %c0_60, %c0_61], %73 {strides = array<i32>} : memref<1x9x22xbf16, #tpu.memory_space<vmem>>, vector<1x9x22xbf16>,
    return
  }
  func.func @transform_0(%arg0: i32) -> (i32, i32, i32) {
    %c0_i32 = arith.constant 0 : i32
    %c0_i32_0 = arith.constant 0 : i32
    %c0_i32_1 = arith.constant 0 : i32
    return %arg0, %c0_i32, %c0_i32_0 : i32, i32, i32
  }
  func.func @transform_1(%arg0: i32) -> (i32, i32, i32) {
    %c0_i32 = arith.constant 0 : i32
    %c0_i32_0 = arith.constant 0 : i32
    %c0_i32_1 = arith.constant 0 : i32
    %c0_i32_2 = arith.constant 0 : i32
    return %c0_i32, %c0_i32_0, %c0_i32_1 : i32, i32, i32
  }
  func.func @transform_2(%arg0: i32) -> (i32, i32) {
    %c0_i32 = arith.constant 0 : i32
    %c0_i32_0 = arith.constant 0 : i32
    %c0_i32_1 = arith.constant 0 : i32
    return %c0_i32, %c0_i32_0 : i32, i32
  }
  func.func @transform_3(%arg0: i32) -> (i32, i32) {
    %c0_i32 = arith.constant 0 : i32
    %c0_i32_0 = arith.constant 0 : i32
    %c0_i32_1 = arith.constant 0 : i32
    return %c0_i32, %c0_i32_0 : i32, i32
  }
  func.func @transform_4(%arg0: i32) -> (i32, i32) {
    %c0_i32 = arith.constant 0 : i32
    %c0_i32_0 = arith.constant 0 : i32
    %c0_i32_1 = arith.constant 0 : i32
    return %c0_i32, %c0_i32_0 : i32, i32
  }
  func.func @transform_5(%arg0: i32) -> (i32, i32, i32) {
    %c0_i32 = arith.constant 0 : i32
    %c0_i32_0 = arith.constant 0 : i32
    %c0_i32_1 = arith.constant 0 : i32
    return %arg0, %c0_i32, %c0_i32_0 : i32, i32, i32
  }
}

</mosaic_0001>

<llo_original>
// kernel: yolo_forward.5
$region0: #{yolo_forward.5}
  #allocation0 [shape = 'u32[]', space=smem, size = 0x4, offset = 0x4, fixed_abs, tag = 'smem constant byte address 0x4 - core index']
  #allocation1 [shape = 'u32[144,128]{1,0:T(1,128)}', space=vmem, size = 0x12000, scoped, tag = 'internal scratch']
  %s0 = inlined_call_operand.vmem [shape: bf16[2,36,16], index: 0, kind: input, shape index: {}]
  %s1 = inlined_call_operand.vmem [shape: bf16[9,16,16], index: 1, kind: input, shape index: {}]
  %s2 = inlined_call_operand.vmem [shape: f32[1,16], index: 2, kind: input, shape index: {}]
  %s3 = inlined_call_operand.vmem [shape: bf16[9,16], index: 3, kind: input, shape index: {}]
  %s4 = inlined_call_operand.vmem [shape: f32[9,1], index: 4, kind: input, shape index: {}]
  %s5 = inlined_call_operand.vmem [shape: bf16[2,9,22], index: 5, kind: output, shape index: {}]
  %s6 = sld [smem:[#allocation0]]
  $region53: #{yolo_forward.5} parent=0
    _
  %s8 = ssub.s32 1, %s6
  %s9 = scalar_select 0, %s8, %s6
  loop: start=0, step=1, limit=4
  $region2: #{yolo_forward.5} parent=0 // loop_pre_header
    _
  $region3: #{yolo_forward.5} parent=0 // loop_header
    %s11 = sphi 0, %s15
    %p12 = scmp.ge.s32.totalorder %s11, 4
    %s21 = sphi 0, %s23
    %s24 = sphi 0, %s21
    %s25 = sphi 0, %s24
    %s41 = sphi 0, %s25
    %s45 = sphi 0, %s45
    %s47 = sphi 0, %s45
    %s48 = sphi 0, %s47
    %s62 = sphi 0, %s48
    %s66 = sphi 0, %s66
    %s68 = sphi 0, %s66
    %s69 = sphi 0, %s68
    %s83 = sphi 0, %s69
    %s87 = sphi 0, %s87
    %s89 = sphi 0, %s87
    %s90 = sphi 0, %s89
    %s104 = sphi 0, %s90
    %s108 = sphi 0, %s108
    %s110 = sphi 0, %s108
    %s111 = sphi 0, %s110
    %s125 = sphi 0, %s111
    %s131 = sphi 0, %s133
    %s134 = sphi 0, %s131
    %s135 = sphi 0, %s134
    %s151 = sphi 0, %s135
  $region4: #{yolo_forward.5} parent=0 // loop_header_branch
    %14 = sbr.rel (%p12) target = $region8
  $region5: #{yolo_forward.5} parent=0 // loop_body
    %s16 = ssub.s32 %s11, 1
    %s17 = ssub.s32 %s11, 2
    %s18 = sadd.s32 %s11, 1
    %s19 = ssub.s32 %s11, %s18
    %p20 = scmp.eq.s32.totalorder %s19, 0
    %s22 = sadd.s32 %s21, 1
    %s23 = scalar_select %p20, %s21, %s22
    %p26 = pneg %p20
    %p27 = scmp.eq.s32.totalorder %s11, 1
    %p28 = por %p26, %p27
    %p29 = scmp.ne.s32.totalorder %s21, %s24
    %p30 = scmp.eq.s32.totalorder %s11, 0
    %p31 = por %p29, %p30
    %p32 = scmp.ne.s32.totalorder %s21, %s24
    %p33 = scmp.eq.s32.totalorder %s16, 1
    %p34 = por %p32, %p33
    %p35 = scmp.ne.s32.totalorder %s24, %s25
    %p36 = scmp.eq.s32.totalorder %s16, 0
    %p37 = por %p35, %p36
    %p38 = scmp.ne.s32.totalorder %s24, %s25
    %p39 = scmp.eq.s32.totalorder %s17, 1
    %p40 = por %p38, %p39
    %p42 = scmp.ne.s32.totalorder %s25, %s41
    %p43 = scmp.eq.s32.totalorder %s17, 0
    %p44 = por %p42, %p43
    %s46 = sadd.s32 %s45, 1
    %p49 = scmp.eq.s32.totalorder %s11, 1
    %p50 = scmp.ne.s32.totalorder %s45, %s47
    %p51 = scmp.eq.s32.totalorder %s11, 0
    %p52 = por %p50, %p51
    %p53 = scmp.ne.s32.totalorder %s45, %s47
    %p54 = scmp.eq.s32.totalorder %s16, 1
    %p55 = por %p53, %p54
    %p56 = scmp.ne.s32.totalorder %s47, %s48
    %p57 = scmp.eq.s32.totalorder %s16, 0
    %p58 = por %p56, %p57
    %p59 = scmp.ne.s32.totalorder %s47, %s48
    %p60 = scmp.eq.s32.totalorder %s17, 1
    %p61 = por %p59, %p60
    %p63 = scmp.ne.s32.totalorder %s48, %s62
    %p64 = scmp.eq.s32.totalorder %s17, 0
    %p65 = por %p63, %p64
    %s67 = sadd.s32 %s66, 1
    %p70 = scmp.eq.s32.totalorder %s11, 1
    %p71 = scmp.ne.s32.totalorder %s66, %s68
    %p72 = scmp.eq.s32.totalorder %s11, 0
    %p73 = por %p71, %p72
    %p74 = scmp.ne.s32.totalorder %s66, %s68
    %p75 = scmp.eq.s32.totalorder %s16, 1
    %p76 = por %p74, %p75
    %p77 = scmp.ne.s32.totalorder %s68, %s69
    %p78 = scmp.eq.s32.totalorder %s16, 0
    %p79 = por %p77, %p78
    %p80 = scmp.ne.s32.totalorder %s68, %s69
    %p81 = scmp.eq.s32.totalorder %s17, 1
    %p82 = por %p80, %p81
    %p84 = scmp.ne.s32.totalorder %s69, %s83
    %p85 = scmp.eq.s32.totalorder %s17, 0
    %p86 = por %p84, %p85
    %s88 = sadd.s32 %s87, 1
    %p91 = scmp.eq.s32.totalorder %s11, 1
    %p92 = scmp.ne.s32.totalorder %s87, %s89
    %p93 = scmp.eq.s32.totalorder %s11, 0
    %p94 = por %p92, %p93
    %p95 = scmp.ne.s32.totalorder %s87, %s89
    %p96 = scmp.eq.s32.totalorder %s16, 1
    %p97 = por %p95, %p96
    %p98 = scmp.ne.s32.totalorder %s89, %s90
    %p99 = scmp.eq.s32.totalorder %s16, 0
    %p100 = por %p98, %p99
    %p101 = scmp.ne.s32.totalorder %s89, %s90
    %p102 = scmp.eq.s32.totalorder %s17, 1
    %p103 = por %p101, %p102
    %p105 = scmp.ne.s32.totalorder %s90, %s104
    %p106 = scmp.eq.s32.totalorder %s17, 0
    %p107 = por %p105, %p106
    %s109 = sadd.s32 %s108, 1
    %p112 = scmp.eq.s32.totalorder %s11, 1
    %p113 = scmp.ne.s32.totalorder %s108, %s110
    %p114 = scmp.eq.s32.totalorder %s11, 0
    %p115 = por %p113, %p114
    %p116 = scmp.ne.s32.totalorder %s108, %s110
    %p117 = scmp.eq.s32.totalorder %s16, 1
    %p118 = por %p116, %p117
    %p119 = scmp.ne.s32.totalorder %s110, %s111
    %p120 = scmp.eq.s32.totalorder %s16, 0
    %p121 = por %p119, %p120
    %p122 = scmp.ne.s32.totalorder %s110, %s111
    %p123 = scmp.eq.s32.totalorder %s17, 1
    %p124 = por %p122, %p123
    %p126 = scmp.ne.s32.totalorder %s111, %s125
    %p127 = scmp.eq.s32.totalorder %s17, 0
    %p128 = por %p126, %p127
    %s129 = ssub.s32 %s11, %s18
    %p130 = scmp.eq.s32.totalorder %s129, 0
    %s132 = sadd.s32 %s131, 1
    %s133 = scalar_select %p130, %s131, %s132
    %p136 = pneg %p130
    %p137 = scmp.eq.s32.totalorder %s11, 1
    %p138 = por %p136, %p137
    %p139 = scmp.ne.s32.totalorder %s131, %s134
    %p140 = scmp.eq.s32.totalorder %s11, 0
    %p141 = por %p139, %p140
    %p142 = scmp.ne.s32.totalorder %s131, %s134
    %p143 = scmp.eq.s32.totalorder %s16, 1
    %p144 = por %p142, %p143
    %p145 = scmp.ne.s32.totalorder %s134, %s135
    %p146 = scmp.eq.s32.totalorder %s16, 0
    %p147 = por %p145, %p146
    %p148 = scmp.ne.s32.totalorder %s134, %s135
    %p149 = scmp.eq.s32.totalorder %s17, 1
    %p150 = por %p148, %p149
    %p152 = scmp.ne.s32.totalorder %s135, %s151
    %p153 = scmp.eq.s32.totalorder %s17, 0
    %p154 = por %p152, %p153
    %p155 = scmp.le.s32.totalorder 1, %s11
    %p156 = scmp.lt.s32.totalorder %s11, 3
    %p157 = pnand %p155, %p156
    %p158 = pneg %p157
    // Predicated region
    $region9: #{yolo_forward.5} parent=5 // pred_check
      _
    $region10: #{yolo_forward.5} parent=5 // pred_check_branch
      %160 = sbr.rel (%p157) target = $region12
    $region11: #{yolo_forward.5} parent=5 // pred_region
      %s161 = ssub.s32 %s11, 1
      // Predicated region
      $region13: #{yolo_forward.5} parent=11 // pred_check
        %p162 = pneg %p58
      $region14: #{yolo_forward.5} parent=11 // pred_check_branch
        %164 = sbr.rel (%p162) target = $region16
      $region15: #{yolo_forward.5} parent=11 // pred_region
        _
      $region16: #{yolo_forward.5} parent=11 // pred_fallthru
        _
      // Predicated region
      $region17: #{yolo_forward.5} parent=11 // pred_check
        %p165 = pneg %p79
      $region18: #{yolo_forward.5} parent=11 // pred_check_branch
        %167 = sbr.rel (%p165) target = $region20
      $region19: #{yolo_forward.5} parent=11 // pred_region
        _
      $region20: #{yolo_forward.5} parent=11 // pred_fallthru
        _
      // Predicated region
      $region21: #{yolo_forward.5} parent=11 // pred_check
        %p168 = pneg %p100
      $region22: #{yolo_forward.5} parent=11 // pred_check_branch
        %170 = sbr.rel (%p168) target = $region24
      $region23: #{yolo_forward.5} parent=11 // pred_region
        _
      $region24: #{yolo_forward.5} parent=11 // pred_fallthru
        _
      // Predicated region
      $region25: #{yolo_forward.5} parent=11 // pred_check
        %p171 = pneg %p121
      $region26: #{yolo_forward.5} parent=11 // pred_check_branch
        %173 = sbr.rel (%p171) target = $region28
      $region27: #{yolo_forward.5} parent=11 // pred_region
        _
      $region28: #{yolo_forward.5} parent=11 // pred_fallthru
        _
    $region12: #{yolo_forward.5} parent=5 // pred_fallthru
      _
    %p174 = scmp.lt.s32.totalorder %s11, 2
    // Predicated region
    $region29: #{yolo_forward.5} parent=5 // pred_check
      %p175 = pneg %p174
    $region30: #{yolo_forward.5} parent=5 // pred_check_branch
      %177 = sbr.rel (%p175) target = $region32
    $region31: #{yolo_forward.5} parent=5 // pred_region
      // Predicated region
      $region33: #{yolo_forward.5} parent=31 // pred_check
        %p178 = pneg %p31
      $region34: #{yolo_forward.5} parent=31 // pred_check_branch
        %180 = sbr.rel (%p178) target = $region36
      $region35: #{yolo_forward.5} parent=31 // pred_region
        %p181 = scmp.lt.s32.totalorder %s11, 1
        %s182 = scalar_select %p181, %s11, 1
        %s183 = smul.addr %s182, 5
        %s184 = smul.addr %s183, 4
        %s185 = scalar_lea.vmem %s0, %s184
      $region36: #{yolo_forward.5} parent=31 // pred_fallthru
        _
    $region32: #{yolo_forward.5} parent=5 // pred_fallthru
      _
    %p186 = scmp.le.s32.totalorder 1, %s11
    %p187 = scmp.lt.s32.totalorder %s11, 3
    %p188 = pnand %p186, %p187
    %p189 = pneg %p188
    // Predicated region
    $region37: #{yolo_forward.5} parent=5 // pred_check
      _
    $region38: #{yolo_forward.5} parent=5 // pred_check_branch
      %191 = sbr.rel (%p188) target = $region40
    $region39: #{yolo_forward.5} parent=5 // pred_region
      %s192 = ssub.s32 %s11, 1
      %p193 = scmp.lt.s32.totalorder %s16, 1
      %s194 = scalar_select %p193, %s16, 1
      %s195 = smul.addr %s194, 5
      %s196 = smul.addr %s195, 4
      %s197 = scalar_lea.vmem %s0, %s196
      %p198 = pneg %p37
      %p199 = pneg %p34
      %p200 = pneg %p58
      %p201 = pneg %p55
      %p202 = pneg %p79
      %p203 = pneg %p76
      %p204 = pneg %p100
      %p205 = pneg %p97
      %p206 = pneg %p121
      %p207 = pneg %p118
      %p208 = pneg %p147
      %p209 = pneg %p144
      %p210 = scmp.lt.s32.totalorder %s16, 1
      %s211 = scalar_select %p210, %s16, 1
      %s212 = smul.addr %s211, 2
      %s213 = smul.addr %s212, 4
      %s214 = scalar_lea.vmem %s5, %s213
      %p215 = scmp.lt.s32.totalorder %s16, 1
      %s216 = scalar_select %p215, %s16, 1
      %s217 = smul.addr %s216, 5
      %s218 = smul.addr %s217, 4
      %s219 = scalar_lea.vmem %s0, %s218
      %p220 = scmp.lt.s32.totalorder %s16, 1
      %s221 = scalar_select %p220, %s16, 1
      %s222 = smul.addr %s221, 2
      %s223 = smul.addr %s222, 4
      %s224 = scalar_lea.vmem %s5, %s223
      %v226 = vld [vmem:[%s219] sm:$0xf]
      %v227 = vld [vmem:[%s219 + $0x4] sm:$0xf]
      %v228 = vld [vmem:[%s219 + $0x8] sm:$0x7]
      %v229 = vld [vmem:[%s1] sm:$0xf]
      %v230 = vld [vmem:[%s1 + $0x4] sm:$0xf]
      %v231 = vld [vmem:[%s219 + $0x8] sm:$0xf]
      %s232 = scalar_lea.vmem %s1, 8
      %v233 = vld [vmem:[%s232] sm:$0xf]
      %v234 = vld [vmem:[%s232 + $0x4] sm:$0xf]
      %v238 = vunpack.c.l.b16 %v226
      %v239 = vunpack.c.l.b16 %v227
      %v240 = vunpack.c.l.b16 %v231
      %v241 = vpack.c.b16 %v239, %v238
      %v242 = vpack.c.b16 %v240, %v240
      %vm243 = vsmask.f32 7424
      %v245 = vshrl.u32 %v241, 16
      %v247 = vshll.u32 %v241, 16
      %v249 = vrot.slane %v247, 1
      %v250 = vor.u32 %v245, %v249
      %v252 = vshll.u32 %v242, 16
      %v254 = vrot.slane %v252, 1
      %v255 = vsel %vm243, %v250, %v254
      %v256 = vshrl.u32 %v242, 16
      %v258 = vor.u32 %v256, %v254
      %v261 = vunpack.c.l.b16 %v233
      %v262 = vunpack.c.l.b16 %v234
      %v263 = vpack.c.b16 %v262, %v261
      %vm265 = vcmask 130048
      %v267 = vsel %vm265, %v255, 0
      %v270 = vsel %vm265, %v258, 0
      %272 = vmatprep.subr.bf16.mxu0 0
      %273 = vmatpush1.bf16.msra.mxu0 %v263
      %274 = vmatprep.subr.bf16.mxu0 0
      %275 = vmatpush1.bf16.msra.mxu0 0
      %276 = vmatprep.subr.bf16.mxu0 0
      %277 = vmatpush1.bf16.msra.mxu0 0
      %278 = vmatprep.subr.bf16.mxu0 0
      %279 = vmatpush1.bf16.msra.mxu0 0
      %280 = vmatprep.subr.bf16.mxu0 0
      %281 = vmatpush1.bf16.msra.mxu0 0
      %282 = vmatprep.subr.bf16.mxu0 0
      %283 = vmatpush1.bf16.msra.mxu0 0
      %284 = vmatprep.subr.bf16.mxu0 0
      %285 = vmatpush1.bf16.msra.mxu0 0
      %286 = vmatprep.subr.bf16.mxu0 0
      %287 = vmatpush1.bf16.msra.mxu0 0
      %288 = vmatprep.subr.bf16.mxu0 0
      %289 = vmatpush1.bf16.msra.mxu0 0
      %290 = vmatprep.subr.bf16.mxu0 0
      %291 = vmatpush1.bf16.msra.mxu0 0
      %292 = vmatprep.subr.bf16.mxu0 0
      %293 = vmatpush1.bf16.msra.mxu0 0
      %294 = vmatprep.subr.bf16.mxu0 0
      %295 = vmatpush1.bf16.msra.mxu0 0
      %296 = vmatprep.subr.bf16.mxu0 0
      %297 = vmatpush1.bf16.msra.mxu0 0
      %298 = vmatprep.subr.bf16.mxu0 0
      %299 = vmatpush1.bf16.msra.mxu0 0
      %300 = vmatprep.subr.bf16.mxu0 0
      %301 = vmatpush1.bf16.msra.mxu0 0
      %302 = vmatprep.subr.bf16.mxu0 0
      %303 = vmatpush1.bf16.msra.mxu0 0
      %304 = vmatprep.mubr.bf16.mxu0 0
      %305 = vmatmul.mubr.bf16.gmra.mrb[0].mxu0 %v267
      %v306 = vpop.f32.mrb[0].mxu0
      %v307 = vadd.f32 0.0, %v306
      %v308 = vpop.f32.mrb[0].mxu0
      %v309 = vpop.f32.mrb[0].mxu0
      %v310 = vadd.f32 0.0, %v309
      %v311 = vpop.f32.mrb[0].mxu0
      %312 = vmatprep.mubr.bf16.mxu0 0
      %313 = vmatmul.mubr.bf16.gmra.mrb[0].mxu0 %v270
      %v314 = vpop.f32.mrb[0].mxu0
      %v315 = vadd.f32 0.0, %v314
      %v316 = vpop.f32.mrb[0].mxu0
      %v317 = vpop.f32.mrb[0].mxu0
      %v318 = vpop.f32.mrb[0].mxu0
      %319 = vdwg.mxu0
      %v321 = vunpack.c.l.b16 %v228
      %v322 = vpack.c.b16 %v321, %v321
      %v325 = vunpack.c.l.b16 %v229
      %v326 = vunpack.c.l.b16 %v230
      %v327 = vpack.c.b16 %v326, %v325
      %v329 = vsel %vm265, %v241, 0
      %v332 = vsel %vm265, %v322, 0
      %334 = vmatprep.subr.bf16.mxu0 0
      %335 = vmatpush1.bf16.msra.mxu0 %v327
      %336 = vmatprep.subr.bf16.mxu0 0
      %337 = vmatpush1.bf16.msra.mxu0 0
      %338 = vmatprep.subr.bf16.mxu0 0
      %339 = vmatpush1.bf16.msra.mxu0 0
      %340 = vmatprep.subr.bf16.mxu0 0
      %341 = vmatpush1.bf16.msra.mxu0 0
      %342 = vmatprep.subr.bf16.mxu0 0
      %343 = vmatpush1.bf16.msra.mxu0 0
      %344 = vmatprep.subr.bf16.mxu0 0
      %345 = vmatpush1.bf16.msra.mxu0 0
      %346 = vmatprep.subr.bf16.mxu0 0
      %347 = vmatpush1.bf16.msra.mxu0 0
      %348 = vmatprep.subr.bf16.mxu0 0
      %349 = vmatpush1.bf16.msra.mxu0 0
      %350 = vmatprep.subr.bf16.mxu0 0
      %351 = vmatpush1.bf16.msra.mxu0 0
      %352 = vmatprep.subr.bf16.mxu0 0
      %353 = vmatpush1.bf16.msra.mxu0 0
      %354 = vmatprep.subr.bf16.mxu0 0
      %355 = vmatpush1.bf16.msra.mxu0 0
      %356 = vmatprep.subr.bf16.mxu0 0
      %357 = vmatpush1.bf16.msra.mxu0 0
      %358 = vmatprep.subr.bf16.mxu0 0
      %359 = vmatpush1.bf16.msra.mxu0 0
      %360 = vmatprep.subr.bf16.mxu0 0
      %361 = vmatpush1.bf16.msra.mxu0 0
      %362 = vmatprep.subr.bf16.mxu0 0
      %363 = vmatpush1.bf16.msra.mxu0 0
      %364 = vmatprep.subr.bf16.mxu0 0
      %365 = vmatpush1.bf16.msra.mxu0 0
      %366 = vmatprep.mubr.bf16.mxu0 0
      %367 = vmatmul.mubr.bf16.gmra.mrb[0].mxu0 %v329
      %v368 = vpop.f32.mrb[0].mxu0
      %v369 = vadd.f32 %v307, %v368
      %v370 = vpop.f32.mrb[0].mxu0
      %v371 = vpop.f32.mrb[0].mxu0
      %v372 = vadd.f32 %v310, %v371
      %v373 = vpop.f32.mrb[0].mxu0
      %374 = vmatprep.mubr.bf16.mxu0 0
      %375 = vmatmul.mubr.bf16.gmra.mrb[0].mxu0 %v332
      %v376 = vpop.f32.mrb[0].mxu0
      %v377 = vadd.f32 %v315, %v376
      %v378 = vpop.f32.mrb[0].mxu0
      %v379 = vpop.f32.mrb[0].mxu0
      %v380 = vpop.f32.mrb[0].mxu0
      %381 = vdwg.mxu0
      %v382 = vld [vmem:[%s219] sm:$0xe]
      %s383 = scalar_lea.vmem %s1, 16
      %v384 = vld [vmem:[%s383] sm:$0xf]
      %v385 = vld [vmem:[%s383 + $0x4] sm:$0xf]
      %v387 = vunpack.c.l.b16 %v382
      %v388 = vpack.c.b16 %v239, %v387
      %vm389 = vcmask 1046528
      %v390 = vrot.slane %v388, 1
      %v391 = vrot.slane %v242, 1
      %v392 = vsel %vm389, %v390, %v391
      %v395 = vunpack.c.l.b16 %v384
      %v396 = vunpack.c.l.b16 %v385
      %v397 = vpack.c.b16 %v396, %v395
      %v400 = vsel %vm265, %v392, 0
      %v403 = vsel %vm265, %v391, 0
      %405 = vmatprep.subr.bf16.mxu0 0
      %406 = vmatpush1.bf16.msra.mxu0 %v397
      %407 = vmatprep.subr.bf16.mxu0 0
      %408 = vmatpush1.bf16.msra.mxu0 0
      %409 = vmatprep.subr.bf16.mxu0 0
      %410 = vmatpush1.bf16.msra.mxu0 0
      %411 = vmatprep.subr.bf16.mxu0 0
      %412 = vmatpush1.bf16.msra.mxu0 0
      %413 = vmatprep.subr.bf16.mxu0 0
      %414 = vmatpush1.bf16.msra.mxu0 0
      %415 = vmatprep.subr.bf16.mxu0 0
      %416 = vmatpush1.bf16.msra.mxu0 0
      %417 = vmatprep.subr.bf16.mxu0 0
      %418 = vmatpush1.bf16.msra.mxu0 0
      %419 = vmatprep.subr.bf16.mxu0 0
      %420 = vmatpush1.bf16.msra.mxu0 0
      %421 = vmatprep.subr.bf16.mxu0 0
      %422 = vmatpush1.bf16.msra.mxu0 0
      %423 = vmatprep.subr.bf16.mxu0 0
      %424 = vmatpush1.bf16.msra.mxu0 0
      %425 = vmatprep.subr.bf16.mxu0 0
      %426 = vmatpush1.bf16.msra.mxu0 0
      %427 = vmatprep.subr.bf16.mxu0 0
      %428 = vmatpush1.bf16.msra.mxu0 0
      %429 = vmatprep.subr.bf16.mxu0 0
      %430 = vmatpush1.bf16.msra.mxu0 0
      %431 = vmatprep.subr.bf16.mxu0 0
      %432 = vmatpush1.bf16.msra.mxu0 0
      %433 = vmatprep.subr.bf16.mxu0 0
      %434 = vmatpush1.bf16.msra.mxu0 0
      %435 = vmatprep.subr.bf16.mxu0 0
      %436 = vmatpush1.bf16.msra.mxu0 0
      %437 = vmatprep.mubr.bf16.mxu0 0
      %438 = vmatmul.mubr.bf16.gmra.mrb[0].mxu0 %v400
      %v439 = vpop.f32.mrb[0].mxu0
      %v440 = vadd.f32 0.0, %v439
      %v441 = vpop.f32.mrb[0].mxu0
      %v442 = vpop.f32.mrb[0].mxu0
      %v443 = vadd.f32 0.0, %v442
      %v444 = vpop.f32.mrb[0].mxu0
      %445 = vmatprep.mubr.bf16.mxu0 0
      %446 = vmatmul.mubr.bf16.gmra.mrb[0].mxu0 %v403
      %v447 = vpop.f32.mrb[0].mxu0
      %v448 = vadd.f32 0.0, %v447
      %v449 = vpop.f32.mrb[0].mxu0
      %v450 = vpop.f32.mrb[0].mxu0
      %v451 = vpop.f32.mrb[0].mxu0
      %452 = vdwg.mxu0
      %v453 = vadd.f32 %v369, %v440
      %v454 = vadd.f32 %v372, %v443
      %v455 = vadd.f32 %v377, %v448
      %v456 = vld [vmem:[%s219] sm:$0x8]
      %v457 = vld [vmem:[%s219 + $0x4] sm:$0xf]
      %v458 = vld [vmem:[%s219 + $0x8] sm:$0xf]
      %v459 = vld [vmem:[%s219 + $0xc] sm:$0x3]
      %s460 = scalar_lea.vmem %s1, 24
      %v461 = vld [vmem:[%s460] sm:$0xf]
      %v462 = vld [vmem:[%s460 + $0x4] sm:$0xf]
      %v467 = vunpack.c.l.b16 %v456
      %v468 = vunpack.c.l.b16 %v457
      %v469 = vunpack.c.l.b16 %v458
      %v470 = vunpack.c.l.b16 %v459
      %v471 = vpack.c.b16 %v468, %v467
      %v472 = vpack.c.b16 %v470, %v469
      %vm473 = vcmask 1044480
      %v474 = vrot.slane %v471, 3
      %v475 = vrot.slane %v472, 3
      %v476 = vsel %vm473, %v474, %v475
      %v479 = vunpack.c.l.b16 %v461
      %v480 = vunpack.c.l.b16 %v462
      %v481 = vpack.c.b16 %v480, %v479
      %v484 = vsel %vm265, %v476, 0
      %v487 = vsel %vm265, %v475, 0
      %489 = vmatprep.subr.bf16.mxu0 0
      %490 = vmatpush1.bf16.msra.mxu0 %v481
      %491 = vmatprep.subr.bf16.mxu0 0
      %492 = vmatpush1.bf16.msra.mxu0 0
      %493 = vmatprep.subr.bf16.mxu0 0
      %494 = vmatpush1.bf16.msra.mxu0 0
      %495 = vmatprep.subr.bf16.mxu0 0
      %496 = vmatpush1.bf16.msra.mxu0 0
      %497 = vmatprep.subr.bf16.mxu0 0
      %498 = vmatpush1.bf16.msra.mxu0 0
      %499 = vmatprep.subr.bf16.mxu0 0
      %500 = vmatpush1.bf16.msra.mxu0 0
      %501 = vmatprep.subr.bf16.mxu0 0
      %502 = vmatpush1.bf16.msra.mxu0 0
      %503 = vmatprep.subr.bf16.mxu0 0
      %504 = vmatpush1.bf16.msra.mxu0 0
      %505 = vmatprep.subr.bf16.mxu0 0
      %506 = vmatpush1.bf16.msra.mxu0 0
      %507 = vmatprep.subr.bf16.mxu0 0
      %508 = vmatpush1.bf16.msra.mxu0 0
      %509 = vmatprep.subr.bf16.mxu0 0
      %510 = vmatpush1.bf16.msra.mxu0 0
      %511 = vmatprep.subr.bf16.mxu0 0
      %512 = vmatpush1.bf16.msra.mxu0 0
      %513 = vmatprep.subr.bf16.mxu0 0
      %514 = vmatpush1.bf16.msra.mxu0 0
      %515 = vmatprep.subr.bf16.mxu0 0
      %516 = vmatpush1.bf16.msra.mxu0 0
      %517 = vmatprep.subr.bf16.mxu0 0
      %518 = vmatpush1.bf16.msra.mxu0 0
      %519 = vmatprep.subr.bf16.mxu0 0
      %520 = vmatpush1.bf16.msra.mxu0 0
      %521 = vmatprep.mubr.bf16.mxu0 0
      %522 = vmatmul.mubr.bf16.gmra.mrb[0].mxu0 %v484
      %v523 = vpop.f32.mrb[0].mxu0
      %v524 = vadd.f32 0.0, %v523
      %v525 = vpop.f32.mrb[0].mxu0
      %v526 = vpop.f32.mrb[0].mxu0
      %v527 = vadd.f32 0.0, %v526
      %v528 = vpop.f32.mrb[0].mxu0
      %529 = vmatprep.mubr.bf16.mxu0 0
      %530 = vmatmul.mubr.bf16.gmra.mrb[0].mxu0 %v487
      %v531 = vpop.f32.mrb[0].mxu0
      %v532 = vadd.f32 0.0, %v531
      %v533 = vpop.f32.mrb[0].mxu0
      %v534 = vpop.f32.mrb[0].mxu0
      %v535 = vpop.f32.mrb[0].mxu0
      %536 = vdwg.mxu0
      %v537 = vadd.f32 %v453, %v524
      %v538 = vadd.f32 %v454, %v527
      %v539 = vadd.f32 %v455, %v532
      %v540 = vld [vmem:[%s219 + $0xc] sm:$0x7]
      %s541 = scalar_lea.vmem %s1, 32
      %v542 = vld [vmem:[%s541] sm:$0xf]
      %v543 = vld [vmem:[%s541 + $0x4] sm:$0xf]
      %v545 = vunpack.c.l.b16 %v540
      %v546 = vpack.c.b16 %v545, %v469
      %vm547 = vsmask.f32 4352
      %v549 = vshrl.u32 %v471, 16
      %v551 = vrot.slane %v549, 3
      %v552 = vshll.u32 %v471, 16
      %v554 = vrot.slane %v552, 4
      %v555 = vor.u32 %v551, %v554
      %v557 = vshrl.u32 %v546, 16
      %v559 = vrot.slane %v557, 3
      %v560 = vshll.u32 %v546, 16
      %v562 = vrot.slane %v560, 4
      %v563 = vor.u32 %v559, %v562
      %v564 = vsel %vm547, %v555, %v563
      %v567 = vunpack.c.l.b16 %v542
      %v568 = vunpack.c.l.b16 %v543
      %v569 = vpack.c.b16 %v568, %v567
      %v572 = vsel %vm265, %v564, 0
      %v575 = vsel %vm265, %v563, 0
      %577 = vmatprep.subr.bf16.mxu0 0
      %578 = vmatpush1.bf16.msra.mxu0 %v569
      %579 = vmatprep.subr.bf16.mxu0 0
      %580 = vmatpush1.bf16.msra.mxu0 0
      %581 = vmatprep.subr.bf16.mxu0 0
      %582 = vmatpush1.bf16.msra.mxu0 0
      %583 = vmatprep.subr.bf16.mxu0 0
      %584 = vmatpush1.bf16.msra.mxu0 0
      %585 = vmatprep.subr.bf16.mxu0 0
      %586 = vmatpush1.bf16.msra.mxu0 0
      %587 = vmatprep.subr.bf16.mxu0 0
      %588 = vmatpush1.bf16.msra.mxu0 0
      %589 = vmatprep.subr.bf16.mxu0 0
      %590 = vmatpush1.bf16.msra.mxu0 0
      %591 = vmatprep.subr.bf16.mxu0 0
      %592 = vmatpush1.bf16.msra.mxu0 0
      %593 = vmatprep.subr.bf16.mxu0 0
      %594 = vmatpush1.bf16.msra.mxu0 0
      %595 = vmatprep.subr.bf16.mxu0 0
      %596 = vmatpush1.bf16.msra.mxu0 0
      %597 = vmatprep.subr.bf16.mxu0 0
      %598 = vmatpush1.bf16.msra.mxu0 0
      %599 = vmatprep.subr.bf16.mxu0 0
      %600 = vmatpush1.bf16.msra.mxu0 0
      %601 = vmatprep.subr.bf16.mxu0 0
      %602 = vmatpush1.bf16.msra.mxu0 0
      %603 = vmatprep.subr.bf16.mxu0 0
      %604 = vmatpush1.bf16.msra.mxu0 0
      %605 = vmatprep.subr.bf16.mxu0 0
      %606 = vmatpush1.bf16.msra.mxu0 0
      %607 = vmatprep.subr.bf16.mxu0 0
      %608 = vmatpush1.bf16.msra.mxu0 0
      %609 = vmatprep.mubr.bf16.mxu0 0
      %610 = vmatmul.mubr.bf16.gmra.mrb[0].mxu0 %v572
      %v611 = vpop.f32.mrb[0].mxu0
      %v612 = vadd.f32 0.0, %v611
      %v613 = vpop.f32.mrb[0].mxu0
      %v614 = vpop.f32.mrb[0].mxu0
      %v615 = vadd.f32 0.0, %v614
      %v616 = vpop.f32.mrb[0].mxu0
      %617 = vmatprep.mubr.bf16.mxu0 0
      %618 = vmatmul.mubr.bf16.gmra.mrb[0].mxu0 %v575
      %v619 = vpop.f32.mrb[0].mxu0
      %v620 = vadd.f32 0.0, %v619
      %v621 = vpop.f32.mrb[0].mxu0
      %v622 = vpop.f32.mrb[0].mxu0
      %v623 = vpop.f32.mrb[0].mxu0
      %624 = vdwg.mxu0
      %v625 = vadd.f32 %v537, %v612
      %v626 = vadd.f32 %v538, %v615
      %v627 = vadd.f32 %v539, %v620
      %s628 = scalar_lea.vmem %s1, 40
      %v629 = vld [vmem:[%s628] sm:$0xf]
      %v630 = vld [vmem:[%s628 + $0x4] sm:$0xf]
      %v631 = vpack.c.b16 %v469, %v468
      %v632 = vpack.c.b16 %v545, %v545
      %v635 = vunpack.c.l.b16 %v629
      %v636 = vunpack.c.l.b16 %v630
      %v637 = vpack.c.b16 %v636, %v635
      %v640 = vsel %vm265, %v631, 0
      %v643 = vsel %vm265, %v632, 0
      %645 = vmatprep.subr.bf16.mxu0 0
      %646 = vmatpush1.bf16.msra.mxu0 %v637
      %647 = vmatprep.subr.bf16.mxu0 0
      %648 = vmatpush1.bf16.msra.mxu0 0
      %649 = vmatprep.subr.bf16.mxu0 0
      %650 = vmatpush1.bf16.msra.mxu0 0
      %651 = vmatprep.subr.bf16.mxu0 0
      %652 = vmatpush1.bf16.msra.mxu0 0
      %653 = vmatprep.subr.bf16.mxu0 0
      %654 = vmatpush1.bf16.msra.mxu0 0
      %655 = vmatprep.subr.bf16.mxu0 0
      %656 = vmatpush1.bf16.msra.mxu0 0
      %657 = vmatprep.subr.bf16.mxu0 0
      %658 = vmatpush1.bf16.msra.mxu0 0
      %659 = vmatprep.subr.bf16.mxu0 0
      %660 = vmatpush1.bf16.msra.mxu0 0
      %661 = vmatprep.subr.bf16.mxu0 0
      %662 = vmatpush1.bf16.msra.mxu0 0
      %663 = vmatprep.subr.bf16.mxu0 0
      %664 = vmatpush1.bf16.msra.mxu0 0
      %665 = vmatprep.subr.bf16.mxu0 0
      %666 = vmatpush1.bf16.msra.mxu0 0
      %667 = vmatprep.subr.bf16.mxu0 0
      %668 = vmatpush1.bf16.msra.mxu0 0
      %669 = vmatprep.subr.bf16.mxu0 0
      %670 = vmatpush1.bf16.msra.mxu0 0
      %671 = vmatprep.subr.bf16.mxu0 0
      %672 = vmatpush1.bf16.msra.mxu0 0
      %673 = vmatprep.subr.bf16.mxu0 0
      %674 = vmatpush1.bf16.msra.mxu0 0
      %675 = vmatprep.subr.bf16.mxu0 0
      %676 = vmatpush1.bf16.msra.mxu0 0
      %677 = vmatprep.mubr.bf16.mxu0 0
      %678 = vmatmul.mubr.bf16.gmra.mrb[0].mxu0 %v640
      %v679 = vpop.f32.mrb[0].mxu0
      %v680 = vadd.f32 0.0, %v679
      %v681 = vpop.f32.mrb[0].mxu0
      %v682 = vpop.f32.mrb[0].mxu0
      %v683 = vadd.f32 0.0, %v682
      %v684 = vpop.f32.mrb[0].mxu0
      %685 = vmatprep.mubr.bf16.mxu0 0
      %686 = vmatmul.mubr.bf16.gmra.mrb[0].mxu0 %v643
      %v687 = vpop.f32.mrb[0].mxu0
      %v688 = vadd.f32 0.0, %v687
      %v689 = vpop.f32.mrb[0].mxu0
      %v690 = vpop.f32.mrb[0].mxu0
      %v691 = vpop.f32.mrb[0].mxu0
      %692 = vdwg.mxu0
      %v693 = vadd.f32 %v625, %v680
      %v694 = vadd.f32 %v626, %v683
      %v695 = vadd.f32 %v627, %v688
      %v696 = vld [vmem:[%s219 + $0x4] sm:$0xc]
      %v697 = vld [vmem:[%s219 + $0x8] sm:$0xf]
      %v698 = vld [vmem:[%s219 + $0xc] sm:$0xf]
      %v699 = vld [vmem:[%s219 + $0x10] sm:$0x1]
      %s700 = scalar_lea.vmem %s1, 48
      %v701 = vld [vmem:[%s700] sm:$0xf]
      %v702 = vld [vmem:[%s700 + $0x4] sm:$0xf]
      %v707 = vunpack.c.l.b16 %v696
      %v708 = vunpack.c.l.b16 %v697
      %v709 = vunpack.c.l.b16 %v698
      %v710 = vunpack.c.l.b16 %v699
      %v711 = vpack.c.b16 %v708, %v707
      %v712 = vpack.c.b16 %v710, %v709
      %vm713 = vcmask 1045504
      %v714 = vrot.slane %v711, 2
      %v715 = vrot.slane %v712, 2
      %v716 = vsel %vm713, %v714, %v715
      %v719 = vunpack.c.l.b16 %v701
      %v720 = vunpack.c.l.b16 %v702
      %v721 = vpack.c.b16 %v720, %v719
      %v724 = vsel %vm265, %v716, 0
      %v727 = vsel %vm265, %v715, 0
      %729 = vmatprep.subr.bf16.mxu0 0
      %730 = vmatpush1.bf16.msra.mxu0 %v721
      %731 = vmatprep.subr.bf16.mxu0 0
      %732 = vmatpush1.bf16.msra.mxu0 0
      %733 = vmatprep.subr.bf16.mxu0 0
      %734 = vmatpush1.bf16.msra.mxu0 0
      %735 = vmatprep.subr.bf16.mxu0 0
      %736 = vmatpush1.bf16.msra.mxu0 0
      %737 = vmatprep.subr.bf16.mxu0 0
      %738 = vmatpush1.bf16.msra.mxu0 0
      %739 = vmatprep.subr.bf16.mxu0 0
      %740 = vmatpush1.bf16.msra.mxu0 0
      %741 = vmatprep.subr.bf16.mxu0 0
      %742 = vmatpush1.bf16.msra.mxu0 0
      %743 = vmatprep.subr.bf16.mxu0 0
      %744 = vmatpush1.bf16.msra.mxu0 0
      %745 = vmatprep.subr.bf16.mxu0 0
      %746 = vmatpush1.bf16.msra.mxu0 0
      %747 = vmatprep.subr.bf16.mxu0 0
      %748 = vmatpush1.bf16.msra.mxu0 0
      %749 = vmatprep.subr.bf16.mxu0 0
      %750 = vmatpush1.bf16.msra.mxu0 0
      %751 = vmatprep.subr.bf16.mxu0 0
      %752 = vmatpush1.bf16.msra.mxu0 0
      %753 = vmatprep.subr.bf16.mxu0 0
      %754 = vmatpush1.bf16.msra.mxu0 0
      %755 = vmatprep.subr.bf16.mxu0 0
      %756 = vmatpush1.bf16.msra.mxu0 0
      %757 = vmatprep.subr.bf16.mxu0 0
      %758 = vmatpush1.bf16.msra.mxu0 0
      %759 = vmatprep.subr.bf16.mxu0 0
      %760 = vmatpush1.bf16.msra.mxu0 0
      %761 = vmatprep.mubr.bf16.mxu0 0
      %762 = vmatmul.mubr.bf16.gmra.mrb[0].mxu0 %v724
      %v763 = vpop.f32.mrb[0].mxu0
      %v764 = vadd.f32 0.0, %v763
      %v765 = vpop.f32.mrb[0].mxu0
      %v766 = vpop.f32.mrb[0].mxu0
      %v767 = vadd.f32 0.0, %v766
      %v768 = vpop.f32.mrb[0].mxu0
      %769 = vmatprep.mubr.bf16.mxu0 0
      %770 = vmatmul.mubr.bf16.gmra.mrb[0].mxu0 %v727
      %v771 = vpop.f32.mrb[0].mxu0
      %v772 = vadd.f32 0.0, %v771
      %v773 = vpop.f32.mrb[0].mxu0
      %v774 = vpop.f32.mrb[0].mxu0
      %v775 = vpop.f32.mrb[0].mxu0
      %776 = vdwg.mxu0
      %v777 = vadd.f32 %v693, %v764
      %v778 = vadd.f32 %v694, %v767
      %v779 = vadd.f32 %v695, %v772
      %v780 = vld [vmem:[%s219 + $0x10] sm:$0x3]
      %s781 = scalar_lea.vmem %s1, 56
      %v782 = vld [vmem:[%s781] sm:$0xf]
      %v783 = vld [vmem:[%s781 + $0x4] sm:$0xf]
      %v785 = vunpack.c.l.b16 %v780
      %v786 = vpack.c.b16 %v785, %v709
      %vm787 = vsmask.f32 5376
      %v789 = vshrl.u32 %v711, 16
      %v791 = vrot.slane %v789, 2
      %v792 = vshll.u32 %v711, 16
      %v794 = vrot.slane %v792, 3
      %v795 = vor.u32 %v791, %v794
      %v797 = vshrl.u32 %v786, 16
      %v799 = vrot.slane %v797, 2
      %v800 = vshll.u32 %v786, 16
      %v802 = vrot.slane %v800, 3
      %v803 = vor.u32 %v799, %v802
      %v804 = vsel %vm787, %v795, %v803
      %v807 = vunpack.c.l.b16 %v782
      %v808 = vunpack.c.l.b16 %v783
      %v809 = vpack.c.b16 %v808, %v807
      %v812 = vsel %vm265, %v804, 0
      %v815 = vsel %vm265, %v803, 0
      %817 = vmatprep.subr.bf16.mxu0 0
      %818 = vmatpush1.bf16.msra.mxu0 %v809
      %819 = vmatprep.subr.bf16.mxu0 0
      %820 = vmatpush1.bf16.msra.mxu0 0
      %821 = vmatprep.subr.bf16.mxu0 0
      %822 = vmatpush1.bf16.msra.mxu0 0
      %823 = vmatprep.subr.bf16.mxu0 0
      %824 = vmatpush1.bf16.msra.mxu0 0
      %825 = vmatprep.subr.bf16.mxu0 0
      %826 = vmatpush1.bf16.msra.mxu0 0
      %827 = vmatprep.subr.bf16.mxu0 0
      %828 = vmatpush1.bf16.msra.mxu0 0
      %829 = vmatprep.subr.bf16.mxu0 0
      %830 = vmatpush1.bf16.msra.mxu0 0
      %831 = vmatprep.subr.bf16.mxu0 0
      %832 = vmatpush1.bf16.msra.mxu0 0
      %833 = vmatprep.subr.bf16.mxu0 0
      %834 = vmatpush1.bf16.msra.mxu0 0
      %835 = vmatprep.subr.bf16.mxu0 0
      %836 = vmatpush1.bf16.msra.mxu0 0
      %837 = vmatprep.subr.bf16.mxu0 0
      %838 = vmatpush1.bf16.msra.mxu0 0
      %839 = vmatprep.subr.bf16.mxu0 0
      %840 = vmatpush1.bf16.msra.mxu0 0
      %841 = vmatprep.subr.bf16.mxu0 0
      %842 = vmatpush1.bf16.msra.mxu0 0
      %843 = vmatprep.subr.bf16.mxu0 0
      %844 = vmatpush1.bf16.msra.mxu0 0
      %845 = vmatprep.subr.bf16.mxu0 0
      %846 = vmatpush1.bf16.msra.mxu0 0
      %847 = vmatprep.subr.bf16.mxu0 0
      %848 = vmatpush1.bf16.msra.mxu0 0
      %849 = vmatprep.mubr.bf16.mxu0 0
      %850 = vmatmul.mubr.bf16.gmra.mrb[0].mxu0 %v812
      %v851 = vpop.f32.mrb[0].mxu0
      %v852 = vadd.f32 0.0, %v851
      %v853 = vpop.f32.mrb[0].mxu0
      %v854 = vpop.f32.mrb[0].mxu0
      %v855 = vadd.f32 0.0, %v854
      %v856 = vpop.f32.mrb[0].mxu0
      %857 = vmatprep.mubr.bf16.mxu0 0
      %858 = vmatmul.mubr.bf16.gmra.mrb[0].mxu0 %v815
      %v859 = vpop.f32.mrb[0].mxu0
      %v860 = vadd.f32 0.0, %v859
      %v861 = vpop.f32.mrb[0].mxu0
      %v862 = vpop.f32.mrb[0].mxu0
      %v863 = vpop.f32.mrb[0].mxu0
      %864 = vdwg.mxu0
      %v865 = vadd.f32 %v777, %v852
      %v866 = vadd.f32 %v778, %v855
      %v867 = vadd.f32 %v779, %v860
      %v868 = vld [vmem:[%s219 + $0x4] sm:$0x8]
      %s869 = scalar_lea.vmem %s1, 64
      %v870 = vld [vmem:[%s869] sm:$0xf]
      %v871 = vld [vmem:[%s869 + $0x4] sm:$0xf]
      %v873 = vunpack.c.l.b16 %v868
      %v874 = vpack.c.b16 %v708, %v873
      %v875 = vrot.slane %v874, 3
      %v876 = vrot.slane %v786, 3
      %v877 = vsel %vm473, %v875, %v876
      %v880 = vunpack.c.l.b16 %v870
      %v881 = vunpack.c.l.b16 %v871
      %v882 = vpack.c.b16 %v881, %v880
      %v885 = vsel %vm265, %v877, 0
      %v888 = vsel %vm265, %v876, 0
      %890 = vmatprep.subr.bf16.mxu0 0
      %891 = vmatpush1.bf16.msra.mxu0 %v882
      %892 = vmatprep.subr.bf16.mxu0 0
      %893 = vmatpush1.bf16.msra.mxu0 0
      %894 = vmatprep.subr.bf16.mxu0 0
      %895 = vmatpush1.bf16.msra.mxu0 0
      %896 = vmatprep.subr.bf16.mxu0 0
      %897 = vmatpush1.bf16.msra.mxu0 0
      %898 = vmatprep.subr.bf16.mxu0 0
      %899 = vmatpush1.bf16.msra.mxu0 0
      %900 = vmatprep.subr.bf16.mxu0 0
      %901 = vmatpush1.bf16.msra.mxu0 0
      %902 = vmatprep.subr.bf16.mxu0 0
      %903 = vmatpush1.bf16.msra.mxu0 0
      %904 = vmatprep.subr.bf16.mxu0 0
      %905 = vmatpush1.bf16.msra.mxu0 0
      %906 = vmatprep.subr.bf16.mxu0 0
      %907 = vmatpush1.bf16.msra.mxu0 0
      %908 = vmatprep.subr.bf16.mxu0 0
      %909 = vmatpush1.bf16.msra.mxu0 0
      %910 = vmatprep.subr.bf16.mxu0 0
      %911 = vmatpush1.bf16.msra.mxu0 0
      %912 = vmatprep.subr.bf16.mxu0 0
      %913 = vmatpush1.bf16.msra.mxu0 0
      %914 = vmatprep.subr.bf16.mxu0 0
      %915 = vmatpush1.bf16.msra.mxu0 0
      %916 = vmatprep.subr.bf16.mxu0 0
      %917 = vmatpush1.bf16.msra.mxu0 0
      %918 = vmatprep.subr.bf16.mxu0 0
      %919 = vmatpush1.bf16.msra.mxu0 0
      %920 = vmatprep.subr.bf16.mxu0 0
      %921 = vmatpush1.bf16.msra.mxu0 0
      %922 = vmatprep.mubr.bf16.mxu0 0
      %923 = vmatmul.mubr.bf16.gmra.mrb[0].mxu0 %v885
      %v924 = vpop.f32.mrb[0].mxu0
      %v925 = vadd.f32 0.0, %v924
      %v926 = vpop.f32.mrb[0].mxu0
      %v927 = vpop.f32.mrb[0].mxu0
      %v928 = vadd.f32 0.0, %v927
      %v929 = vpop.f32.mrb[0].mxu0
      %930 = vmatprep.mubr.bf16.mxu0 0
      %931 = vmatmul.mubr.bf16.gmra.mrb[0].mxu0 %v888
      %v932 = vpop.f32.mrb[0].mxu0
      %v933 = vadd.f32 0.0, %v932
      %v934 = vpop.f32.mrb[0].mxu0
      %v935 = vpop.f32.mrb[0].mxu0
      %v936 = vpop.f32.mrb[0].mxu0
      %937 = vdwg.mxu0
      %v938 = vadd.f32 %v865, %v925
      %v939 = vadd.f32 %v866, %v928
      %v940 = vadd.f32 %v867, %v933
      %v941 = vld [vmem:[%s2] sm:$0x1]
      %v943 = vlaneseq
      %v944 = vshrl.u32 %v943, 7
      %v945 = vsub.s32 0, %v944
      %v946 = vrot.slane %v941, %v945
      %v948 = vadd.f32 %v938, %v946
      %v949 = vadd.f32 %v939, %v946
      %v950 = vadd.f32 %v940, %v946
      %v951 = vxor.u32 %v948, 2147483648
      %v952 = vxor.u32 %v949, 2147483648
      %v953 = vxor.u32 %v950, 2147483648
      %v954 = vmul.f32 %v951, 1.442695
      %v955 = vpow.pop %v954
      %v956 = vmul.f32 %v952, 1.442695
      %v957 = vpow.pop %v956
      %v958 = vmul.f32 %v953, 1.442695
      %v959 = vpow.pop %v958
      %v960 = vadd.f32 %v955, 1.0
      %v961 = vadd.f32 %v957, 1.0
      %v962 = vadd.f32 %v959, 1.0
      %v963 = vrcp.pop %v960
      %v964 = vmul.f32 1.0, %v963
      %v965 = vrcp.pop %v961
      %v966 = vmul.f32 1.0, %v965
      %v967 = vrcp.pop %v962
      %v968 = vmul.f32 1.0, %v967
      %v969 = vmul.f32 %v948, %v964
      %v970 = vmul.f32 %v949, %v966
      %v971 = vmul.f32 %v950, %v968
      %v972 = vld [vmem:[%s3] sm:$0xf]
      %v973 = vld [vmem:[%s3 + $0x4] sm:$0x1]
      %v974 = vpack.c.bf16 %v970, %v969
      %v975 = vpack.c.bf16 %v971, %v971
      %v976 = vld [vmem:[%s4] sm:$0xff]
      %v977 = vld [vmem:[%s4 + $0x8] sm:$0x1]
      %979 = vset.pattern.permute.xlu0 0
      %980 = vperm.xlu0 %979, %v976
      %v981 = vpop.permute.xlu0 %980
      %984 = vset.pattern.permute.xlu0 0
      %985 = vperm.xlu0 %984, %v977
      %v986 = vpop.permute.xlu0 %985
      %v990 = vunpack.c.l.b16 %v972
      %v991 = vunpack.c.l.b16 %v973
      %v992 = vpack.c.b16 %v991, %v990
      %v994 = vsel %vm265, %v992, 0
      %v997 = vsel %vm265, %v974, 0
      %v1000 = vsel %vm265, %v975, 0
      %1002 = vmatprep.subr.bf16.mxu0 0
      %1003 = vmatpush1.bf16.xpose.msra.mxu0 %v997
      %1004 = vmatprep.subr.bf16.mxu0 0
      %1005 = vmatpush1.bf16.xpose.msra.mxu0 %v1000
      %1006 = vmatprep.subr.bf16.mxu0 0
      %1007 = vmatpush1.bf16.xpose.msra.mxu0 0
      %1008 = vmatprep.subr.bf16.mxu0 0
      %1009 = vmatpush1.bf16.xpose.msra.mxu0 0
      %1010 = vmatprep.subr.bf16.mxu0 0
      %1011 = vmatpush1.bf16.xpose.msra.mxu0 0
      %1012 = vmatprep.subr.bf16.mxu0 0
      %1013 = vmatpush1.bf16.xpose.msra.mxu0 0
      %1014 = vmatprep.subr.bf16.mxu0 0
      %1015 = vmatpush1.bf16.xpose.msra.mxu0 0
      %1016 = vmatprep.subr.bf16.mxu0 0
      %1017 = vmatpush1.bf16.xpose.msra.mxu0 0
      %1018 = vmatprep.subr.bf16.mxu0 0
      %1019 = vmatpush1.bf16.xpose.msra.mxu0 0
      %1020 = vmatprep.subr.bf16.mxu0 0
      %1021 = vmatpush1.bf16.xpose.msra.mxu0 0
      %1022 = vmatprep.subr.bf16.mxu0 0
      %1023 = vmatpush1.bf16.xpose.msra.mxu0 0
      %1024 = vmatprep.subr.bf16.mxu0 0
      %1025 = vmatpush1.bf16.xpose.msra.mxu0 0
      %1026 = vmatprep.subr.bf16.mxu0 0
      %1027 = vmatpush1.bf16.xpose.msra.mxu0 0
      %1028 = vmatprep.subr.bf16.mxu0 0
      %1029 = vmatpush1.bf16.xpose.msra.mxu0 0
      %1030 = vmatprep.subr.bf16.mxu0 0
      %1031 = vmatpush1.bf16.xpose.msra.mxu0 0
      %1032 = vmatprep.subr.bf16.mxu0 0
      %1033 = vmatpush1.bf16.xpose.msra.mxu0 0
      %1034 = vmatprep.mubr.bf16.mxu0 0
      %1035 = vmatmul.mubr.bf16.gmra.mrb[0].mxu0 %v994
      %v1036 = vpop.f32.mrb[0].mxu0
      %v1037 = vadd.f32 %v981, %v1036
      %v1038 = vpop.f32.mrb[0].mxu0
      %v1039 = vpop.f32.mrb[0].mxu0
      %v1040 = vadd.f32 %v986, %v1039
      %v1041 = vpop.f32.mrb[0].mxu0
      %1042 = vdwg.mxu0
      %v1043 = vpack.c.bf16 %v1040, %v1037
      %v1045 = vunpack.c.l.b16 %v1043
      %v1046 = vunpack.c.h.b16 %v1043
      %v1047 = vpack.c.b16 %v1045, %v1045
      %v1048 = vpack.c.b16 %v1046, %v1046
      %vm1051 = vcmask 175104
      %1052 = vst.msk [vmem:[%s224] sm:$0xf] %vm1051, %v1047
      %vm1053 = vcmask 172032
      %vm1054 = vsmask.f32 256
      %vm1055 = vmand %vm1053, %vm1054
      %v1056 = vld [vmem:[%s224 + $0x4] sm:$0x1]
      %v1057 = vsel %vm1055, %v1048, %v1056
      %1058 = vst [vmem:[%s224 + $0x4] sm:$0x1] %v1057
      %p1059 = scmp.lt.s32.totalorder %s16, 1
      %s1060 = scalar_select %p1059, %s16, 1
      %s1061 = smul.addr %s1060, 2
      %s1062 = smul.addr %s1061, 4
      %s1063 = scalar_lea.vmem %s5, %s1062
      // Predicated region
      $region41: #{yolo_forward.5} parent=39 // pred_check
        %p1064 = pneg %p144
      $region42: #{yolo_forward.5} parent=39 // pred_check_branch
        %1066 = sbr.rel (%p1064) target = $region44
      $region43: #{yolo_forward.5} parent=39 // pred_region
        _
      $region44: #{yolo_forward.5} parent=39 // pred_fallthru
        _
    $region40: #{yolo_forward.5} parent=5 // pred_fallthru
      _
    %p1067 = scmp.le.s32.totalorder 2, %s11
    // Predicated region
    $region45: #{yolo_forward.5} parent=5 // pred_check
      %p1068 = pneg %p1067
    $region46: #{yolo_forward.5} parent=5 // pred_check_branch
      %1070 = sbr.rel (%p1068) target = $region48
    $region47: #{yolo_forward.5} parent=5 // pred_region
      %s1071 = ssub.s32 %s11, 2
      // Predicated region
      $region49: #{yolo_forward.5} parent=47 // pred_check
        %p1072 = pneg %p150
      $region50: #{yolo_forward.5} parent=47 // pred_check_branch
        %1074 = sbr.rel (%p1072) target = $region52
      $region51: #{yolo_forward.5} parent=47 // pred_region
        %p1075 = scmp.lt.s32.totalorder %s17, 1
        %s1076 = scalar_select %p1075, %s17, 1
        %s1077 = smul.addr %s1076, 2
        %s1078 = smul.addr %s1077, 4
        %s1079 = scalar_lea.vmem %s5, %s1078
      $region52: #{yolo_forward.5} parent=47 // pred_fallthru
        _
    $region48: #{yolo_forward.5} parent=5 // pred_fallthru
      _
  $region6: #{yolo_forward.5} parent=0 // loop_footer
    %s15 = sadd.s32 1, %s11
  $region7: #{yolo_forward.5} parent=0 // loop_footer_branch
    %10 = sbr.rel target = $region3
  $region8: #{yolo_forward.5} parent=0 // loop_exit
    _

// kernel: yolo_forward.3
$region0: #{yolo_forward.3}
  #allocation0 [shape = 'u32[]', space=smem, size = 0x4, offset = 0x4, fixed_abs, tag = 'smem constant byte address 0x4 - core index']
  #allocation1 [shape = 'u32[144,128]{1,0:T(1,128)}', space=vmem, size = 0x12000, scoped, tag = 'internal scratch']
  %s0 = inlined_call_operand.vmem [shape: bf16[2,81,12], index: 0, kind: input, shape index: {}]
  %s1 = inlined_call_operand.vmem [shape: bf16[4,12,8], index: 1, kind: input, shape index: {}]
  %s2 = inlined_call_operand.vmem [shape: f32[1,8], index: 2, kind: input, shape index: {}]
  %s3 = inlined_call_operand.vmem [shape: bf16[2,71,8], index: 3, kind: output, shape index: {}]
  %s4 = sld [smem:[#allocation0]]
  $region45: #{yolo_forward.3} parent=0
    _
  %s6 = ssub.s32 1, %s4
  %s7 = scalar_select 0, %s6, %s4
  loop: start=0, step=1, limit=4
  $region2: #{yolo_forward.3} parent=0 // loop_pre_header
    _
  $region3: #{yolo_forward.3} parent=0 // loop_header
    %s9 = sphi 0, %s13
    %p10 = scmp.ge.s32.totalorder %s9, 4
    %s19 = sphi 0, %s21
    %s22 = sphi 0, %s19
    %s23 = sphi 0, %s22
    %s39 = sphi 0, %s23
    %s43 = sphi 0, %s43
    %s45 = sphi 0, %s43
    %s46 = sphi 0, %s45
    %s60 = sphi 0, %s46
    %s64 = sphi 0, %s64
    %s66 = sphi 0, %s64
    %s67 = sphi 0, %s66
    %s81 = sphi 0, %s67
    %s87 = sphi 0, %s89
    %s90 = sphi 0, %s87
    %s91 = sphi 0, %s90
    %s107 = sphi 0, %s91
  $region4: #{yolo_forward.3} parent=0 // loop_header_branch
    %12 = sbr.rel (%p10) target = $region8
  $region5: #{yolo_forward.3} parent=0 // loop_body
    %s14 = ssub.s32 %s9, 1
    %s15 = ssub.s32 %s9, 2
    %s16 = sadd.s32 %s9, 1
    %s17 = ssub.s32 %s9, %s16
    %p18 = scmp.eq.s32.totalorder %s17, 0
    %s20 = sadd.s32 %s19, 1
    %s21 = scalar_select %p18, %s19, %s20
    %p24 = pneg %p18
    %p25 = scmp.eq.s32.totalorder %s9, 1
    %p26 = por %p24, %p25
    %p27 = scmp.ne.s32.totalorder %s19, %s22
    %p28 = scmp.eq.s32.totalorder %s9, 0
    %p29 = por %p27, %p28
    %p30 = scmp.ne.s32.totalorder %s19, %s22
    %p31 = scmp.eq.s32.totalorder %s14, 1
    %p32 = por %p30, %p31
    %p33 = scmp.ne.s32.totalorder %s22, %s23
    %p34 = scmp.eq.s32.totalorder %s14, 0
    %p35 = por %p33, %p34
    %p36 = scmp.ne.s32.totalorder %s22, %s23
    %p37 = scmp.eq.s32.totalorder %s15, 1
    %p38 = por %p36, %p37
    %p40 = scmp.ne.s32.totalorder %s23, %s39
    %p41 = scmp.eq.s32.totalorder %s15, 0
    %p42 = por %p40, %p41
    %s44 = sadd.s32 %s43, 1
    %p47 = scmp.eq.s32.totalorder %s9, 1
    %p48 = scmp.ne.s32.totalorder %s43, %s45
    %p49 = scmp.eq.s32.totalorder %s9, 0
    %p50 = por %p48, %p49
    %p51 = scmp.ne.s32.totalorder %s43, %s45
    %p52 = scmp.eq.s32.totalorder %s14, 1
    %p53 = por %p51, %p52
    %p54 = scmp.ne.s32.totalorder %s45, %s46
    %p55 = scmp.eq.s32.totalorder %s14, 0
    %p56 = por %p54, %p55
    %p57 = scmp.ne.s32.totalorder %s45, %s46
    %p58 = scmp.eq.s32.totalorder %s15, 1
    %p59 = por %p57, %p58
    %p61 = scmp.ne.s32.totalorder %s46, %s60
    %p62 = scmp.eq.s32.totalorder %s15, 0
    %p63 = por %p61, %p62
    %s65 = sadd.s32 %s64, 1
    %p68 = scmp.eq.s32.totalorder %s9, 1
    %p69 = scmp.ne.s32.totalorder %s64, %s66
    %p70 = scmp.eq.s32.totalorder %s9, 0
    %p71 = por %p69, %p70
    %p72 = scmp.ne.s32.totalorder %s64, %s66
    %p73 = scmp.eq.s32.totalorder %s14, 1
    %p74 = por %p72, %p73
    %p75 = scmp.ne.s32.totalorder %s66, %s67
    %p76 = scmp.eq.s32.totalorder %s14, 0
    %p77 = por %p75, %p76
    %p78 = scmp.ne.s32.totalorder %s66, %s67
    %p79 = scmp.eq.s32.totalorder %s15, 1
    %p80 = por %p78, %p79
    %p82 = scmp.ne.s32.totalorder %s67, %s81
    %p83 = scmp.eq.s32.totalorder %s15, 0
    %p84 = por %p82, %p83
    %s85 = ssub.s32 %s9, %s16
    %p86 = scmp.eq.s32.totalorder %s85, 0
    %s88 = sadd.s32 %s87, 1
    %s89 = scalar_select %p86, %s87, %s88
    %p92 = pneg %p86
    %p93 = scmp.eq.s32.totalorder %s9, 1
    %p94 = por %p92, %p93
    %p95 = scmp.ne.s32.totalorder %s87, %s90
    %p96 = scmp.eq.s32.totalorder %s9, 0
    %p97 = por %p95, %p96
    %p98 = scmp.ne.s32.totalorder %s87, %s90
    %p99 = scmp.eq.s32.totalorder %s14, 1
    %p100 = por %p98, %p99
    %p101 = scmp.ne.s32.totalorder %s90, %s91
    %p102 = scmp.eq.s32.totalorder %s14, 0
    %p103 = por %p101, %p102
    %p104 = scmp.ne.s32.totalorder %s90, %s91
    %p105 = scmp.eq.s32.totalorder %s15, 1
    %p106 = por %p104, %p105
    %p108 = scmp.ne.s32.totalorder %s91, %s107
    %p109 = scmp.eq.s32.totalorder %s15, 0
    %p110 = por %p108, %p109
    %p111 = scmp.le.s32.totalorder 1, %s9
    %p112 = scmp.lt.s32.totalorder %s9, 3
    %p113 = pnand %p111, %p112
    %p114 = pneg %p113
    // Predicated region
    $region9: #{yolo_forward.3} parent=5 // pred_check
      _
    $region10: #{yolo_forward.3} parent=5 // pred_check_branch
      %116 = sbr.rel (%p113) target = $region12
    $region11: #{yolo_forward.3} parent=5 // pred_region
      %s117 = ssub.s32 %s9, 1
      // Predicated region
      $region13: #{yolo_forward.3} parent=11 // pred_check
        %p118 = pneg %p56
      $region14: #{yolo_forward.3} parent=11 // pred_check_branch
        %120 = sbr.rel (%p118) target = $region16
      $region15: #{yolo_forward.3} parent=11 // pred_region
        _
      $region16: #{yolo_forward.3} parent=11 // pred_fallthru
        _
      // Predicated region
      $region17: #{yolo_forward.3} parent=11 // pred_check
        %p121 = pneg %p77
      $region18: #{yolo_forward.3} parent=11 // pred_check_branch
        %123 = sbr.rel (%p121) target = $region20
      $region19: #{yolo_forward.3} parent=11 // pred_region
        _
      $region20: #{yolo_forward.3} parent=11 // pred_fallthru
        _
    $region12: #{yolo_forward.3} parent=5 // pred_fallthru
      _
    %p124 = scmp.lt.s32.totalorder %s9, 2
    // Predicated region
    $region21: #{yolo_forward.3} parent=5 // pred_check
      %p125 = pneg %p124
    $region22: #{yolo_forward.3} parent=5 // pred_check_branch
      %127 = sbr.rel (%p125) target = $region24
    $region23: #{yolo_forward.3} parent=5 // pred_region
      // Predicated region
      $region25: #{yolo_forward.3} parent=23 // pred_check
        %p128 = pneg %p29
      $region26: #{yolo_forward.3} parent=23 // pred_check_branch
        %130 = sbr.rel (%p128) target = $region28
      $region27: #{yolo_forward.3} parent=23 // pred_region
        %p131 = scmp.lt.s32.totalorder %s9, 1
        %s132 = scalar_select %p131, %s9, 1
        %s133 = smul.addr %s132, 11
        %s134 = smul.addr %s133, 4
        %s135 = scalar_lea.vmem %s0, %s134
      $region28: #{yolo_forward.3} parent=23 // pred_fallthru
        _
    $region24: #{yolo_forward.3} parent=5 // pred_fallthru
      _
    %p136 = scmp.le.s32.totalorder 1, %s9
    %p137 = scmp.lt.s32.totalorder %s9, 3
    %p138 = pnand %p136, %p137
    %p139 = pneg %p138
    // Predicated region
    $region29: #{yolo_forward.3} parent=5 // pred_check
      _
    $region30: #{yolo_forward.3} parent=5 // pred_check_branch
      %141 = sbr.rel (%p138) target = $region32
    $region31: #{yolo_forward.3} parent=5 // pred_region
      %s142 = ssub.s32 %s9, 1
      %p143 = scmp.lt.s32.totalorder %s14, 1
      %s144 = scalar_select %p143, %s14, 1
      %s145 = smul.addr %s144, 11
      %s146 = smul.addr %s145, 4
      %s147 = scalar_lea.vmem %s0, %s146
      %p148 = pneg %p35
      %p149 = pneg %p32
      %p150 = pneg %p56
      %p151 = pneg %p53
      %p152 = pneg %p77
      %p153 = pneg %p74
      %p154 = pneg %p103
      %p155 = pneg %p100
      %p156 = scmp.lt.s32.totalorder %s14, 1
      %s157 = scalar_select %p156, %s14, 1
      %s158 = smul.addr %s157, 9
      %s159 = smul.addr %s158, 4
      %s160 = scalar_lea.vmem %s3, %s159
      %p161 = scmp.lt.s32.totalorder %s14, 1
      %s162 = scalar_select %p161, %s14, 1
      %s163 = smul.addr %s162, 11
      %s164 = smul.addr %s163, 4
      %s165 = scalar_lea.vmem %s0, %s164
      %p166 = scmp.lt.s32.totalorder %s14, 1
      %s167 = scalar_select %p166, %s14, 1
      %s168 = smul.addr %s167, 9
      %s169 = smul.addr %s168, 4
      %s170 = scalar_lea.vmem %s3, %s169
      %v172 = vld [vmem:[%s165] sm:$0xf]
      %v173 = vld [vmem:[%s165 + $0x4] sm:$0xf]
      %v174 = vld [vmem:[%s165 + $0x8] sm:$0xf]
      %v175 = vld [vmem:[%s165 + $0xc] sm:$0xf]
      %v176 = vld [vmem:[%s165 + $0x10] sm:$0xf]
      %v177 = vld [vmem:[%s165 + $0x14] sm:$0xf]
      %v178 = vld [vmem:[%s165 + $0x18] sm:$0xf]
      %v179 = vld [vmem:[%s165 + $0x1c] sm:$0xf]
      %v180 = vld [vmem:[%s165 + $0x20] sm:$0xf]
      %v181 = vld [vmem:[%s1] sm:$0xf]
      %v182 = vld [vmem:[%s1 + $0x4] sm:$0x3]
      %s183 = scalar_lea.vmem %s1, 8
      %v184 = vld [vmem:[%s183] sm:$0xf]
      %v185 = vld [vmem:[%s183 + $0x4] sm:$0x3]
      %v195 = vunpack.c.l.b16 %v172
      %v196 = vunpack.c.l.b16 %v173
      %v197 = vunpack.c.l.b16 %v174
      %v198 = vunpack.c.l.b16 %v175
      %v199 = vunpack.c.l.b16 %v176
      %v200 = vunpack.c.l.b16 %v177
      %v201 = vunpack.c.l.b16 %v178
      %v202 = vunpack.c.l.b16 %v179
      %v203 = vunpack.c.l.b16 %v180
      %v204 = vpack.c.b16 %v196, %v195
      %v205 = vpack.c.b16 %v198, %v197
      %v206 = vpack.c.b16 %v200, %v199
      %v207 = vpack.c.b16 %v202, %v201
      %v208 = vpack.c.b16 %v203, %v203
      %vm209 = vsmask.f32 7424
      %v211 = vshrl.u32 %v204, 16
      %v213 = vshll.u32 %v204, 16
      %v215 = vrot.slane %v213, 1
      %v216 = vor.u32 %v211, %v215
      %v218 = vshll.u32 %v205, 16
      %v220 = vrot.slane %v218, 1
      %v221 = vsel %vm209, %v216, %v220
      %v222 = vshrl.u32 %v205, 16
      %v224 = vor.u32 %v222, %v220
      %v226 = vshll.u32 %v206, 16
      %v228 = vrot.slane %v226, 1
      %v229 = vsel %vm209, %v224, %v228
      %v230 = vshrl.u32 %v206, 16
      %v232 = vor.u32 %v230, %v228
      %v234 = vshll.u32 %v207, 16
      %v236 = vrot.slane %v234, 1
      %v237 = vsel %vm209, %v232, %v236
      %v238 = vshrl.u32 %v207, 16
      %v240 = vor.u32 %v238, %v236
      %v242 = vshll.u32 %v208, 16
      %v244 = vrot.slane %v242, 1
      %v245 = vsel %vm209, %v240, %v244
      %v246 = vshrl.u32 %v208, 16
      %v248 = vor.u32 %v246, %v244
      %v251 = vunpack.c.l.b16 %v184
      %v252 = vunpack.c.l.b16 %v185
      %v253 = vpack.c.b16 %v252, %v251
      %vm254 = vcmask 97280
      %v256 = vsel %vm254, %v221, 0
      %v259 = vsel %vm254, %v229, 0
      %v262 = vsel %vm254, %v237, 0
      %v265 = vsel %vm254, %v245, 0
      %v268 = vsel %vm254, %v248, 0
      %vm270 = vcmask 1045504
      %v272 = vsel %vm270, %v253, 0
      %274 = vmatprep.subr.bf16.mxu0 0
      %275 = vmatpush1.bf16.msra.mxu0 %v272
      %276 = vmatprep.subr.bf16.mxu0 0
      %277 = vmatpush1.bf16.msra.mxu0 0
      %278 = vmatprep.subr.bf16.mxu0 0
      %279 = vmatpush1.bf16.msra.mxu0 0
      %280 = vmatprep.subr.bf16.mxu0 0
      %281 = vmatpush1.bf16.msra.mxu0 0
      %282 = vmatprep.subr.bf16.mxu0 0
      %283 = vmatpush1.bf16.msra.mxu0 0
      %284 = vmatprep.subr.bf16.mxu0 0
      %285 = vmatpush1.bf16.msra.mxu0 0
      %286 = vmatprep.subr.bf16.mxu0 0
      %287 = vmatpush1.bf16.msra.mxu0 0
      %288 = vmatprep.subr.bf16.mxu0 0
      %289 = vmatpush1.bf16.msra.mxu0 0
      %290 = vmatprep.subr.bf16.mxu0 0
      %291 = vmatpush1.bf16.msra.mxu0 0
      %292 = vmatprep.subr.bf16.mxu0 0
      %293 = vmatpush1.bf16.msra.mxu0 0
      %294 = vmatprep.subr.bf16.mxu0 0
      %295 = vmatpush1.bf16.msra.mxu0 0
      %296 = vmatprep.subr.bf16.mxu0 0
      %297 = vmatpush1.bf16.msra.mxu0 0
      %298 = vmatprep.subr.bf16.mxu0 0
      %299 = vmatpush1.bf16.msra.mxu0 0
      %300 = vmatprep.subr.bf16.mxu0 0
      %301 = vmatpush1.bf16.msra.mxu0 0
      %302 = vmatprep.subr.bf16.mxu0 0
      %303 = vmatpush1.bf16.msra.mxu0 0
      %304 = vmatprep.subr.bf16.mxu0 0
      %305 = vmatpush1.bf16.msra.mxu0 0
      %306 = vmatprep.mubr.bf16.mxu0 0
      %307 = vmatmul.mubr.bf16.gmra.mrb[0].mxu0 %v256
      %v308 = vpop.f32.mrb[0].mxu0
      %v309 = vadd.f32 0.0, %v308
      %v310 = vpop.f32.mrb[0].mxu0
      %v311 = vpop.f32.mrb[0].mxu0
      %v312 = vadd.f32 0.0, %v311
      %v313 = vpop.f32.mrb[0].mxu0
      %314 = vmatprep.mubr.bf16.mxu0 0
      %315 = vmatmul.mubr.bf16.gmra.mrb[0].mxu0 %v259
      %v316 = vpop.f32.mrb[0].mxu0
      %v317 = vadd.f32 0.0, %v316
      %v318 = vpop.f32.mrb[0].mxu0
      %v319 = vpop.f32.mrb[0].mxu0
      %v320 = vadd.f32 0.0, %v319
      %v321 = vpop.f32.mrb[0].mxu0
      %322 = vmatprep.mubr.bf16.mxu0 0
      %323 = vmatmul.mubr.bf16.gmra.mrb[0].mxu0 %v262
      %v324 = vpop.f32.mrb[0].mxu0
      %v325 = vadd.f32 0.0, %v324
      %v326 = vpop.f32.mrb[0].mxu0
      %v327 = vpop.f32.mrb[0].mxu0
      %v328 = vadd.f32 0.0, %v327
      %v329 = vpop.f32.mrb[0].mxu0
      %330 = vmatprep.mubr.bf16.mxu0 0
      %331 = vmatmul.mubr.bf16.gmra.mrb[0].mxu0 %v265
      %v332 = vpop.f32.mrb[0].mxu0
      %v333 = vadd.f32 0.0, %v332
      %v334 = vpop.f32.mrb[0].mxu0
      %v335 = vpop.f32.mrb[0].mxu0
      %v336 = vadd.f32 0.0, %v335
      %v337 = vpop.f32.mrb[0].mxu0
      %338 = vmatprep.mubr.bf16.mxu0 0
      %339 = vmatmul.mubr.bf16.gmra.mrb[0].mxu0 %v268
      %v340 = vpop.f32.mrb[0].mxu0
      %v341 = vadd.f32 0.0, %v340
      %v342 = vpop.f32.mrb[0].mxu0
      %v343 = vpop.f32.mrb[0].mxu0
      %v344 = vpop.f32.mrb[0].mxu0
      %345 = vdwg.mxu0
      %v348 = vunpack.c.l.b16 %v181
      %v349 = vunpack.c.l.b16 %v182
      %v350 = vpack.c.b16 %v349, %v348
      %v351 = vsel %vm254, %v204, 0
      %v353 = vsel %vm254, %v205, 0
      %v355 = vsel %vm254, %v206, 0
      %v357 = vsel %vm254, %v207, 0
      %v359 = vsel %vm254, %v208, 0
      %v362 = vsel %vm270, %v350, 0
      %364 = vmatprep.subr.bf16.mxu0 0
      %365 = vmatpush1.bf16.msra.mxu0 %v362
      %366 = vmatprep.subr.bf16.mxu0 0
      %367 = vmatpush1.bf16.msra.mxu0 0
      %368 = vmatprep.subr.bf16.mxu0 0
      %369 = vmatpush1.bf16.msra.mxu0 0
      %370 = vmatprep.subr.bf16.mxu0 0
      %371 = vmatpush1.bf16.msra.mxu0 0
      %372 = vmatprep.subr.bf16.mxu0 0
      %373 = vmatpush1.bf16.msra.mxu0 0
      %374 = vmatprep.subr.bf16.mxu0 0
      %375 = vmatpush1.bf16.msra.mxu0 0
      %376 = vmatprep.subr.bf16.mxu0 0
      %377 = vmatpush1.bf16.msra.mxu0 0
      %378 = vmatprep.subr.bf16.mxu0 0
      %379 = vmatpush1.bf16.msra.mxu0 0
      %380 = vmatprep.subr.bf16.mxu0 0
      %381 = vmatpush1.bf16.msra.mxu0 0
      %382 = vmatprep.subr.bf16.mxu0 0
      %383 = vmatpush1.bf16.msra.mxu0 0
      %384 = vmatprep.subr.bf16.mxu0 0
      %385 = vmatpush1.bf16.msra.mxu0 0
      %386 = vmatprep.subr.bf16.mxu0 0
      %387 = vmatpush1.bf16.msra.mxu0 0
      %388 = vmatprep.subr.bf16.mxu0 0
      %389 = vmatpush1.bf16.msra.mxu0 0
      %390 = vmatprep.subr.bf16.mxu0 0
      %391 = vmatpush1.bf16.msra.mxu0 0
      %392 = vmatprep.subr.bf16.mxu0 0
      %393 = vmatpush1.bf16.msra.mxu0 0
      %394 = vmatprep.subr.bf16.mxu0 0
      %395 = vmatpush1.bf16.msra.mxu0 0
      %396 = vmatprep.mubr.bf16.mxu0 0
      %397 = vmatmul.mubr.bf16.gmra.mrb[0].mxu0 %v351
      %v398 = vpop.f32.mrb[0].mxu0
      %v399 = vadd.f32 %v309, %v398
      %v400 = vpop.f32.mrb[0].mxu0
      %v401 = vpop.f32.mrb[0].mxu0
      %v402 = vadd.f32 %v312, %v401
      %v403 = vpop.f32.mrb[0].mxu0
      %404 = vmatprep.mubr.bf16.mxu0 0
      %405 = vmatmul.mubr.bf16.gmra.mrb[0].mxu0 %v353
      %v406 = vpop.f32.mrb[0].mxu0
      %v407 = vadd.f32 %v317, %v406
      %v408 = vpop.f32.mrb[0].mxu0
      %v409 = vpop.f32.mrb[0].mxu0
      %v410 = vadd.f32 %v320, %v409
      %v411 = vpop.f32.mrb[0].mxu0
      %412 = vmatprep.mubr.bf16.mxu0 0
      %413 = vmatmul.mubr.bf16.gmra.mrb[0].mxu0 %v355
      %v414 = vpop.f32.mrb[0].mxu0
      %v415 = vadd.f32 %v325, %v414
      %v416 = vpop.f32.mrb[0].mxu0
      %v417 = vpop.f32.mrb[0].mxu0
      %v418 = vadd.f32 %v328, %v417
      %v419 = vpop.f32.mrb[0].mxu0
      %420 = vmatprep.mubr.bf16.mxu0 0
      %421 = vmatmul.mubr.bf16.gmra.mrb[0].mxu0 %v357
      %v422 = vpop.f32.mrb[0].mxu0
      %v423 = vadd.f32 %v333, %v422
      %v424 = vpop.f32.mrb[0].mxu0
      %v425 = vpop.f32.mrb[0].mxu0
      %v426 = vadd.f32 %v336, %v425
      %v427 = vpop.f32.mrb[0].mxu0
      %428 = vmatprep.mubr.bf16.mxu0 0
      %429 = vmatmul.mubr.bf16.gmra.mrb[0].mxu0 %v359
      %v430 = vpop.f32.mrb[0].mxu0
      %v431 = vadd.f32 %v341, %v430
      %v432 = vpop.f32.mrb[0].mxu0
      %v433 = vpop.f32.mrb[0].mxu0
      %v434 = vpop.f32.mrb[0].mxu0
      %435 = vdwg.mxu0
      %v436 = vld [vmem:[%s165 + $0x4] sm:$0xf]
      %v437 = vld [vmem:[%s165 + $0x8] sm:$0xf]
      %v438 = vld [vmem:[%s165 + $0xc] sm:$0xf]
      %v439 = vld [vmem:[%s165 + $0x10] sm:$0xf]
      %v440 = vld [vmem:[%s165 + $0x14] sm:$0xf]
      %v441 = vld [vmem:[%s165 + $0x18] sm:$0xf]
      %v442 = vld [vmem:[%s165 + $0x1c] sm:$0xf]
      %v443 = vld [vmem:[%s165 + $0x20] sm:$0xf]
      %v444 = vld [vmem:[%s165 + $0x24] sm:$0xf]
      %s445 = scalar_lea.vmem %s1, 16
      %v446 = vld [vmem:[%s445] sm:$0xf]
      %v447 = vld [vmem:[%s445 + $0x4] sm:$0x3]
      %v457 = vunpack.c.l.b16 %v436
      %v458 = vunpack.c.l.b16 %v437
      %v459 = vunpack.c.l.b16 %v438
      %v460 = vunpack.c.l.b16 %v439
      %v461 = vunpack.c.l.b16 %v440
      %v462 = vunpack.c.l.b16 %v441
      %v463 = vunpack.c.l.b16 %v442
      %v464 = vunpack.c.l.b16 %v443
      %v465 = vunpack.c.l.b16 %v444
      %v466 = vpack.c.b16 %v458, %v457
      %v467 = vpack.c.b16 %v460, %v459
      %v468 = vpack.c.b16 %v462, %v461
      %v469 = vpack.c.b16 %v464, %v463
      %v470 = vpack.c.b16 %v465, %v465
      %v472 = vshrl.u32 %v466, 16
      %v474 = vshll.u32 %v466, 16
      %v476 = vrot.slane %v474, 1
      %v477 = vor.u32 %v472, %v476
      %v479 = vshll.u32 %v467, 16
      %v481 = vrot.slane %v479, 1
      %v482 = vsel %vm209, %v477, %v481
      %v483 = vshrl.u32 %v467, 16
      %v485 = vor.u32 %v483, %v481
      %v487 = vshll.u32 %v468, 16
      %v489 = vrot.slane %v487, 1
      %v490 = vsel %vm209, %v485, %v489
      %v491 = vshrl.u32 %v468, 16
      %v493 = vor.u32 %v491, %v489
      %v495 = vshll.u32 %v469, 16
      %v497 = vrot.slane %v495, 1
      %v498 = vsel %vm209, %v493, %v497
      %v499 = vshrl.u32 %v469, 16
      %v501 = vor.u32 %v499, %v497
      %v503 = vshll.u32 %v470, 16
      %v505 = vrot.slane %v503, 1
      %v506 = vsel %vm209, %v501, %v505
      %v507 = vshrl.u32 %v470, 16
      %v509 = vor.u32 %v507, %v505
      %v512 = vunpack.c.l.b16 %v446
      %v513 = vunpack.c.l.b16 %v447
      %v514 = vpack.c.b16 %v513, %v512
      %v516 = vsel %vm254, %v482, 0
      %v519 = vsel %vm254, %v490, 0
      %v522 = vsel %vm254, %v498, 0
      %v525 = vsel %vm254, %v506, 0
      %v528 = vsel %vm254, %v509, 0
      %v531 = vsel %vm270, %v514, 0
      %533 = vmatprep.subr.bf16.mxu0 0
      %534 = vmatpush1.bf16.msra.mxu0 %v531
      %535 = vmatprep.subr.bf16.mxu0 0
      %536 = vmatpush1.bf16.msra.mxu0 0
      %537 = vmatprep.subr.bf16.mxu0 0
      %538 = vmatpush1.bf16.msra.mxu0 0
      %539 = vmatprep.subr.bf16.mxu0 0
      %540 = vmatpush1.bf16.msra.mxu0 0
      %541 = vmatprep.subr.bf16.mxu0 0
      %542 = vmatpush1.bf16.msra.mxu0 0
      %543 = vmatprep.subr.bf16.mxu0 0
      %544 = vmatpush1.bf16.msra.mxu0 0
      %545 = vmatprep.subr.bf16.mxu0 0
      %546 = vmatpush1.bf16.msra.mxu0 0
      %547 = vmatprep.subr.bf16.mxu0 0
      %548 = vmatpush1.bf16.msra.mxu0 0
      %549 = vmatprep.subr.bf16.mxu0 0
      %550 = vmatpush1.bf16.msra.mxu0 0
      %551 = vmatprep.subr.bf16.mxu0 0
      %552 = vmatpush1.bf16.msra.mxu0 0
      %553 = vmatprep.subr.bf16.mxu0 0
      %554 = vmatpush1.bf16.msra.mxu0 0
      %555 = vmatprep.subr.bf16.mxu0 0
      %556 = vmatpush1.bf16.msra.mxu0 0
      %557 = vmatprep.subr.bf16.mxu0 0
      %558 = vmatpush1.bf16.msra.mxu0 0
      %559 = vmatprep.subr.bf16.mxu0 0
      %560 = vmatpush1.bf16.msra.mxu0 0
      %561 = vmatprep.subr.bf16.mxu0 0
      %562 = vmatpush1.bf16.msra.mxu0 0
      %563 = vmatprep.subr.bf16.mxu0 0
      %564 = vmatpush1.bf16.msra.mxu0 0
      %565 = vmatprep.mubr.bf16.mxu0 0
      %566 = vmatmul.mubr.bf16.gmra.mrb[0].mxu0 %v516
      %v567 = vpop.f32.mrb[0].mxu0
      %v568 = vadd.f32 0.0, %v567
      %v569 = vpop.f32.mrb[0].mxu0
      %v570 = vpop.f32.mrb[0].mxu0
      %v571 = vadd.f32 0.0, %v570
      %v572 = vpop.f32.mrb[0].mxu0
      %573 = vmatprep.mubr.bf16.mxu0 0
      %574 = vmatmul.mubr.bf16.gmra.mrb[0].mxu0 %v519
      %v575 = vpop.f32.mrb[0].mxu0
      %v576 = vadd.f32 0.0, %v575
      %v577 = vpop.f32.mrb[0].mxu0
      %v578 = vpop.f32.mrb[0].mxu0
      %v579 = vadd.f32 0.0, %v578
      %v580 = vpop.f32.mrb[0].mxu0
      %581 = vmatprep.mubr.bf16.mxu0 0
      %582 = vmatmul.mubr.bf16.gmra.mrb[0].mxu0 %v522
      %v583 = vpop.f32.mrb[0].mxu0
      %v584 = vadd.f32 0.0, %v583
      %v585 = vpop.f32.mrb[0].mxu0
      %v586 = vpop.f32.mrb[0].mxu0
      %v587 = vadd.f32 0.0, %v586
      %v588 = vpop.f32.mrb[0].mxu0
      %589 = vmatprep.mubr.bf16.mxu0 0
      %590 = vmatmul.mubr.bf16.gmra.mrb[0].mxu0 %v525
      %v591 = vpop.f32.mrb[0].mxu0
      %v592 = vadd.f32 0.0, %v591
      %v593 = vpop.f32.mrb[0].mxu0
      %v594 = vpop.f32.mrb[0].mxu0
      %v595 = vadd.f32 0.0, %v594
      %v596 = vpop.f32.mrb[0].mxu0
      %597 = vmatprep.mubr.bf16.mxu0 0
      %598 = vmatmul.mubr.bf16.gmra.mrb[0].mxu0 %v528
      %v599 = vpop.f32.mrb[0].mxu0
      %v600 = vadd.f32 0.0, %v599
      %v601 = vpop.f32.mrb[0].mxu0
      %v602 = vpop.f32.mrb[0].mxu0
      %v603 = vpop.f32.mrb[0].mxu0
      %604 = vdwg.mxu0
      %v605 = vadd.f32 %v399, %v568
      %v606 = vadd.f32 %v402, %v571
      %v607 = vadd.f32 %v407, %v576
      %v608 = vadd.f32 %v410, %v579
      %v609 = vadd.f32 %v415, %v584
      %v610 = vadd.f32 %v418, %v587
      %v611 = vadd.f32 %v423, %v592
      %v612 = vadd.f32 %v426, %v595
      %v613 = vadd.f32 %v431, %v600
      %v614 = vld [vmem:[%s165 + $0x4] sm:$0xe]
      %v615 = vld [vmem:[%s165 + $0x8] sm:$0xf]
      %v616 = vld [vmem:[%s165 + $0xc] sm:$0xf]
      %v617 = vld [vmem:[%s165 + $0x10] sm:$0xf]
      %v618 = vld [vmem:[%s165 + $0x14] sm:$0xf]
      %v619 = vld [vmem:[%s165 + $0x18] sm:$0xf]
      %v620 = vld [vmem:[%s165 + $0x1c] sm:$0xf]
      %v621 = vld [vmem:[%s165 + $0x20] sm:$0xf]
      %v622 = vld [vmem:[%s165 + $0x24] sm:$0xf]
      %v623 = vld [vmem:[%s165 + $0x28] sm:$0x1]
      %s624 = scalar_lea.vmem %s1, 24
      %v625 = vld [vmem:[%s624] sm:$0xf]
      %v626 = vld [vmem:[%s624 + $0x4] sm:$0x3]
      %v637 = vunpack.c.l.b16 %v614
      %v638 = vunpack.c.l.b16 %v615
      %v639 = vunpack.c.l.b16 %v616
      %v640 = vunpack.c.l.b16 %v617
      %v641 = vunpack.c.l.b16 %v618
      %v642 = vunpack.c.l.b16 %v619
      %v643 = vunpack.c.l.b16 %v620
      %v644 = vunpack.c.l.b16 %v621
      %v645 = vunpack.c.l.b16 %v622
      %v646 = vunpack.c.l.b16 %v623
      %v647 = vpack.c.b16 %v638, %v637
      %v648 = vpack.c.b16 %v640, %v639
      %v649 = vpack.c.b16 %v642, %v641
      %v650 = vpack.c.b16 %v644, %v643
      %v651 = vpack.c.b16 %v646, %v645
      %vm652 = vcmask 1046528
      %v653 = vrot.slane %v647, 1
      %v654 = vrot.slane %v648, 1
      %v655 = vsel %vm652, %v653, %v654
      %v656 = vrot.slane %v649, 1
      %v657 = vsel %vm652, %v654, %v656
      %v658 = vrot.slane %v650, 1
      %v659 = vsel %vm652, %v656, %v658
      %v660 = vrot.slane %v651, 1
      %v661 = vsel %vm652, %v658, %v660
      %v664 = vunpack.c.l.b16 %v625
      %v665 = vunpack.c.l.b16 %v626
      %v666 = vpack.c.b16 %v665, %v664
      %v668 = vsel %vm254, %v655, 0
      %v671 = vsel %vm254, %v657, 0
      %v674 = vsel %vm254, %v659, 0
      %v677 = vsel %vm254, %v661, 0
      %v680 = vsel %vm254, %v660, 0
      %v683 = vsel %vm270, %v666, 0
      %685 = vmatprep.subr.bf16.mxu0 0
      %686 = vmatpush1.bf16.msra.mxu0 %v683
      %687 = vmatprep.subr.bf16.mxu0 0
      %688 = vmatpush1.bf16.msra.mxu0 0
      %689 = vmatprep.subr.bf16.mxu0 0
      %690 = vmatpush1.bf16.msra.mxu0 0
      %691 = vmatprep.subr.bf16.mxu0 0
      %692 = vmatpush1.bf16.msra.mxu0 0
      %693 = vmatprep.subr.bf16.mxu0 0
      %694 = vmatpush1.bf16.msra.mxu0 0
      %695 = vmatprep.subr.bf16.mxu0 0
      %696 = vmatpush1.bf16.msra.mxu0 0
      %697 = vmatprep.subr.bf16.mxu0 0
      %698 = vmatpush1.bf16.msra.mxu0 0
      %699 = vmatprep.subr.bf16.mxu0 0
      %700 = vmatpush1.bf16.msra.mxu0 0
      %701 = vmatprep.subr.bf16.mxu0 0
      %702 = vmatpush1.bf16.msra.mxu0 0
      %703 = vmatprep.subr.bf16.mxu0 0
      %704 = vmatpush1.bf16.msra.mxu0 0
      %705 = vmatprep.subr.bf16.mxu0 0
      %706 = vmatpush1.bf16.msra.mxu0 0
      %707 = vmatprep.subr.bf16.mxu0 0
      %708 = vmatpush1.bf16.msra.mxu0 0
      %709 = vmatprep.subr.bf16.mxu0 0
      %710 = vmatpush1.bf16.msra.mxu0 0
      %711 = vmatprep.subr.bf16.mxu0 0
      %712 = vmatpush1.bf16.msra.mxu0 0
      %713 = vmatprep.subr.bf16.mxu0 0
      %714 = vmatpush1.bf16.msra.mxu0 0
      %715 = vmatprep.subr.bf16.mxu0 0
      %716 = vmatpush1.bf16.msra.mxu0 0
      %717 = vmatprep.mubr.bf16.mxu0 0
      %718 = vmatmul.mubr.bf16.gmra.mrb[0].mxu0 %v668
      %v719 = vpop.f32.mrb[0].mxu0
      %v720 = vadd.f32 0.0, %v719
      %v721 = vpop.f32.mrb[0].mxu0
      %v722 = vpop.f32.mrb[0].mxu0
      %v723 = vadd.f32 0.0, %v722
      %v724 = vpop.f32.mrb[0].mxu0
      %725 = vmatprep.mubr.bf16.mxu0 0
      %726 = vmatmul.mubr.bf16.gmra.mrb[0].mxu0 %v671
      %v727 = vpop.f32.mrb[0].mxu0
      %v728 = vadd.f32 0.0, %v727
      %v729 = vpop.f32.mrb[0].mxu0
      %v730 = vpop.f32.mrb[0].mxu0
      %v731 = vadd.f32 0.0, %v730
      %v732 = vpop.f32.mrb[0].mxu0
      %733 = vmatprep.mubr.bf16.mxu0 0
      %734 = vmatmul.mubr.bf16.gmra.mrb[0].mxu0 %v674
      %v735 = vpop.f32.mrb[0].mxu0
      %v736 = vadd.f32 0.0, %v735
      %v737 = vpop.f32.mrb[0].mxu0
      %v738 = vpop.f32.mrb[0].mxu0
      %v739 = vadd.f32 0.0, %v738
      %v740 = vpop.f32.mrb[0].mxu0
      %741 = vmatprep.mubr.bf16.mxu0 0
      %742 = vmatmul.mubr.bf16.gmra.mrb[0].mxu0 %v677
      %v743 = vpop.f32.mrb[0].mxu0
      %v744 = vadd.f32 0.0, %v743
      %v745 = vpop.f32.mrb[0].mxu0
      %v746 = vpop.f32.mrb[0].mxu0
      %v747 = vadd.f32 0.0, %v746
      %v748 = vpop.f32.mrb[0].mxu0
      %749 = vmatprep.mubr.bf16.mxu0 0
      %750 = vmatmul.mubr.bf16.gmra.mrb[0].mxu0 %v680
      %v751 = vpop.f32.mrb[0].mxu0
      %v752 = vadd.f32 0.0, %v751
      %v753 = vpop.f32.mrb[0].mxu0
      %v754 = vpop.f32.mrb[0].mxu0
      %v755 = vpop.f32.mrb[0].mxu0
      %756 = vdwg.mxu0
      %v757 = vadd.f32 %v605, %v720
      %v758 = vadd.f32 %v606, %v723
      %v759 = vadd.f32 %v607, %v728
      %v760 = vadd.f32 %v608, %v731
      %v761 = vadd.f32 %v609, %v736
      %v762 = vadd.f32 %v610, %v739
      %v763 = vadd.f32 %v611, %v744
      %v764 = vadd.f32 %v612, %v747
      %v765 = vadd.f32 %v613, %v752
      %v766 = vld [vmem:[%s2] sm:$0x1]
      %v768 = vlaneseq
      %v769 = vshrl.u32 %v768, 7
      %v770 = vsub.s32 0, %v769
      %v771 = vrot.slane %v766, %v770
      %v773 = vadd.f32 %v757, %v771
      %v774 = vadd.f32 %v758, %v771
      %v775 = vadd.f32 %v759, %v771
      %v776 = vadd.f32 %v760, %v771
      %v777 = vadd.f32 %v761, %v771
      %v778 = vadd.f32 %v762, %v771
      %v779 = vadd.f32 %v763, %v771
      %v780 = vadd.f32 %v764, %v771
      %v781 = vadd.f32 %v765, %v771
      %v782 = vxor.u32 %v773, 2147483648
      %v783 = vxor.u32 %v774, 2147483648
      %v784 = vxor.u32 %v775, 2147483648
      %v785 = vxor.u32 %v776, 2147483648
      %v786 = vxor.u32 %v777, 2147483648
      %v787 = vxor.u32 %v778, 2147483648
      %v788 = vxor.u32 %v779, 2147483648
      %v789 = vxor.u32 %v780, 2147483648
      %v790 = vxor.u32 %v781, 2147483648
      %v791 = vmul.f32 %v782, 1.442695
      %v792 = vpow.pop %v791
      %v793 = vmul.f32 %v783, 1.442695
      %v794 = vpow.pop %v793
      %v795 = vmul.f32 %v784, 1.442695
      %v796 = vpow.pop %v795
      %v797 = vmul.f32 %v785, 1.442695
      %v798 = vpow.pop %v797
      %v799 = vmul.f32 %v786, 1.442695
      %v800 = vpow.pop %v799
      %v801 = vmul.f32 %v787, 1.442695
      %v802 = vpow.pop %v801
      %v803 = vmul.f32 %v788, 1.442695
      %v804 = vpow.pop %v803
      %v805 = vmul.f32 %v789, 1.442695
      %v806 = vpow.pop %v805
      %v807 = vmul.f32 %v790, 1.442695
      %v808 = vpow.pop %v807
      %v809 = vadd.f32 %v792, 1.0
      %v810 = vadd.f32 %v794, 1.0
      %v811 = vadd.f32 %v796, 1.0
      %v812 = vadd.f32 %v798, 1.0
      %v813 = vadd.f32 %v800, 1.0
      %v814 = vadd.f32 %v802, 1.0
      %v815 = vadd.f32 %v804, 1.0
      %v816 = vadd.f32 %v806, 1.0
      %v817 = vadd.f32 %v808, 1.0
      %v818 = vrcp.pop %v809
      %v819 = vmul.f32 1.0, %v818
      %v820 = vrcp.pop %v810
      %v821 = vmul.f32 1.0, %v820
      %v822 = vrcp.pop %v811
      %v823 = vmul.f32 1.0, %v822
      %v824 = vrcp.pop %v812
      %v825 = vmul.f32 1.0, %v824
      %v826 = vrcp.pop %v813
      %v827 = vmul.f32 1.0, %v826
      %v828 = vrcp.pop %v814
      %v829 = vmul.f32 1.0, %v828
      %v830 = vrcp.pop %v815
      %v831 = vmul.f32 1.0, %v830
      %v832 = vrcp.pop %v816
      %v833 = vmul.f32 1.0, %v832
      %v834 = vrcp.pop %v817
      %v835 = vmul.f32 1.0, %v834
      %v836 = vmul.f32 %v773, %v819
      %v837 = vmul.f32 %v774, %v821
      %v838 = vmul.f32 %v775, %v823
      %v839 = vmul.f32 %v776, %v825
      %v840 = vmul.f32 %v777, %v827
      %v841 = vmul.f32 %v778, %v829
      %v842 = vmul.f32 %v779, %v831
      %v843 = vmul.f32 %v780, %v833
      %v844 = vmul.f32 %v781, %v835
      %v845 = vpack.c.bf16 %v837, %v836
      %v846 = vpack.c.bf16 %v839, %v838
      %v847 = vpack.c.bf16 %v841, %v840
      %v848 = vpack.c.bf16 %v843, %v842
      %v849 = vpack.c.bf16 %v844, %v844
      %v855 = vunpack.c.l.b16 %v845
      %v856 = vunpack.c.h.b16 %v845
      %v857 = vunpack.c.l.b16 %v846
      %v858 = vunpack.c.h.b16 %v846
      %v859 = vunpack.c.l.b16 %v847
      %v860 = vunpack.c.h.b16 %v847
      %v861 = vunpack.c.l.b16 %v848
      %v862 = vunpack.c.h.b16 %v848
      %v863 = vunpack.c.l.b16 %v849
      %v864 = vpack.c.b16 %v855, %v855
      %v865 = vpack.c.b16 %v856, %v856
      %v866 = vpack.c.b16 %v857, %v857
      %v867 = vpack.c.b16 %v858, %v858
      %v868 = vpack.c.b16 %v859, %v859
      %v869 = vpack.c.b16 %v860, %v860
      %v870 = vpack.c.b16 %v861, %v861
      %v871 = vpack.c.b16 %v862, %v862
      %v872 = vpack.c.b16 %v863, %v863
      %vm882 = vcmask 60416
      %883 = vst.msk [vmem:[%s170] sm:$0xf] %vm882, %v864
      %884 = vst.msk [vmem:[%s170 + $0x4] sm:$0xf] %vm882, %v865
      %885 = vst.msk [vmem:[%s170 + $0x8] sm:$0xf] %vm882, %v866
      %886 = vst.msk [vmem:[%s170 + $0xc] sm:$0xf] %vm882, %v867
      %887 = vst.msk [vmem:[%s170 + $0x10] sm:$0xf] %vm882, %v868
      %888 = vst.msk [vmem:[%s170 + $0x14] sm:$0xf] %vm882, %v869
      %889 = vst.msk [vmem:[%s170 + $0x18] sm:$0xf] %vm882, %v870
      %890 = vst.msk [vmem:[%s170 + $0x1c] sm:$0xf] %vm882, %v871
      %vm891 = vcmask 60416
      %vm892 = vsmask.f32 3328
      %vm893 = vmand %vm891, %vm892
      %v894 = vld [vmem:[%s170 + $0x20] sm:$0xf]
      %v895 = vsel %vm893, %v872, %v894
      %896 = vst [vmem:[%s170 + $0x20] sm:$0xf] %v895
      %p897 = scmp.lt.s32.totalorder %s14, 1
      %s898 = scalar_select %p897, %s14, 1
      %s899 = smul.addr %s898, 9
      %s900 = smul.addr %s899, 4
      %s901 = scalar_lea.vmem %s3, %s900
      // Predicated region
      $region33: #{yolo_forward.3} parent=31 // pred_check
        %p902 = pneg %p100
      $region34: #{yolo_forward.3} parent=31 // pred_check_branch
        %904 = sbr.rel (%p902) target = $region36
      $region35: #{yolo_forward.3} parent=31 // pred_region
        _
      $region36: #{yolo_forward.3} parent=31 // pred_fallthru
        _
    $region32: #{yolo_forward.3} parent=5 // pred_fallthru
      _
    %p905 = scmp.le.s32.totalorder 2, %s9
    // Predicated region
    $region37: #{yolo_forward.3} parent=5 // pred_check
      %p906 = pneg %p905
    $region38: #{yolo_forward.3} parent=5 // pred_check_branch
      %908 = sbr.rel (%p906) target = $region40
    $region39: #{yolo_forward.3} parent=5 // pred_region
      %s909 = ssub.s32 %s9, 2
      // Predicated region
      $region41: #{yolo_forward.3} parent=39 // pred_check
        %p910 = pneg %p106
      $region42: #{yolo_forward.3} parent=39 // pred_check_branch
        %912 = sbr.rel (%p910) target = $region44
      $region43: #{yolo_forward.3} parent=39 // pred_region
        %p913 = scmp.lt.s32.totalorder %s15, 1
        %s914 = scalar_select %p913, %s15, 1
        %s915 = smul.addr %s914, 9
        %s916 = smul.addr %s915, 4
        %s917 = scalar_lea.vmem %s3, %s916
      $region44: #{yolo_forward.3} parent=39 // pred_fallthru
        _
    $region40: #{yolo_forward.3} parent=5 // pred_fallthru
      _
  $region6: #{yolo_forward.3} parent=0 // loop_footer
    %s13 = sadd.s32 1, %s9
  $region7: #{yolo_forward.3} parent=0 // loop_footer_branch
    %8 = sbr.rel target = $region3
  $region8: #{yolo_forward.3} parent=0 // loop_exit
    _

// kernel: yolo_forward.4
$region0: #{yolo_forward.4}
  #allocation0 [shape = 'u32[]', space=smem, size = 0x4, offset = 0x4, fixed_abs, tag = 'smem constant byte address 0x4 - core index']
  #allocation1 [shape = 'u32[144,128]{1,0:T(1,128)}', space=vmem, size = 0x12000, scoped, tag = 'internal scratch']
  %s0 = inlined_call_operand.vmem [shape: bf16[2,25,32], index: 0, kind: input, shape index: {}]
  %s1 = inlined_call_operand.vmem [shape: bf16[4,32,16], index: 1, kind: input, shape index: {}]
  %s2 = inlined_call_operand.vmem [shape: f32[1,16], index: 2, kind: input, shape index: {}]
  %s3 = inlined_call_operand.vmem [shape: bf16[2,19,16], index: 3, kind: output, shape index: {}]
  %s4 = sld [smem:[#allocation0]]
  $region45: #{yolo_forward.4} parent=0
    _
  %s6 = ssub.s32 1, %s4
  %s7 = scalar_select 0, %s6, %s4
  loop: start=0, step=1, limit=4
  $region2: #{yolo_forward.4} parent=0 // loop_pre_header
    _
  $region3: #{yolo_forward.4} parent=0 // loop_header
    %s9 = sphi 0, %s13
    %p10 = scmp.ge.s32.totalorder %s9, 4
    %s19 = sphi 0, %s21
    %s22 = sphi 0, %s19
    %s23 = sphi 0, %s22
    %s39 = sphi 0, %s23
    %s43 = sphi 0, %s43
    %s45 = sphi 0, %s43
    %s46 = sphi 0, %s45
    %s60 = sphi 0, %s46
    %s64 = sphi 0, %s64
    %s66 = sphi 0, %s64
    %s67 = sphi 0, %s66
    %s81 = sphi 0, %s67
    %s87 = sphi 0, %s89
    %s90 = sphi 0, %s87
    %s91 = sphi 0, %s90
    %s107 = sphi 0, %s91
  $region4: #{yolo_forward.4} parent=0 // loop_header_branch
    %12 = sbr.rel (%p10) target = $region8
  $region5: #{yolo_forward.4} parent=0 // loop_body
    %s14 = ssub.s32 %s9, 1
    %s15 = ssub.s32 %s9, 2
    %s16 = sadd.s32 %s9, 1
    %s17 = ssub.s32 %s9, %s16
    %p18 = scmp.eq.s32.totalorder %s17, 0
    %s20 = sadd.s32 %s19, 1
    %s21 = scalar_select %p18, %s19, %s20
    %p24 = pneg %p18
    %p25 = scmp.eq.s32.totalorder %s9, 1
    %p26 = por %p24, %p25
    %p27 = scmp.ne.s32.totalorder %s19, %s22
    %p28 = scmp.eq.s32.totalorder %s9, 0
    %p29 = por %p27, %p28
    %p30 = scmp.ne.s32.totalorder %s19, %s22
    %p31 = scmp.eq.s32.totalorder %s14, 1
    %p32 = por %p30, %p31
    %p33 = scmp.ne.s32.totalorder %s22, %s23
    %p34 = scmp.eq.s32.totalorder %s14, 0
    %p35 = por %p33, %p34
    %p36 = scmp.ne.s32.totalorder %s22, %s23
    %p37 = scmp.eq.s32.totalorder %s15, 1
    %p38 = por %p36, %p37
    %p40 = scmp.ne.s32.totalorder %s23, %s39
    %p41 = scmp.eq.s32.totalorder %s15, 0
    %p42 = por %p40, %p41
    %s44 = sadd.s32 %s43, 1
    %p47 = scmp.eq.s32.totalorder %s9, 1
    %p48 = scmp.ne.s32.totalorder %s43, %s45
    %p49 = scmp.eq.s32.totalorder %s9, 0
    %p50 = por %p48, %p49
    %p51 = scmp.ne.s32.totalorder %s43, %s45
    %p52 = scmp.eq.s32.totalorder %s14, 1
    %p53 = por %p51, %p52
    %p54 = scmp.ne.s32.totalorder %s45, %s46
    %p55 = scmp.eq.s32.totalorder %s14, 0
    %p56 = por %p54, %p55
    %p57 = scmp.ne.s32.totalorder %s45, %s46
    %p58 = scmp.eq.s32.totalorder %s15, 1
    %p59 = por %p57, %p58
    %p61 = scmp.ne.s32.totalorder %s46, %s60
    %p62 = scmp.eq.s32.totalorder %s15, 0
    %p63 = por %p61, %p62
    %s65 = sadd.s32 %s64, 1
    %p68 = scmp.eq.s32.totalorder %s9, 1
    %p69 = scmp.ne.s32.totalorder %s64, %s66
    %p70 = scmp.eq.s32.totalorder %s9, 0
    %p71 = por %p69, %p70
    %p72 = scmp.ne.s32.totalorder %s64, %s66
    %p73 = scmp.eq.s32.totalorder %s14, 1
    %p74 = por %p72, %p73
    %p75 = scmp.ne.s32.totalorder %s66, %s67
    %p76 = scmp.eq.s32.totalorder %s14, 0
    %p77 = por %p75, %p76
    %p78 = scmp.ne.s32.totalorder %s66, %s67
    %p79 = scmp.eq.s32.totalorder %s15, 1
    %p80 = por %p78, %p79
    %p82 = scmp.ne.s32.totalorder %s67, %s81
    %p83 = scmp.eq.s32.totalorder %s15, 0
    %p84 = por %p82, %p83
    %s85 = ssub.s32 %s9, %s16
    %p86 = scmp.eq.s32.totalorder %s85, 0
    %s88 = sadd.s32 %s87, 1
    %s89 = scalar_select %p86, %s87, %s88
    %p92 = pneg %p86
    %p93 = scmp.eq.s32.totalorder %s9, 1
    %p94 = por %p92, %p93
    %p95 = scmp.ne.s32.totalorder %s87, %s90
    %p96 = scmp.eq.s32.totalorder %s9, 0
    %p97 = por %p95, %p96
    %p98 = scmp.ne.s32.totalorder %s87, %s90
    %p99 = scmp.eq.s32.totalorder %s14, 1
    %p100 = por %p98, %p99
    %p101 = scmp.ne.s32.totalorder %s90, %s91
    %p102 = scmp.eq.s32.totalorder %s14, 0
    %p103 = por %p101, %p102
    %p104 = scmp.ne.s32.totalorder %s90, %s91
    %p105 = scmp.eq.s32.totalorder %s15, 1
    %p106 = por %p104, %p105
    %p108 = scmp.ne.s32.totalorder %s91, %s107
    %p109 = scmp.eq.s32.totalorder %s15, 0
    %p110 = por %p108, %p109
    %p111 = scmp.le.s32.totalorder 1, %s9
    %p112 = scmp.lt.s32.totalorder %s9, 3
    %p113 = pnand %p111, %p112
    %p114 = pneg %p113
    // Predicated region
    $region9: #{yolo_forward.4} parent=5 // pred_check
      _
    $region10: #{yolo_forward.4} parent=5 // pred_check_branch
      %116 = sbr.rel (%p113) target = $region12
    $region11: #{yolo_forward.4} parent=5 // pred_region
      %s117 = ssub.s32 %s9, 1
      // Predicated region
      $region13: #{yolo_forward.4} parent=11 // pred_check
        %p118 = pneg %p56
      $region14: #{yolo_forward.4} parent=11 // pred_check_branch
        %120 = sbr.rel (%p118) target = $region16
      $region15: #{yolo_forward.4} parent=11 // pred_region
        _
      $region16: #{yolo_forward.4} parent=11 // pred_fallthru
        _
      // Predicated region
      $region17: #{yolo_forward.4} parent=11 // pred_check
        %p121 = pneg %p77
      $region18: #{yolo_forward.4} parent=11 // pred_check_branch
        %123 = sbr.rel (%p121) target = $region20
      $region19: #{yolo_forward.4} parent=11 // pred_region
        _
      $region20: #{yolo_forward.4} parent=11 // pred_fallthru
        _
    $region12: #{yolo_forward.4} parent=5 // pred_fallthru
      _
    %p124 = scmp.lt.s32.totalorder %s9, 2
    // Predicated region
    $region21: #{yolo_forward.4} parent=5 // pred_check
      %p125 = pneg %p124
    $region22: #{yolo_forward.4} parent=5 // pred_check_branch
      %127 = sbr.rel (%p125) target = $region24
    $region23: #{yolo_forward.4} parent=5 // pred_region
      // Predicated region
      $region25: #{yolo_forward.4} parent=23 // pred_check
        %p128 = pneg %p29
      $region26: #{yolo_forward.4} parent=23 // pred_check_branch
        %130 = sbr.rel (%p128) target = $region28
      $region27: #{yolo_forward.4} parent=23 // pred_region
        %p131 = scmp.lt.s32.totalorder %s9, 1
        %s132 = scalar_select %p131, %s9, 1
        %s133 = smul.addr %s132, 4
        %s134 = smul.addr %s133, 4
        %s135 = scalar_lea.vmem %s0, %s134
      $region28: #{yolo_forward.4} parent=23 // pred_fallthru
        _
    $region24: #{yolo_forward.4} parent=5 // pred_fallthru
      _
    %p136 = scmp.le.s32.totalorder 1, %s9
    %p137 = scmp.lt.s32.totalorder %s9, 3
    %p138 = pnand %p136, %p137
    %p139 = pneg %p138
    // Predicated region
    $region29: #{yolo_forward.4} parent=5 // pred_check
      _
    $region30: #{yolo_forward.4} parent=5 // pred_check_branch
      %141 = sbr.rel (%p138) target = $region32
    $region31: #{yolo_forward.4} parent=5 // pred_region
      %s142 = ssub.s32 %s9, 1
      %p143 = scmp.lt.s32.totalorder %s14, 1
      %s144 = scalar_select %p143, %s14, 1
      %s145 = smul.addr %s144, 4
      %s146 = smul.addr %s145, 4
      %s147 = scalar_lea.vmem %s0, %s146
      %p148 = pneg %p35
      %p149 = pneg %p32
      %p150 = pneg %p56
      %p151 = pneg %p53
      %p152 = pneg %p77
      %p153 = pneg %p74
      %p154 = pneg %p103
      %p155 = pneg %p100
      %p156 = scmp.lt.s32.totalorder %s14, 1
      %s157 = scalar_select %p156, %s14, 1
      %s158 = smul.addr %s157, 3
      %s159 = smul.addr %s158, 4
      %s160 = scalar_lea.vmem %s3, %s159
      %p161 = scmp.lt.s32.totalorder %s14, 1
      %s162 = scalar_select %p161, %s14, 1
      %s163 = smul.addr %s162, 4
      %s164 = smul.addr %s163, 4
      %s165 = scalar_lea.vmem %s0, %s164
      %p166 = scmp.lt.s32.totalorder %s14, 1
      %s167 = scalar_select %p166, %s14, 1
      %s168 = smul.addr %s167, 3
      %s169 = smul.addr %s168, 4
      %s170 = scalar_lea.vmem %s3, %s169
      %v172 = vld [vmem:[%s165] sm:$0xf]
      %v173 = vld [vmem:[%s165 + $0x4] sm:$0xf]
      %v174 = vld [vmem:[%s165 + $0x8] sm:$0x3]
      %v175 = vld [vmem:[%s1] sm:$0xf]
      %v176 = vld [vmem:[%s1 + $0x4] sm:$0xf]
      %v177 = vld [vmem:[%s1 + $0x8] sm:$0xf]
      %v178 = vld [vmem:[%s1 + $0xc] sm:$0xf]
      %s179 = scalar_lea.vmem %s1, 16
      %v180 = vld [vmem:[%s179] sm:$0xf]
      %v181 = vld [vmem:[%s179 + $0x4] sm:$0xf]
      %v182 = vld [vmem:[%s179 + $0x8] sm:$0xf]
      %v183 = vld [vmem:[%s179 + $0xc] sm:$0xf]
      %v187 = vunpack.c.l.b16 %v172
      %v188 = vunpack.c.l.b16 %v173
      %v189 = vunpack.c.l.b16 %v174
      %v190 = vpack.c.b16 %v188, %v187
      %v191 = vpack.c.b16 %v189, %v189
      %vm192 = vsmask.f32 7424
      %v194 = vshrl.u32 %v190, 16
      %v196 = vshll.u32 %v190, 16
      %v198 = vrot.slane %v196, 1
      %v199 = vor.u32 %v194, %v198
      %v201 = vshll.u32 %v191, 16
      %v203 = vrot.slane %v201, 1
      %v204 = vsel %vm192, %v199, %v203
      %v205 = vshrl.u32 %v191, 16
      %v207 = vor.u32 %v205, %v203
      %v212 = vunpack.c.l.b16 %v180
      %v213 = vunpack.c.l.b16 %v181
      %v214 = vunpack.c.l.b16 %v182
      %v215 = vunpack.c.l.b16 %v183
      %v216 = vpack.c.b16 %v213, %v212
      %v217 = vpack.c.b16 %v215, %v214
      %vm220 = vcmask 261120
      %v222 = vsel %vm220, %v204, 0
      %v225 = vsel %vm220, %v207, 0
      %227 = vmatprep.subr.bf16.mxu0 0
      %228 = vmatpush1.bf16.msra.mxu0 %v216
      %229 = vmatprep.subr.bf16.mxu0 0
      %230 = vmatpush1.bf16.msra.mxu0 %v217
      %231 = vmatprep.subr.bf16.mxu0 0
      %232 = vmatpush1.bf16.msra.mxu0 0
      %233 = vmatprep.subr.bf16.mxu0 0
      %234 = vmatpush1.bf16.msra.mxu0 0
      %235 = vmatprep.subr.bf16.mxu0 0
      %236 = vmatpush1.bf16.msra.mxu0 0
      %237 = vmatprep.subr.bf16.mxu0 0
      %238 = vmatpush1.bf16.msra.mxu0 0
      %239 = vmatprep.subr.bf16.mxu0 0
      %240 = vmatpush1.bf16.msra.mxu0 0
      %241 = vmatprep.subr.bf16.mxu0 0
      %242 = vmatpush1.bf16.msra.mxu0 0
      %243 = vmatprep.subr.bf16.mxu0 0
      %244 = vmatpush1.bf16.msra.mxu0 0
      %245 = vmatprep.subr.bf16.mxu0 0
      %246 = vmatpush1.bf16.msra.mxu0 0
      %247 = vmatprep.subr.bf16.mxu0 0
      %248 = vmatpush1.bf16.msra.mxu0 0
      %249 = vmatprep.subr.bf16.mxu0 0
      %250 = vmatpush1.bf16.msra.mxu0 0
      %251 = vmatprep.subr.bf16.mxu0 0
      %252 = vmatpush1.bf16.msra.mxu0 0
      %253 = vmatprep.subr.bf16.mxu0 0
      %254 = vmatpush1.bf16.msra.mxu0 0
      %255 = vmatprep.subr.bf16.mxu0 0
      %256 = vmatpush1.bf16.msra.mxu0 0
      %257 = vmatprep.subr.bf16.mxu0 0
      %258 = vmatpush1.bf16.msra.mxu0 0
      %259 = vmatprep.mubr.bf16.mxu0 0
      %260 = vmatmul.mubr.bf16.gmra.mrb[0].mxu0 %v222
      %v261 = vpop.f32.mrb[0].mxu0
      %v262 = vadd.f32 0.0, %v261
      %v263 = vpop.f32.mrb[0].mxu0
      %v264 = vpop.f32.mrb[0].mxu0
      %v265 = vadd.f32 0.0, %v264
      %v266 = vpop.f32.mrb[0].mxu0
      %267 = vmatprep.mubr.bf16.mxu0 0
      %268 = vmatmul.mubr.bf16.gmra.mrb[0].mxu0 %v225
      %v269 = vpop.f32.mrb[0].mxu0
      %v270 = vadd.f32 0.0, %v269
      %v271 = vpop.f32.mrb[0].mxu0
      %v272 = vpop.f32.mrb[0].mxu0
      %v273 = vpop.f32.mrb[0].mxu0
      %274 = vdwg.mxu0
      %v279 = vunpack.c.l.b16 %v175
      %v280 = vunpack.c.l.b16 %v176
      %v281 = vunpack.c.l.b16 %v177
      %v282 = vunpack.c.l.b16 %v178
      %v283 = vpack.c.b16 %v280, %v279
      %v284 = vpack.c.b16 %v282, %v281
      %v287 = vsel %vm220, %v190, 0
      %v289 = vsel %vm220, %v191, 0
      %291 = vmatprep.subr.bf16.mxu0 0
      %292 = vmatpush1.bf16.msra.mxu0 %v283
      %293 = vmatprep.subr.bf16.mxu0 0
      %294 = vmatpush1.bf16.msra.mxu0 %v284
      %295 = vmatprep.subr.bf16.mxu0 0
      %296 = vmatpush1.bf16.msra.mxu0 0
      %297 = vmatprep.subr.bf16.mxu0 0
      %298 = vmatpush1.bf16.msra.mxu0 0
      %299 = vmatprep.subr.bf16.mxu0 0
      %300 = vmatpush1.bf16.msra.mxu0 0
      %301 = vmatprep.subr.bf16.mxu0 0
      %302 = vmatpush1.bf16.msra.mxu0 0
      %303 = vmatprep.subr.bf16.mxu0 0
      %304 = vmatpush1.bf16.msra.mxu0 0
      %305 = vmatprep.subr.bf16.mxu0 0
      %306 = vmatpush1.bf16.msra.mxu0 0
      %307 = vmatprep.subr.bf16.mxu0 0
      %308 = vmatpush1.bf16.msra.mxu0 0
      %309 = vmatprep.subr.bf16.mxu0 0
      %310 = vmatpush1.bf16.msra.mxu0 0
      %311 = vmatprep.subr.bf16.mxu0 0
      %312 = vmatpush1.bf16.msra.mxu0 0
      %313 = vmatprep.subr.bf16.mxu0 0
      %314 = vmatpush1.bf16.msra.mxu0 0
      %315 = vmatprep.subr.bf16.mxu0 0
      %316 = vmatpush1.bf16.msra.mxu0 0
      %317 = vmatprep.subr.bf16.mxu0 0
      %318 = vmatpush1.bf16.msra.mxu0 0
      %319 = vmatprep.subr.bf16.mxu0 0
      %320 = vmatpush1.bf16.msra.mxu0 0
      %321 = vmatprep.subr.bf16.mxu0 0
      %322 = vmatpush1.bf16.msra.mxu0 0
      %323 = vmatprep.mubr.bf16.mxu0 0
      %324 = vmatmul.mubr.bf16.gmra.mrb[0].mxu0 %v287
      %v325 = vpop.f32.mrb[0].mxu0
      %v326 = vadd.f32 %v262, %v325
      %v327 = vpop.f32.mrb[0].mxu0
      %v328 = vpop.f32.mrb[0].mxu0
      %v329 = vadd.f32 %v265, %v328
      %v330 = vpop.f32.mrb[0].mxu0
      %331 = vmatprep.mubr.bf16.mxu0 0
      %332 = vmatmul.mubr.bf16.gmra.mrb[0].mxu0 %v289
      %v333 = vpop.f32.mrb[0].mxu0
      %v334 = vadd.f32 %v270, %v333
      %v335 = vpop.f32.mrb[0].mxu0
      %v336 = vpop.f32.mrb[0].mxu0
      %v337 = vpop.f32.mrb[0].mxu0
      %338 = vdwg.mxu0
      %v339 = vld [vmem:[%s165] sm:$0xc]
      %v340 = vld [vmem:[%s165 + $0x8] sm:$0xf]
      %s341 = scalar_lea.vmem %s1, 32
      %v342 = vld [vmem:[%s341] sm:$0xf]
      %v343 = vld [vmem:[%s341 + $0x4] sm:$0xf]
      %v344 = vld [vmem:[%s341 + $0x8] sm:$0xf]
      %v345 = vld [vmem:[%s341 + $0xc] sm:$0xf]
      %v348 = vunpack.c.l.b16 %v339
      %v349 = vunpack.c.l.b16 %v340
      %v350 = vpack.c.b16 %v188, %v348
      %v351 = vpack.c.b16 %v349, %v349
      %vm352 = vsmask.f32 5376
      %v354 = vshrl.u32 %v350, 16
      %v356 = vrot.slane %v354, 2
      %v357 = vshll.u32 %v350, 16
      %v359 = vrot.slane %v357, 3
      %v360 = vor.u32 %v356, %v359
      %v362 = vshrl.u32 %v351, 16
      %v364 = vrot.slane %v362, 2
      %v365 = vshll.u32 %v351, 16
      %v367 = vrot.slane %v365, 3
      %v368 = vor.u32 %v364, %v367
      %v369 = vsel %vm352, %v360, %v368
      %v374 = vunpack.c.l.b16 %v342
      %v375 = vunpack.c.l.b16 %v343
      %v376 = vunpack.c.l.b16 %v344
      %v377 = vunpack.c.l.b16 %v345
      %v378 = vpack.c.b16 %v375, %v374
      %v379 = vpack.c.b16 %v377, %v376
      %v383 = vsel %vm220, %v369, 0
      %v386 = vsel %vm220, %v368, 0
      %388 = vmatprep.subr.bf16.mxu0 0
      %389 = vmatpush1.bf16.msra.mxu0 %v378
      %390 = vmatprep.subr.bf16.mxu0 0
      %391 = vmatpush1.bf16.msra.mxu0 %v379
      %392 = vmatprep.subr.bf16.mxu0 0
      %393 = vmatpush1.bf16.msra.mxu0 0
      %394 = vmatprep.subr.bf16.mxu0 0
      %395 = vmatpush1.bf16.msra.mxu0 0
      %396 = vmatprep.subr.bf16.mxu0 0
      %397 = vmatpush1.bf16.msra.mxu0 0
      %398 = vmatprep.subr.bf16.mxu0 0
      %399 = vmatpush1.bf16.msra.mxu0 0
      %400 = vmatprep.subr.bf16.mxu0 0
      %401 = vmatpush1.bf16.msra.mxu0 0
      %402 = vmatprep.subr.bf16.mxu0 0
      %403 = vmatpush1.bf16.msra.mxu0 0
      %404 = vmatprep.subr.bf16.mxu0 0
      %405 = vmatpush1.bf16.msra.mxu0 0
      %406 = vmatprep.subr.bf16.mxu0 0
      %407 = vmatpush1.bf16.msra.mxu0 0
      %408 = vmatprep.subr.bf16.mxu0 0
      %409 = vmatpush1.bf16.msra.mxu0 0
      %410 = vmatprep.subr.bf16.mxu0 0
      %411 = vmatpush1.bf16.msra.mxu0 0
      %412 = vmatprep.subr.bf16.mxu0 0
      %413 = vmatpush1.bf16.msra.mxu0 0
      %414 = vmatprep.subr.bf16.mxu0 0
      %415 = vmatpush1.bf16.msra.mxu0 0
      %416 = vmatprep.subr.bf16.mxu0 0
      %417 = vmatpush1.bf16.msra.mxu0 0
      %418 = vmatprep.subr.bf16.mxu0 0
      %419 = vmatpush1.bf16.msra.mxu0 0
      %420 = vmatprep.mubr.bf16.mxu0 0
      %421 = vmatmul.mubr.bf16.gmra.mrb[0].mxu0 %v383
      %v422 = vpop.f32.mrb[0].mxu0
      %v423 = vadd.f32 0.0, %v422
      %v424 = vpop.f32.mrb[0].mxu0
      %v425 = vpop.f32.mrb[0].mxu0
      %v426 = vadd.f32 0.0, %v425
      %v427 = vpop.f32.mrb[0].mxu0
      %428 = vmatprep.mubr.bf16.mxu0 0
      %429 = vmatmul.mubr.bf16.gmra.mrb[0].mxu0 %v386
      %v430 = vpop.f32.mrb[0].mxu0
      %v431 = vadd.f32 0.0, %v430
      %v432 = vpop.f32.mrb[0].mxu0
      %v433 = vpop.f32.mrb[0].mxu0
      %v434 = vpop.f32.mrb[0].mxu0
      %435 = vdwg.mxu0
      %v436 = vadd.f32 %v326, %v423
      %v437 = vadd.f32 %v329, %v426
      %v438 = vadd.f32 %v334, %v431
      %v439 = vld [vmem:[%s165] sm:$0x8]
      %v440 = vld [vmem:[%s165 + $0x4] sm:$0xf]
      %v441 = vld [vmem:[%s165 + $0x8] sm:$0xf]
      %v442 = vld [vmem:[%s165 + $0xc] sm:$0x1]
      %s443 = scalar_lea.vmem %s1, 48
      %v444 = vld [vmem:[%s443] sm:$0xf]
      %v445 = vld [vmem:[%s443 + $0x4] sm:$0xf]
      %v446 = vld [vmem:[%s443 + $0x8] sm:$0xf]
      %v447 = vld [vmem:[%s443 + $0xc] sm:$0xf]
      %v452 = vunpack.c.l.b16 %v439
      %v453 = vunpack.c.l.b16 %v440
      %v454 = vunpack.c.l.b16 %v441
      %v455 = vunpack.c.l.b16 %v442
      %v456 = vpack.c.b16 %v453, %v452
      %v457 = vpack.c.b16 %v455, %v454
      %vm458 = vcmask 1044480
      %v459 = vrot.slane %v456, 3
      %v460 = vrot.slane %v457, 3
      %v461 = vsel %vm458, %v459, %v460
      %v466 = vunpack.c.l.b16 %v444
      %v467 = vunpack.c.l.b16 %v445
      %v468 = vunpack.c.l.b16 %v446
      %v469 = vunpack.c.l.b16 %v447
      %v470 = vpack.c.b16 %v467, %v466
      %v471 = vpack.c.b16 %v469, %v468
      %v475 = vsel %vm220, %v461, 0
      %v478 = vsel %vm220, %v460, 0
      %480 = vmatprep.subr.bf16.mxu0 0
      %481 = vmatpush1.bf16.msra.mxu0 %v470
      %482 = vmatprep.subr.bf16.mxu0 0
      %483 = vmatpush1.bf16.msra.mxu0 %v471
      %484 = vmatprep.subr.bf16.mxu0 0
      %485 = vmatpush1.bf16.msra.mxu0 0
      %486 = vmatprep.subr.bf16.mxu0 0
      %487 = vmatpush1.bf16.msra.mxu0 0
      %488 = vmatprep.subr.bf16.mxu0 0
      %489 = vmatpush1.bf16.msra.mxu0 0
      %490 = vmatprep.subr.bf16.mxu0 0
      %491 = vmatpush1.bf16.msra.mxu0 0
      %492 = vmatprep.subr.bf16.mxu0 0
      %493 = vmatpush1.bf16.msra.mxu0 0
      %494 = vmatprep.subr.bf16.mxu0 0
      %495 = vmatpush1.bf16.msra.mxu0 0
      %496 = vmatprep.subr.bf16.mxu0 0
      %497 = vmatpush1.bf16.msra.mxu0 0
      %498 = vmatprep.subr.bf16.mxu0 0
      %499 = vmatpush1.bf16.msra.mxu0 0
      %500 = vmatprep.subr.bf16.mxu0 0
      %501 = vmatpush1.bf16.msra.mxu0 0
      %502 = vmatprep.subr.bf16.mxu0 0
      %503 = vmatpush1.bf16.msra.mxu0 0
      %504 = vmatprep.subr.bf16.mxu0 0
      %505 = vmatpush1.bf16.msra.mxu0 0
      %506 = vmatprep.subr.bf16.mxu0 0
      %507 = vmatpush1.bf16.msra.mxu0 0
      %508 = vmatprep.subr.bf16.mxu0 0
      %509 = vmatpush1.bf16.msra.mxu0 0
      %510 = vmatprep.subr.bf16.mxu0 0
      %511 = vmatpush1.bf16.msra.mxu0 0
      %512 = vmatprep.mubr.bf16.mxu0 0
      %513 = vmatmul.mubr.bf16.gmra.mrb[0].mxu0 %v475
      %v514 = vpop.f32.mrb[0].mxu0
      %v515 = vadd.f32 0.0, %v514
      %v516 = vpop.f32.mrb[0].mxu0
      %v517 = vpop.f32.mrb[0].mxu0
      %v518 = vadd.f32 0.0, %v517
      %v519 = vpop.f32.mrb[0].mxu0
      %520 = vmatprep.mubr.bf16.mxu0 0
      %521 = vmatmul.mubr.bf16.gmra.mrb[0].mxu0 %v478
      %v522 = vpop.f32.mrb[0].mxu0
      %v523 = vadd.f32 0.0, %v522
      %v524 = vpop.f32.mrb[0].mxu0
      %v525 = vpop.f32.mrb[0].mxu0
      %v526 = vpop.f32.mrb[0].mxu0
      %527 = vdwg.mxu0
      %v528 = vadd.f32 %v436, %v515
      %v529 = vadd.f32 %v437, %v518
      %v530 = vadd.f32 %v438, %v523
      %v531 = vld [vmem:[%s2] sm:$0x1]
      %v533 = vlaneseq
      %v534 = vshrl.u32 %v533, 7
      %v535 = vsub.s32 0, %v534
      %v536 = vrot.slane %v531, %v535
      %v538 = vadd.f32 %v528, %v536
      %v539 = vadd.f32 %v529, %v536
      %v540 = vadd.f32 %v530, %v536
      %v541 = vxor.u32 %v538, 2147483648
      %v542 = vxor.u32 %v539, 2147483648
      %v543 = vxor.u32 %v540, 2147483648
      %v544 = vmul.f32 %v541, 1.442695
      %v545 = vpow.pop %v544
      %v546 = vmul.f32 %v542, 1.442695
      %v547 = vpow.pop %v546
      %v548 = vmul.f32 %v543, 1.442695
      %v549 = vpow.pop %v548
      %v550 = vadd.f32 %v545, 1.0
      %v551 = vadd.f32 %v547, 1.0
      %v552 = vadd.f32 %v549, 1.0
      %v553 = vrcp.pop %v550
      %v554 = vmul.f32 1.0, %v553
      %v555 = vrcp.pop %v551
      %v556 = vmul.f32 1.0, %v555
      %v557 = vrcp.pop %v552
      %v558 = vmul.f32 1.0, %v557
      %v559 = vmul.f32 %v538, %v554
      %v560 = vmul.f32 %v539, %v556
      %v561 = vmul.f32 %v540, %v558
      %v562 = vpack.c.bf16 %v560, %v559
      %v563 = vpack.c.bf16 %v561, %v561
      %v566 = vunpack.c.l.b16 %v562
      %v567 = vunpack.c.h.b16 %v562
      %v568 = vunpack.c.l.b16 %v563
      %v569 = vpack.c.b16 %v566, %v566
      %v570 = vpack.c.b16 %v567, %v567
      %v571 = vpack.c.b16 %v568, %v568
      %vm575 = vcmask 125952
      %576 = vst.msk [vmem:[%s170] sm:$0xf] %vm575, %v569
      %577 = vst.msk [vmem:[%s170 + $0x4] sm:$0xf] %vm575, %v570
      %vm578 = vcmask 123904
      %vm579 = vsmask.f32 1280
      %vm580 = vmand %vm578, %vm579
      %v581 = vld [vmem:[%s170 + $0x8] sm:$0x3]
      %v582 = vsel %vm580, %v571, %v581
      %583 = vst [vmem:[%s170 + $0x8] sm:$0x3] %v582
      %p584 = scmp.lt.s32.totalorder %s14, 1
      %s585 = scalar_select %p584, %s14, 1
      %s586 = smul.addr %s585, 3
      %s587 = smul.addr %s586, 4
      %s588 = scalar_lea.vmem %s3, %s587
      // Predicated region
      $region33: #{yolo_forward.4} parent=31 // pred_check
        %p589 = pneg %p100
      $region34: #{yolo_forward.4} parent=31 // pred_check_branch
        %591 = sbr.rel (%p589) target = $region36
      $region35: #{yolo_forward.4} parent=31 // pred_region
        _
      $region36: #{yolo_forward.4} parent=31 // pred_fallthru
        _
    $region32: #{yolo_forward.4} parent=5 // pred_fallthru
      _
    %p592 = scmp.le.s32.totalorder 2, %s9
    // Predicated region
    $region37: #{yolo_forward.4} parent=5 // pred_check
      %p593 = pneg %p592
    $region38: #{yolo_forward.4} parent=5 // pred_check_branch
      %595 = sbr.rel (%p593) target = $region40
    $region39: #{yolo_forward.4} parent=5 // pred_region
      %s596 = ssub.s32 %s9, 2
      // Predicated region
      $region41: #{yolo_forward.4} parent=39 // pred_check
        %p597 = pneg %p106
      $region42: #{yolo_forward.4} parent=39 // pred_check_branch
        %599 = sbr.rel (%p597) target = $region44
      $region43: #{yolo_forward.4} parent=39 // pred_region
        %p600 = scmp.lt.s32.totalorder %s15, 1
        %s601 = scalar_select %p600, %s15, 1
        %s602 = smul.addr %s601, 3
        %s603 = smul.addr %s602, 4
        %s604 = scalar_lea.vmem %s3, %s603
      $region44: #{yolo_forward.4} parent=39 // pred_fallthru
        _
    $region40: #{yolo_forward.4} parent=5 // pred_fallthru
      _
  $region6: #{yolo_forward.4} parent=0 // loop_footer
    %s13 = sadd.s32 1, %s9
  $region7: #{yolo_forward.4} parent=0 // loop_footer_branch
    %8 = sbr.rel target = $region3
  $region8: #{yolo_forward.4} parent=0 // loop_exit
    _

// kernel: yolo_forward.4
$region0: #{yolo_forward.4}
  #allocation0 [shape = 'u32[]', space=smem, size = 0x4, offset = 0x4, fixed_abs, tag = 'smem constant byte address 0x4 - core index']
  #allocation1 [shape = 'u32[144,128]{1,0:T(1,128)}', space=vmem, size = 0x12000, scoped, tag = 'internal scratch']
  %s0 = inlined_call_operand.vmem [shape: bf16[2,25,32], index: 0, kind: input, shape index: {}]
  %s1 = inlined_call_operand.vmem [shape: bf16[4,32,16], index: 1, kind: input, shape index: {}]
  %s2 = inlined_call_operand.vmem [shape: f32[1,16], index: 2, kind: input, shape index: {}]
  %s3 = inlined_call_operand.vmem [shape: bf16[2,19,16], index: 3, kind: output, shape index: {}]
  %s4 = sld [smem:[#allocation0]]
  $region45: #{yolo_forward.4} parent=0
    _
  %s6 = ssub.s32 1, %s4
  %s7 = scalar_select 0, %s6, %s4
  loop: start=0, step=1, limit=4
  $region2: #{yolo_forward.4} parent=0 // loop_pre_header
    _
  $region3: #{yolo_forward.4} parent=0 // loop_header
    %s9 = sphi 0, %s13
    %p10 = scmp.ge.s32.totalorder %s9, 4
    %s19 = sphi 0, %s21
    %s22 = sphi 0, %s19
    %s23 = sphi 0, %s22
    %s39 = sphi 0, %s23
    %s43 = sphi 0, %s43
    %s45 = sphi 0, %s43
    %s46 = sphi 0, %s45
    %s60 = sphi 0, %s46
    %s64 = sphi 0, %s64
    %s66 = sphi 0, %s64
    %s67 = sphi 0, %s66
    %s81 = sphi 0, %s67
    %s87 = sphi 0, %s89
    %s90 = sphi 0, %s87
    %s91 = sphi 0, %s90
    %s107 = sphi 0, %s91
  $region4: #{yolo_forward.4} parent=0 // loop_header_branch
    %12 = sbr.rel (%p10) target = $region8
  $region5: #{yolo_forward.4} parent=0 // loop_body
    %s14 = ssub.s32 %s9, 1
    %s15 = ssub.s32 %s9, 2
    %s16 = sadd.s32 %s9, 1
    %s17 = ssub.s32 %s9, %s16
    %p18 = scmp.eq.s32.totalorder %s17, 0
    %s20 = sadd.s32 %s19, 1
    %s21 = scalar_select %p18, %s19, %s20
    %p24 = pneg %p18
    %p25 = scmp.eq.s32.totalorder %s9, 1
    %p26 = por %p24, %p25
    %p27 = scmp.ne.s32.totalorder %s19, %s22
    %p28 = scmp.eq.s32.totalorder %s9, 0
    %p29 = por %p27, %p28
    %p30 = scmp.ne.s32.totalorder %s19, %s22
    %p31 = scmp.eq.s32.totalorder %s14, 1
    %p32 = por %p30, %p31
    %p33 = scmp.ne.s32.totalorder %s22, %s23
    %p34 = scmp.eq.s32.totalorder %s14, 0
    %p35 = por %p33, %p34
    %p36 = scmp.ne.s32.totalorder %s22, %s23
    %p37 = scmp.eq.s32.totalorder %s15, 1
    %p38 = por %p36, %p37
    %p40 = scmp.ne.s32.totalorder %s23, %s39
    %p41 = scmp.eq.s32.totalorder %s15, 0
    %p42 = por %p40, %p41
    %s44 = sadd.s32 %s43, 1
    %p47 = scmp.eq.s32.totalorder %s9, 1
    %p48 = scmp.ne.s32.totalorder %s43, %s45
    %p49 = scmp.eq.s32.totalorder %s9, 0
    %p50 = por %p48, %p49
    %p51 = scmp.ne.s32.totalorder %s43, %s45
    %p52 = scmp.eq.s32.totalorder %s14, 1
    %p53 = por %p51, %p52
    %p54 = scmp.ne.s32.totalorder %s45, %s46
    %p55 = scmp.eq.s32.totalorder %s14, 0
    %p56 = por %p54, %p55
    %p57 = scmp.ne.s32.totalorder %s45, %s46
    %p58 = scmp.eq.s32.totalorder %s15, 1
    %p59 = por %p57, %p58
    %p61 = scmp.ne.s32.totalorder %s46, %s60
    %p62 = scmp.eq.s32.totalorder %s15, 0
    %p63 = por %p61, %p62
    %s65 = sadd.s32 %s64, 1
    %p68 = scmp.eq.s32.totalorder %s9, 1
    %p69 = scmp.ne.s32.totalorder %s64, %s66
    %p70 = scmp.eq.s32.totalorder %s9, 0
    %p71 = por %p69, %p70
    %p72 = scmp.ne.s32.totalorder %s64, %s66
    %p73 = scmp.eq.s32.totalorder %s14, 1
    %p74 = por %p72, %p73
    %p75 = scmp.ne.s32.totalorder %s66, %s67
    %p76 = scmp.eq.s32.totalorder %s14, 0
    %p77 = por %p75, %p76
    %p78 = scmp.ne.s32.totalorder %s66, %s67
    %p79 = scmp.eq.s32.totalorder %s15, 1
    %p80 = por %p78, %p79
    %p82 = scmp.ne.s32.totalorder %s67, %s81
    %p83 = scmp.eq.s32.totalorder %s15, 0
    %p84 = por %p82, %p83
    %s85 = ssub.s32 %s9, %s16
    %p86 = scmp.eq.s32.totalorder %s85, 0
    %s88 = sadd.s32 %s87, 1
    %s89 = scalar_select %p86, %s87, %s88
    %p92 = pneg %p86
    %p93 = scmp.eq.s32.totalorder %s9, 1
    %p94 = por %p92, %p93
    %p95 = scmp.ne.s32.totalorder %s87, %s90
    %p96 = scmp.eq.s32.totalorder %s9, 0
    %p97 = por %p95, %p96
    %p98 = scmp.ne.s32.totalorder %s87, %s90
    %p99 = scmp.eq.s32.totalorder %s14, 1
    %p100 = por %p98, %p99
    %p101 = scmp.ne.s32.totalorder %s90, %s91
    %p102 = scmp.eq.s32.totalorder %s14, 0
    %p103 = por %p101, %p102
    %p104 = scmp.ne.s32.totalorder %s90, %s91
    %p105 = scmp.eq.s32.totalorder %s15, 1
    %p106 = por %p104, %p105
    %p108 = scmp.ne.s32.totalorder %s91, %s107
    %p109 = scmp.eq.s32.totalorder %s15, 0
    %p110 = por %p108, %p109
    %p111 = scmp.le.s32.totalorder 1, %s9
    %p112 = scmp.lt.s32.totalorder %s9, 3
    %p113 = pnand %p111, %p112
    %p114 = pneg %p113
    // Predicated region
    $region9: #{yolo_forward.4} parent=5 // pred_check
      _
    $region10: #{yolo_forward.4} parent=5 // pred_check_branch
      %116 = sbr.rel (%p113) target = $region12
    $region11: #{yolo_forward.4} parent=5 // pred_region
      %s117 = ssub.s32 %s9, 1
      // Predicated region
      $region13: #{yolo_forward.4} parent=11 // pred_check
        %p118 = pneg %p56
      $region14: #{yolo_forward.4} parent=11 // pred_check_branch
        %120 = sbr.rel (%p118) target = $region16
      $region15: #{yolo_forward.4} parent=11 // pred_region
        _
      $region16: #{yolo_forward.4} parent=11 // pred_fallthru
        _
      // Predicated region
      $region17: #{yolo_forward.4} parent=11 // pred_check
        %p121 = pneg %p77
      $region18: #{yolo_forward.4} parent=11 // pred_check_branch
        %123 = sbr.rel (%p121) target = $region20
      $region19: #{yolo_forward.4} parent=11 // pred_region
        _
      $region20: #{yolo_forward.4} parent=11 // pred_fallthru
        _
    $region12: #{yolo_forward.4} parent=5 // pred_fallthru
      _
    %p124 = scmp.lt.s32.totalorder %s9, 2
    // Predicated region
    $region21: #{yolo_forward.4} parent=5 // pred_check
      %p125 = pneg %p124
    $region22: #{yolo_forward.4} parent=5 // pred_check_branch
      %127 = sbr.rel (%p125) target = $region24
    $region23: #{yolo_forward.4} parent=5 // pred_region
      // Predicated region
      $region25: #{yolo_forward.4} parent=23 // pred_check
        %p128 = pneg %p29
      $region26: #{yolo_forward.4} parent=23 // pred_check_branch
        %130 = sbr.rel (%p128) target = $region28
      $region27: #{yolo_forward.4} parent=23 // pred_region
        %p131 = scmp.lt.s32.totalorder %s9, 1
        %s132 = scalar_select %p131, %s9, 1
        %s133 = smul.addr %s132, 4
        %s134 = smul.addr %s133, 4
        %s135 = scalar_lea.vmem %s0, %s134
      $region28: #{yolo_forward.4} parent=23 // pred_fallthru
        _
    $region24: #{yolo_forward.4} parent=5 // pred_fallthru
      _
    %p136 = scmp.le.s32.totalorder 1, %s9
    %p137 = scmp.lt.s32.totalorder %s9, 3
    %p138 = pnand %p136, %p137
    %p139 = pneg %p138
    // Predicated region
    $region29: #{yolo_forward.4} parent=5 // pred_check
      _
    $region30: #{yolo_forward.4} parent=5 // pred_check_branch
      %141 = sbr.rel (%p138) target = $region32
    $region31: #{yolo_forward.4} parent=5 // pred_region
      %s142 = ssub.s32 %s9, 1
      %p143 = scmp.lt.s32.totalorder %s14, 1
      %s144 = scalar_select %p143, %s14, 1
      %s145 = smul.addr %s144, 4
      %s146 = smul.addr %s145, 4
      %s147 = scalar_lea.vmem %s0, %s146
      %p148 = pneg %p35
      %p149 = pneg %p32
      %p150 = pneg %p56
      %p151 = pneg %p53
      %p152 = pneg %p77
      %p153 = pneg %p74
      %p154 = pneg %p103
      %p155 = pneg %p100
      %p156 = scmp.lt.s32.totalorder %s14, 1
      %s157 = scalar_select %p156, %s14, 1
      %s158 = smul.addr %s157, 3
      %s159 = smul.addr %s158, 4
      %s160 = scalar_lea.vmem %s3, %s159
      %p161 = scmp.lt.s32.totalorder %s14, 1
      %s162 = scalar_select %p161, %s14, 1
      %s163 = smul.addr %s162, 4
      %s164 = smul.addr %s163, 4
      %s165 = scalar_lea.vmem %s0, %s164
      %p166 = scmp.lt.s32.totalorder %s14, 1
      %s167 = scalar_select %p166, %s14, 1
      %s168 = smul.addr %s167, 3
      %s169 = smul.addr %s168, 4
      %s170 = scalar_lea.vmem %s3, %s169
      %v172 = vld [vmem:[%s165] sm:$0xf]
      %v173 = vld [vmem:[%s165 + $0x4] sm:$0xf]
      %v174 = vld [vmem:[%s165 + $0x8] sm:$0x3]
      %v175 = vld [vmem:[%s1] sm:$0xf]
      %v176 = vld [vmem:[%s1 + $0x4] sm:$0xf]
      %v177 = vld [vmem:[%s1 + $0x8] sm:$0xf]
      %v178 = vld [vmem:[%s1 + $0xc] sm:$0xf]
      %s179 = scalar_lea.vmem %s1, 16
      %v180 = vld [vmem:[%s179] sm:$0xf]
      %v181 = vld [vmem:[%s179 + $0x4] sm:$0xf]
      %v182 = vld [vmem:[%s179 + $0x8] sm:$0xf]
      %v183 = vld [vmem:[%s179 + $0xc] sm:$0xf]
      %v187 = vunpack.c.l.b16 %v172
      %v188 = vunpack.c.l.b16 %v173
      %v189 = vunpack.c.l.b16 %v174
      %v190 = vpack.c.b16 %v188, %v187
      %v191 = vpack.c.b16 %v189, %v189
      %vm192 = vsmask.f32 7424
      %v194 = vshrl.u32 %v190, 16
      %v196 = vshll.u32 %v190, 16
      %v198 = vrot.slane %v196, 1
      %v199 = vor.u32 %v194, %v198
      %v201 = vshll.u32 %v191, 16
      %v203 = vrot.slane %v201, 1
      %v204 = vsel %vm192, %v199, %v203
      %v205 = vshrl.u32 %v191, 16
      %v207 = vor.u32 %v205, %v203
      %v212 = vunpack.c.l.b16 %v180
      %v213 = vunpack.c.l.b16 %v181
      %v214 = vunpack.c.l.b16 %v182
      %v215 = vunpack.c.l.b16 %v183
      %v216 = vpack.c.b16 %v213, %v212
      %v217 = vpack.c.b16 %v215, %v214
      %vm220 = vcmask 261120
      %v222 = vsel %vm220, %v204, 0
      %v225 = vsel %vm220, %v207, 0
      %227 = vmatprep.subr.bf16.mxu0 0
      %228 = vmatpush1.bf16.msra.mxu0 %v216
      %229 = vmatprep.subr.bf16.mxu0 0
      %230 = vmatpush1.bf16.msra.mxu0 %v217
      %231 = vmatprep.subr.bf16.mxu0 0
      %232 = vmatpush1.bf16.msra.mxu0 0
      %233 = vmatprep.subr.bf16.mxu0 0
      %234 = vmatpush1.bf16.msra.mxu0 0
      %235 = vmatprep.subr.bf16.mxu0 0
      %236 = vmatpush1.bf16.msra.mxu0 0
      %237 = vmatprep.subr.bf16.mxu0 0
      %238 = vmatpush1.bf16.msra.mxu0 0
      %239 = vmatprep.subr.bf16.mxu0 0
      %240 = vmatpush1.bf16.msra.mxu0 0
      %241 = vmatprep.subr.bf16.mxu0 0
      %242 = vmatpush1.bf16.msra.mxu0 0
      %243 = vmatprep.subr.bf16.mxu0 0
      %244 = vmatpush1.bf16.msra.mxu0 0
      %245 = vmatprep.subr.bf16.mxu0 0
      %246 = vmatpush1.bf16.msra.mxu0 0
      %247 = vmatprep.subr.bf16.mxu0 0
      %248 = vmatpush1.bf16.msra.mxu0 0
      %249 = vmatprep.subr.bf16.mxu0 0
      %250 = vmatpush1.bf16.msra.mxu0 0
      %251 = vmatprep.subr.bf16.mxu0 0
      %252 = vmatpush1.bf16.msra.mxu0 0
      %253 = vmatprep.subr.bf16.mxu0 0
      %254 = vmatpush1.bf16.msra.mxu0 0
      %255 = vmatprep.subr.bf16.mxu0 0
      %256 = vmatpush1.bf16.msra.mxu0 0
      %257 = vmatprep.subr.bf16.mxu0 0
      %258 = vmatpush1.bf16.msra.mxu0 0
      %259 = vmatprep.mubr.bf16.mxu0 0
      %260 = vmatmul.mubr.bf16.gmra.mrb[0].mxu0 %v222
      %v261 = vpop.f32.mrb[0].mxu0
      %v262 = vadd.f32 0.0, %v261
      %v263 = vpop.f32.mrb[0].mxu0
      %v264 = vpop.f32.mrb[0].mxu0
      %v265 = vadd.f32 0.0, %v264
      %v266 = vpop.f32.mrb[0].mxu0
      %267 = vmatprep.mubr.bf16.mxu0 0
      %268 = vmatmul.mubr.bf16.gmra.mrb[0].mxu0 %v225
      %v269 = vpop.f32.mrb[0].mxu0
      %v270 = vadd.f32 0.0, %v269
      %v271 = vpop.f32.mrb[0].mxu0
      %v272 = vpop.f32.mrb[0].mxu0
      %v273 = vpop.f32.mrb[0].mxu0
      %274 = vdwg.mxu0
      %v279 = vunpack.c.l.b16 %v175
      %v280 = vunpack.c.l.b16 %v176
      %v281 = vunpack.c.l.b16 %v177
      %v282 = vunpack.c.l.b16 %v178
      %v283 = vpack.c.b16 %v280, %v279
      %v284 = vpack.c.b16 %v282, %v281
      %v287 = vsel %vm220, %v190, 0
      %v289 = vsel %vm220, %v191, 0
      %291 = vmatprep.subr.bf16.mxu0 0
      %292 = vmatpush1.bf16.msra.mxu0 %v283
      %293 = vmatprep.subr.bf16.mxu0 0
      %294 = vmatpush1.bf16.msra.mxu0 %v284
      %295 = vmatprep.subr.bf16.mxu0 0
      %296 = vmatpush1.bf16.msra.mxu0 0
      %297 = vmatprep.subr.bf16.mxu0 0
      %298 = vmatpush1.bf16.msra.mxu0 0
      %299 = vmatprep.subr.bf16.mxu0 0
      %300 = vmatpush1.bf16.msra.mxu0 0
      %301 = vmatprep.subr.bf16.mxu0 0
      %302 = vmatpush1.bf16.msra.mxu0 0
      %303 = vmatprep.subr.bf16.mxu0 0
      %304 = vmatpush1.bf16.msra.mxu0 0
      %305 = vmatprep.subr.bf16.mxu0 0
      %306 = vmatpush1.bf16.msra.mxu0 0
      %307 = vmatprep.subr.bf16.mxu0 0
      %308 = vmatpush1.bf16.msra.mxu0 0
      %309 = vmatprep.subr.bf16.mxu0 0
      %310 = vmatpush1.bf16.msra.mxu0 0
      %311 = vmatprep.subr.bf16.mxu0 0
      %312 = vmatpush1.bf16.msra.mxu0 0
      %313 = vmatprep.subr.bf16.mxu0 0
      %314 = vmatpush1.bf16.msra.mxu0 0
      %315 = vmatprep.subr.bf16.mxu0 0
      %316 = vmatpush1.bf16.msra.mxu0 0
      %317 = vmatprep.subr.bf16.mxu0 0
      %318 = vmatpush1.bf16.msra.mxu0 0
      %319 = vmatprep.subr.bf16.mxu0 0
      %320 = vmatpush1.bf16.msra.mxu0 0
      %321 = vmatprep.subr.bf16.mxu0 0
      %322 = vmatpush1.bf16.msra.mxu0 0
      %323 = vmatprep.mubr.bf16.mxu0 0
      %324 = vmatmul.mubr.bf16.gmra.mrb[0].mxu0 %v287
      %v325 = vpop.f32.mrb[0].mxu0
      %v326 = vadd.f32 %v262, %v325
      %v327 = vpop.f32.mrb[0].mxu0
      %v328 = vpop.f32.mrb[0].mxu0
      %v329 = vadd.f32 %v265, %v328
      %v330 = vpop.f32.mrb[0].mxu0
      %331 = vmatprep.mubr.bf16.mxu0 0
      %332 = vmatmul.mubr.bf16.gmra.mrb[0].mxu0 %v289
      %v333 = vpop.f32.mrb[0].mxu0
      %v334 = vadd.f32 %v270, %v333
      %v335 = vpop.f32.mrb[0].mxu0
      %v336 = vpop.f32.mrb[0].mxu0
      %v337 = vpop.f32.mrb[0].mxu0
      %338 = vdwg.mxu0
      %v339 = vld [vmem:[%s165] sm:$0xc]
      %v340 = vld [vmem:[%s165 + $0x8] sm:$0xf]
      %s341 = scalar_lea.vmem %s1, 32
      %v342 = vld [vmem:[%s341] sm:$0xf]
      %v343 = vld [vmem:[%s341 + $0x4] sm:$0xf]
      %v344 = vld [vmem:[%s341 + $0x8] sm:$0xf]
      %v345 = vld [vmem:[%s341 + $0xc] sm:$0xf]
      %v348 = vunpack.c.l.b16 %v339
      %v349 = vunpack.c.l.b16 %v340
      %v350 = vpack.c.b16 %v188, %v348
      %v351 = vpack.c.b16 %v349, %v349
      %vm352 = vsmask.f32 5376
      %v354 = vshrl.u32 %v350, 16
      %v356 = vrot.slane %v354, 2
      %v357 = vshll.u32 %v350, 16
      %v359 = vrot.slane %v357, 3
      %v360 = vor.u32 %v356, %v359
      %v362 = vshrl.u32 %v351, 16
      %v364 = vrot.slane %v362, 2
      %v365 = vshll.u32 %v351, 16
      %v367 = vrot.slane %v365, 3
      %v368 = vor.u32 %v364, %v367
      %v369 = vsel %vm352, %v360, %v368
      %v374 = vunpack.c.l.b16 %v342
      %v375 = vunpack.c.l.b16 %v343
      %v376 = vunpack.c.l.b16 %v344
      %v377 = vunpack.c.l.b16 %v345
      %v378 = vpack.c.b16 %v375, %v374
      %v379 = vpack.c.b16 %v377, %v376
      %v383 = vsel %vm220, %v369, 0
      %v386 = vsel %vm220, %v368, 0
      %388 = vmatprep.subr.bf16.mxu0 0
      %389 = vmatpush1.bf16.msra.mxu0 %v378
      %390 = vmatprep.subr.bf16.mxu0 0
      %391 = vmatpush1.bf16.msra.mxu0 %v379
      %392 = vmatprep.subr.bf16.mxu0 0
      %393 = vmatpush1.bf16.msra.mxu0 0
      %394 = vmatprep.subr.bf16.mxu0 0
      %395 = vmatpush1.bf16.msra.mxu0 0
      %396 = vmatprep.subr.bf16.mxu0 0
      %397 = vmatpush1.bf16.msra.mxu0 0
      %398 = vmatprep.subr.bf16.mxu0 0
      %399 = vmatpush1.bf16.msra.mxu0 0
      %400 = vmatprep.subr.bf16.mxu0 0
      %401 = vmatpush1.bf16.msra.mxu0 0
      %402 = vmatprep.subr.bf16.mxu0 0
      %403 = vmatpush1.bf16.msra.mxu0 0
      %404 = vmatprep.subr.bf16.mxu0 0
      %405 = vmatpush1.bf16.msra.mxu0 0
      %406 = vmatprep.subr.bf16.mxu0 0
      %407 = vmatpush1.bf16.msra.mxu0 0
      %408 = vmatprep.subr.bf16.mxu0 0
      %409 = vmatpush1.bf16.msra.mxu0 0
      %410 = vmatprep.subr.bf16.mxu0 0
      %411 = vmatpush1.bf16.msra.mxu0 0
      %412 = vmatprep.subr.bf16.mxu0 0
      %413 = vmatpush1.bf16.msra.mxu0 0
      %414 = vmatprep.subr.bf16.mxu0 0
      %415 = vmatpush1.bf16.msra.mxu0 0
      %416 = vmatprep.subr.bf16.mxu0 0
      %417 = vmatpush1.bf16.msra.mxu0 0
      %418 = vmatprep.subr.bf16.mxu0 0
      %419 = vmatpush1.bf16.msra.mxu0 0
      %420 = vmatprep.mubr.bf16.mxu0 0
      %421 = vmatmul.mubr.bf16.gmra.mrb[0].mxu0 %v383
      %v422 = vpop.f32.mrb[0].mxu0
      %v423 = vadd.f32 0.0, %v422
      %v424 = vpop.f32.mrb[0].mxu0
      %v425 = vpop.f32.mrb[0].mxu0
      %v426 = vadd.f32 0.0, %v425
      %v427 = vpop.f32.mrb[0].mxu0
      %428 = vmatprep.mubr.bf16.mxu0 0
      %429 = vmatmul.mubr.bf16.gmra.mrb[0].mxu0 %v386
      %v430 = vpop.f32.mrb[0].mxu0
      %v431 = vadd.f32 0.0, %v430
      %v432 = vpop.f32.mrb[0].mxu0
      %v433 = vpop.f32.mrb[0].mxu0
      %v434 = vpop.f32.mrb[0].mxu0
      %435 = vdwg.mxu0
      %v436 = vadd.f32 %v326, %v423
      %v437 = vadd.f32 %v329, %v426
      %v438 = vadd.f32 %v334, %v431
      %v439 = vld [vmem:[%s165] sm:$0x8]
      %v440 = vld [vmem:[%s165 + $0x4] sm:$0xf]
      %v441 = vld [vmem:[%s165 + $0x8] sm:$0xf]
      %v442 = vld [vmem:[%s165 + $0xc] sm:$0x1]
      %s443 = scalar_lea.vmem %s1, 48
      %v444 = vld [vmem:[%s443] sm:$0xf]
      %v445 = vld [vmem:[%s443 + $0x4] sm:$0xf]
      %v446 = vld [vmem:[%s443 + $0x8] sm:$0xf]
      %v447 = vld [vmem:[%s443 + $0xc] sm:$0xf]
      %v452 = vunpack.c.l.b16 %v439
      %v453 = vunpack.c.l.b16 %v440
      %v454 = vunpack.c.l.b16 %v441
      %v455 = vunpack.c.l.b16 %v442
      %v456 = vpack.c.b16 %v453, %v452
      %v457 = vpack.c.b16 %v455, %v454
      %vm458 = vcmask 1044480
      %v459 = vrot.slane %v456, 3
      %v460 = vrot.slane %v457, 3
      %v461 = vsel %vm458, %v459, %v460
      %v466 = vunpack.c.l.b16 %v444
      %v467 = vunpack.c.l.b16 %v445
      %v468 = vunpack.c.l.b16 %v446
      %v469 = vunpack.c.l.b16 %v447
      %v470 = vpack.c.b16 %v467, %v466
      %v471 = vpack.c.b16 %v469, %v468
      %v475 = vsel %vm220, %v461, 0
      %v478 = vsel %vm220, %v460, 0
      %480 = vmatprep.subr.bf16.mxu0 0
      %481 = vmatpush1.bf16.msra.mxu0 %v470
      %482 = vmatprep.subr.bf16.mxu0 0
      %483 = vmatpush1.bf16.msra.mxu0 %v471
      %484 = vmatprep.subr.bf16.mxu0 0
      %485 = vmatpush1.bf16.msra.mxu0 0
      %486 = vmatprep.subr.bf16.mxu0 0
      %487 = vmatpush1.bf16.msra.mxu0 0
      %488 = vmatprep.subr.bf16.mxu0 0
      %489 = vmatpush1.bf16.msra.mxu0 0
      %490 = vmatprep.subr.bf16.mxu0 0
      %491 = vmatpush1.bf16.msra.mxu0 0
      %492 = vmatprep.subr.bf16.mxu0 0
      %493 = vmatpush1.bf16.msra.mxu0 0
      %494 = vmatprep.subr.bf16.mxu0 0
      %495 = vmatpush1.bf16.msra.mxu0 0
      %496 = vmatprep.subr.bf16.mxu0 0
      %497 = vmatpush1.bf16.msra.mxu0 0
      %498 = vmatprep.subr.bf16.mxu0 0
      %499 = vmatpush1.bf16.msra.mxu0 0
      %500 = vmatprep.subr.bf16.mxu0 0
      %501 = vmatpush1.bf16.msra.mxu0 0
      %502 = vmatprep.subr.bf16.mxu0 0
      %503 = vmatpush1.bf16.msra.mxu0 0
      %504 = vmatprep.subr.bf16.mxu0 0
      %505 = vmatpush1.bf16.msra.mxu0 0
      %506 = vmatprep.subr.bf16.mxu0 0
      %507 = vmatpush1.bf16.msra.mxu0 0
      %508 = vmatprep.subr.bf16.mxu0 0
      %509 = vmatpush1.bf16.msra.mxu0 0
      %510 = vmatprep.subr.bf16.mxu0 0
      %511 = vmatpush1.bf16.msra.mxu0 0
      %512 = vmatprep.mubr.bf16.mxu0 0
      %513 = vmatmul.mubr.bf16.gmra.mrb[0].mxu0 %v475
      %v514 = vpop.f32.mrb[0].mxu0
      %v515 = vadd.f32 0.0, %v514
      %v516 = vpop.f32.mrb[0].mxu0
      %v517 = vpop.f32.mrb[0].mxu0
      %v518 = vadd.f32 0.0, %v517
      %v519 = vpop.f32.mrb[0].mxu0
      %520 = vmatprep.mubr.bf16.mxu0 0
      %521 = vmatmul.mubr.bf16.gmra.mrb[0].mxu0 %v478
      %v522 = vpop.f32.mrb[0].mxu0
      %v523 = vadd.f32 0.0, %v522
      %v524 = vpop.f32.mrb[0].mxu0
      %v525 = vpop.f32.mrb[0].mxu0
      %v526 = vpop.f32.mrb[0].mxu0
      %527 = vdwg.mxu0
      %v528 = vadd.f32 %v436, %v515
      %v529 = vadd.f32 %v437, %v518
      %v530 = vadd.f32 %v438, %v523
      %v531 = vld [vmem:[%s2] sm:$0x1]
      %v533 = vlaneseq
      %v534 = vshrl.u32 %v533, 7
      %v535 = vsub.s32 0, %v534
      %v536 = vrot.slane %v531, %v535
      %v538 = vadd.f32 %v528, %v536
      %v539 = vadd.f32 %v529, %v536
      %v540 = vadd.f32 %v530, %v536
      %v541 = vxor.u32 %v538, 2147483648
      %v542 = vxor.u32 %v539, 2147483648
      %v543 = vxor.u32 %v540, 2147483648
      %v544 = vmul.f32 %v541, 1.442695
      %v545 = vpow.pop %v544
      %v546 = vmul.f32 %v542, 1.442695
      %v547 = vpow.pop %v546
      %v548 = vmul.f32 %v543, 1.442695
      %v549 = vpow.pop %v548
      %v550 = vadd.f32 %v545, 1.0
      %v551 = vadd.f32 %v547, 1.0
      %v552 = vadd.f32 %v549, 1.0
      %v553 = vrcp.pop %v550
      %v554 = vmul.f32 1.0, %v553
      %v555 = vrcp.pop %v551
      %v556 = vmul.f32 1.0, %v555
      %v557 = vrcp.pop %v552
      %v558 = vmul.f32 1.0, %v557
      %v559 = vmul.f32 %v538, %v554
      %v560 = vmul.f32 %v539, %v556
      %v561 = vmul.f32 %v540, %v558
      %v562 = vpack.c.bf16 %v560, %v559
      %v563 = vpack.c.bf16 %v561, %v561
      %v566 = vunpack.c.l.b16 %v562
      %v567 = vunpack.c.h.b16 %v562
      %v568 = vunpack.c.l.b16 %v563
      %v569 = vpack.c.b16 %v566, %v566
      %v570 = vpack.c.b16 %v567, %v567
      %v571 = vpack.c.b16 %v568, %v568
      %vm575 = vcmask 125952
      %576 = vst.msk [vmem:[%s170] sm:$0xf] %vm575, %v569
      %577 = vst.msk [vmem:[%s170 + $0x4] sm:$0xf] %vm575, %v570
      %vm578 = vcmask 123904
      %vm579 = vsmask.f32 1280
      %vm580 = vmand %vm578, %vm579
      %v581 = vld [vmem:[%s170 + $0x8] sm:$0x3]
      %v582 = vsel %vm580, %v571, %v581
      %583 = vst [vmem:[%s170 + $0x8] sm:$0x3] %v582
      %p584 = scmp.lt.s32.totalorder %s14, 1
      %s585 = scalar_select %p584, %s14, 1
      %s586 = smul.addr %s585, 3
      %s587 = smul.addr %s586, 4
      %s588 = scalar_lea.vmem %s3, %s587
      // Predicated region
      $region33: #{yolo_forward.4} parent=31 // pred_check
        %p589 = pneg %p100
      $region34: #{yolo_forward.4} parent=31 // pred_check_branch
        %591 = sbr.rel (%p589) target = $region36
      $region35: #{yolo_forward.4} parent=31 // pred_region
        _
      $region36: #{yolo_forward.4} parent=31 // pred_fallthru
        _
    $region32: #{yolo_forward.4} parent=5 // pred_fallthru
      _
    %p592 = scmp.le.s32.totalorder 2, %s9
    // Predicated region
    $region37: #{yolo_forward.4} parent=5 // pred_check
      %p593 = pneg %p592
    $region38: #{yolo_forward.4} parent=5 // pred_check_branch
      %595 = sbr.rel (%p593) target = $region40
    $region39: #{yolo_forward.4} parent=5 // pred_region
      %s596 = ssub.s32 %s9, 2
      // Predicated region
      $region41: #{yolo_forward.4} parent=39 // pred_check
        %p597 = pneg %p106
      $region42: #{yolo_forward.4} parent=39 // pred_check_branch
        %599 = sbr.rel (%p597) target = $region44
      $region43: #{yolo_forward.4} parent=39 // pred_region
        %p600 = scmp.lt.s32.totalorder %s15, 1
        %s601 = scalar_select %p600, %s15, 1
        %s602 = smul.addr %s601, 3
        %s603 = smul.addr %s602, 4
        %s604 = scalar_lea.vmem %s3, %s603
      $region44: #{yolo_forward.4} parent=39 // pred_fallthru
        _
    $region40: #{yolo_forward.4} parent=5 // pred_fallthru
      _
  $region6: #{yolo_forward.4} parent=0 // loop_footer
    %s13 = sadd.s32 1, %s9
  $region7: #{yolo_forward.4} parent=0 // loop_footer_branch
    %8 = sbr.rel target = $region3
  $region8: #{yolo_forward.4} parent=0 // loop_exit
    _

// kernel: yolo_forward.3
$region0: #{yolo_forward.3}
  #allocation0 [shape = 'u32[]', space=smem, size = 0x4, offset = 0x4, fixed_abs, tag = 'smem constant byte address 0x4 - core index']
  #allocation1 [shape = 'u32[144,128]{1,0:T(1,128)}', space=vmem, size = 0x12000, scoped, tag = 'internal scratch']
  %s0 = inlined_call_operand.vmem [shape: bf16[2,81,12], index: 0, kind: input, shape index: {}]
  %s1 = inlined_call_operand.vmem [shape: bf16[4,12,8], index: 1, kind: input, shape index: {}]
  %s2 = inlined_call_operand.vmem [shape: f32[1,8], index: 2, kind: input, shape index: {}]
  %s3 = inlined_call_operand.vmem [shape: bf16[2,71,8], index: 3, kind: output, shape index: {}]
  %s4 = sld [smem:[#allocation0]]
  $region45: #{yolo_forward.3} parent=0
    _
  %s6 = ssub.s32 1, %s4
  %s7 = scalar_select 0, %s6, %s4
  loop: start=0, step=1, limit=4
  $region2: #{yolo_forward.3} parent=0 // loop_pre_header
    _
  $region3: #{yolo_forward.3} parent=0 // loop_header
    %s9 = sphi 0, %s13
    %p10 = scmp.ge.s32.totalorder %s9, 4
    %s19 = sphi 0, %s21
    %s22 = sphi 0, %s19
    %s23 = sphi 0, %s22
    %s39 = sphi 0, %s23
    %s43 = sphi 0, %s43
    %s45 = sphi 0, %s43
    %s46 = sphi 0, %s45
    %s60 = sphi 0, %s46
    %s64 = sphi 0, %s64
    %s66 = sphi 0, %s64
    %s67 = sphi 0, %s66
    %s81 = sphi 0, %s67
    %s87 = sphi 0, %s89
    %s90 = sphi 0, %s87
    %s91 = sphi 0, %s90
    %s107 = sphi 0, %s91
  $region4: #{yolo_forward.3} parent=0 // loop_header_branch
    %12 = sbr.rel (%p10) target = $region8
  $region5: #{yolo_forward.3} parent=0 // loop_body
    %s14 = ssub.s32 %s9, 1
    %s15 = ssub.s32 %s9, 2
    %s16 = sadd.s32 %s9, 1
    %s17 = ssub.s32 %s9, %s16
    %p18 = scmp.eq.s32.totalorder %s17, 0
    %s20 = sadd.s32 %s19, 1
    %s21 = scalar_select %p18, %s19, %s20
    %p24 = pneg %p18
    %p25 = scmp.eq.s32.totalorder %s9, 1
    %p26 = por %p24, %p25
    %p27 = scmp.ne.s32.totalorder %s19, %s22
    %p28 = scmp.eq.s32.totalorder %s9, 0
    %p29 = por %p27, %p28
    %p30 = scmp.ne.s32.totalorder %s19, %s22
    %p31 = scmp.eq.s32.totalorder %s14, 1
    %p32 = por %p30, %p31
    %p33 = scmp.ne.s32.totalorder %s22, %s23
    %p34 = scmp.eq.s32.totalorder %s14, 0
    %p35 = por %p33, %p34
    %p36 = scmp.ne.s32.totalorder %s22, %s23
    %p37 = scmp.eq.s32.totalorder %s15, 1
    %p38 = por %p36, %p37
    %p40 = scmp.ne.s32.totalorder %s23, %s39
    %p41 = scmp.eq.s32.totalorder %s15, 0
    %p42 = por %p40, %p41
    %s44 = sadd.s32 %s43, 1
    %p47 = scmp.eq.s32.totalorder %s9, 1
    %p48 = scmp.ne.s32.totalorder %s43, %s45
    %p49 = scmp.eq.s32.totalorder %s9, 0
    %p50 = por %p48, %p49
    %p51 = scmp.ne.s32.totalorder %s43, %s45
    %p52 = scmp.eq.s32.totalorder %s14, 1
    %p53 = por %p51, %p52
    %p54 = scmp.ne.s32.totalorder %s45, %s46
    %p55 = scmp.eq.s32.totalorder %s14, 0
    %p56 = por %p54, %p55
    %p57 = scmp.ne.s32.totalorder %s45, %s46
    %p58 = scmp.eq.s32.totalorder %s15, 1
    %p59 = por %p57, %p58
    %p61 = scmp.ne.s32.totalorder %s46, %s60
    %p62 = scmp.eq.s32.totalorder %s15, 0
    %p63 = por %p61, %p62
    %s65 = sadd.s32 %s64, 1
    %p68 = scmp.eq.s32.totalorder %s9, 1
    %p69 = scmp.ne.s32.totalorder %s64, %s66
    %p70 = scmp.eq.s32.totalorder %s9, 0
    %p71 = por %p69, %p70
    %p72 = scmp.ne.s32.totalorder %s64, %s66
    %p73 = scmp.eq.s32.totalorder %s14, 1
    %p74 = por %p72, %p73
    %p75 = scmp.ne.s32.totalorder %s66, %s67
    %p76 = scmp.eq.s32.totalorder %s14, 0
    %p77 = por %p75, %p76
    %p78 = scmp.ne.s32.totalorder %s66, %s67
    %p79 = scmp.eq.s32.totalorder %s15, 1
    %p80 = por %p78, %p79
    %p82 = scmp.ne.s32.totalorder %s67, %s81
    %p83 = scmp.eq.s32.totalorder %s15, 0
    %p84 = por %p82, %p83
    %s85 = ssub.s32 %s9, %s16
    %p86 = scmp.eq.s32.totalorder %s85, 0
    %s88 = sadd.s32 %s87, 1
    %s89 = scalar_select %p86, %s87, %s88
    %p92 = pneg %p86
    %p93 = scmp.eq.s32.totalorder %s9, 1
    %p94 = por %p92, %p93
    %p95 = scmp.ne.s32.totalorder %s87, %s90
    %p96 = scmp.eq.s32.totalorder %s9, 0
    %p97 = por %p95, %p96
    %p98 = scmp.ne.s32.totalorder %s87, %s90
    %p99 = scmp.eq.s32.totalorder %s14, 1
    %p100 = por %p98, %p99
    %p101 = scmp.ne.s32.totalorder %s90, %s91
    %p102 = scmp.eq.s32.totalorder %s14, 0
    %p103 = por %p101, %p102
    %p104 = scmp.ne.s32.totalorder %s90, %s91
    %p105 = scmp.eq.s32.totalorder %s15, 1
    %p106 = por %p104, %p105
    %p108 = scmp.ne.s32.totalorder %s91, %s107
    %p109 = scmp.eq.s32.totalorder %s15, 0
    %p110 = por %p108, %p109
    %p111 = scmp.le.s32.totalorder 1, %s9
    %p112 = scmp.lt.s32.totalorder %s9, 3
    %p113 = pnand %p111, %p112
    %p114 = pneg %p113
    // Predicated region
    $region9: #{yolo_forward.3} parent=5 // pred_check
      _
    $region10: #{yolo_forward.3} parent=5 // pred_check_branch
      %116 = sbr.rel (%p113) target = $region12
    $region11: #{yolo_forward.3} parent=5 // pred_region
      %s117 = ssub.s32 %s9, 1
      // Predicated region
      $region13: #{yolo_forward.3} parent=11 // pred_check
        %p118 = pneg %p56
      $region14: #{yolo_forward.3} parent=11 // pred_check_branch
        %120 = sbr.rel (%p118) target = $region16
      $region15: #{yolo_forward.3} parent=11 // pred_region
        _
      $region16: #{yolo_forward.3} parent=11 // pred_fallthru
        _
      // Predicated region
      $region17: #{yolo_forward.3} parent=11 // pred_check
        %p121 = pneg %p77
      $region18: #{yolo_forward.3} parent=11 // pred_check_branch
        %123 = sbr.rel (%p121) target = $region20
      $region19: #{yolo_forward.3} parent=11 // pred_region
        _
      $region20: #{yolo_forward.3} parent=11 // pred_fallthru
        _
    $region12: #{yolo_forward.3} parent=5 // pred_fallthru
      _
    %p124 = scmp.lt.s32.totalorder %s9, 2
    // Predicated region
    $region21: #{yolo_forward.3} parent=5 // pred_check
      %p125 = pneg %p124
    $region22: #{yolo_forward.3} parent=5 // pred_check_branch
      %127 = sbr.rel (%p125) target = $region24
    $region23: #{yolo_forward.3} parent=5 // pred_region
      // Predicated region
      $region25: #{yolo_forward.3} parent=23 // pred_check
        %p128 = pneg %p29
      $region26: #{yolo_forward.3} parent=23 // pred_check_branch
        %130 = sbr.rel (%p128) target = $region28
      $region27: #{yolo_forward.3} parent=23 // pred_region
        %p131 = scmp.lt.s32.totalorder %s9, 1
        %s132 = scalar_select %p131, %s9, 1
        %s133 = smul.addr %s132, 11
        %s134 = smul.addr %s133, 4
        %s135 = scalar_lea.vmem %s0, %s134
      $region28: #{yolo_forward.3} parent=23 // pred_fallthru
        _
    $region24: #{yolo_forward.3} parent=5 // pred_fallthru
      _
    %p136 = scmp.le.s32.totalorder 1, %s9
    %p137 = scmp.lt.s32.totalorder %s9, 3
    %p138 = pnand %p136, %p137
    %p139 = pneg %p138
    // Predicated region
    $region29: #{yolo_forward.3} parent=5 // pred_check
      _
    $region30: #{yolo_forward.3} parent=5 // pred_check_branch
      %141 = sbr.rel (%p138) target = $region32
    $region31: #{yolo_forward.3} parent=5 // pred_region
      %s142 = ssub.s32 %s9, 1
      %p143 = scmp.lt.s32.totalorder %s14, 1
      %s144 = scalar_select %p143, %s14, 1
      %s145 = smul.addr %s144, 11
      %s146 = smul.addr %s145, 4
      %s147 = scalar_lea.vmem %s0, %s146
      %p148 = pneg %p35
      %p149 = pneg %p32
      %p150 = pneg %p56
      %p151 = pneg %p53
      %p152 = pneg %p77
      %p153 = pneg %p74
      %p154 = pneg %p103
      %p155 = pneg %p100
      %p156 = scmp.lt.s32.totalorder %s14, 1
      %s157 = scalar_select %p156, %s14, 1
      %s158 = smul.addr %s157, 9
      %s159 = smul.addr %s158, 4
      %s160 = scalar_lea.vmem %s3, %s159
      %p161 = scmp.lt.s32.totalorder %s14, 1
      %s162 = scalar_select %p161, %s14, 1
      %s163 = smul.addr %s162, 11
      %s164 = smul.addr %s163, 4
      %s165 = scalar_lea.vmem %s0, %s164
      %p166 = scmp.lt.s32.totalorder %s14, 1
      %s167 = scalar_select %p166, %s14, 1
      %s168 = smul.addr %s167, 9
      %s169 = smul.addr %s168, 4
      %s170 = scalar_lea.vmem %s3, %s169
      %v172 = vld [vmem:[%s165] sm:$0xf]
      %v173 = vld [vmem:[%s165 + $0x4] sm:$0xf]
      %v174 = vld [vmem:[%s165 + $0x8] sm:$0xf]
      %v175 = vld [vmem:[%s165 + $0xc] sm:$0xf]
      %v176 = vld [vmem:[%s165 + $0x10] sm:$0xf]
      %v177 = vld [vmem:[%s165 + $0x14] sm:$0xf]
      %v178 = vld [vmem:[%s165 + $0x18] sm:$0xf]
      %v179 = vld [vmem:[%s165 + $0x1c] sm:$0xf]
      %v180 = vld [vmem:[%s165 + $0x20] sm:$0xf]
      %v181 = vld [vmem:[%s1] sm:$0xf]
      %v182 = vld [vmem:[%s1 + $0x4] sm:$0x3]
      %s183 = scalar_lea.vmem %s1, 8
      %v184 = vld [vmem:[%s183] sm:$0xf]
      %v185 = vld [vmem:[%s183 + $0x4] sm:$0x3]
      %v195 = vunpack.c.l.b16 %v172
      %v196 = vunpack.c.l.b16 %v173
      %v197 = vunpack.c.l.b16 %v174
      %v198 = vunpack.c.l.b16 %v175
      %v199 = vunpack.c.l.b16 %v176
      %v200 = vunpack.c.l.b16 %v177
      %v201 = vunpack.c.l.b16 %v178
      %v202 = vunpack.c.l.b16 %v179
      %v203 = vunpack.c.l.b16 %v180
      %v204 = vpack.c.b16 %v196, %v195
      %v205 = vpack.c.b16 %v198, %v197
      %v206 = vpack.c.b16 %v200, %v199
      %v207 = vpack.c.b16 %v202, %v201
      %v208 = vpack.c.b16 %v203, %v203
      %vm209 = vsmask.f32 7424
      %v211 = vshrl.u32 %v204, 16
      %v213 = vshll.u32 %v204, 16
      %v215 = vrot.slane %v213, 1
      %v216 = vor.u32 %v211, %v215
      %v218 = vshll.u32 %v205, 16
      %v220 = vrot.slane %v218, 1
      %v221 = vsel %vm209, %v216, %v220
      %v222 = vshrl.u32 %v205, 16
      %v224 = vor.u32 %v222, %v220
      %v226 = vshll.u32 %v206, 16
      %v228 = vrot.slane %v226, 1
      %v229 = vsel %vm209, %v224, %v228
      %v230 = vshrl.u32 %v206, 16
      %v232 = vor.u32 %v230, %v228
      %v234 = vshll.u32 %v207, 16
      %v236 = vrot.slane %v234, 1
      %v237 = vsel %vm209, %v232, %v236
      %v238 = vshrl.u32 %v207, 16
      %v240 = vor.u32 %v238, %v236
      %v242 = vshll.u32 %v208, 16
      %v244 = vrot.slane %v242, 1
      %v245 = vsel %vm209, %v240, %v244
      %v246 = vshrl.u32 %v208, 16
      %v248 = vor.u32 %v246, %v244
      %v251 = vunpack.c.l.b16 %v184
      %v252 = vunpack.c.l.b16 %v185
      %v253 = vpack.c.b16 %v252, %v251
      %vm254 = vcmask 97280
      %v256 = vsel %vm254, %v221, 0
      %v259 = vsel %vm254, %v229, 0
      %v262 = vsel %vm254, %v237, 0
      %v265 = vsel %vm254, %v245, 0
      %v268 = vsel %vm254, %v248, 0
      %vm270 = vcmask 1045504
      %v272 = vsel %vm270, %v253, 0
      %274 = vmatprep.subr.bf16.mxu0 0
      %275 = vmatpush1.bf16.msra.mxu0 %v272
      %276 = vmatprep.subr.bf16.mxu0 0
      %277 = vmatpush1.bf16.msra.mxu0 0
      %278 = vmatprep.subr.bf16.mxu0 0
      %279 = vmatpush1.bf16.msra.mxu0 0
      %280 = vmatprep.subr.bf16.mxu0 0
      %281 = vmatpush1.bf16.msra.mxu0 0
      %282 = vmatprep.subr.bf16.mxu0 0
      %283 = vmatpush1.bf16.msra.mxu0 0
      %284 = vmatprep.subr.bf16.mxu0 0
      %285 = vmatpush1.bf16.msra.mxu0 0
      %286 = vmatprep.subr.bf16.mxu0 0
      %287 = vmatpush1.bf16.msra.mxu0 0
      %288 = vmatprep.subr.bf16.mxu0 0
      %289 = vmatpush1.bf16.msra.mxu0 0
      %290 = vmatprep.subr.bf16.mxu0 0
      %291 = vmatpush1.bf16.msra.mxu0 0
      %292 = vmatprep.subr.bf16.mxu0 0
      %293 = vmatpush1.bf16.msra.mxu0 0
      %294 = vmatprep.subr.bf16.mxu0 0
      %295 = vmatpush1.bf16.msra.mxu0 0
      %296 = vmatprep.subr.bf16.mxu0 0
      %297 = vmatpush1.bf16.msra.mxu0 0
      %298 = vmatprep.subr.bf16.mxu0 0
      %299 = vmatpush1.bf16.msra.mxu0 0
      %300 = vmatprep.subr.bf16.mxu0 0
      %301 = vmatpush1.bf16.msra.mxu0 0
      %302 = vmatprep.subr.bf16.mxu0 0
      %303 = vmatpush1.bf16.msra.mxu0 0
      %304 = vmatprep.subr.bf16.mxu0 0
      %305 = vmatpush1.bf16.msra.mxu0 0
      %306 = vmatprep.mubr.bf16.mxu0 0
      %307 = vmatmul.mubr.bf16.gmra.mrb[0].mxu0 %v256
      %v308 = vpop.f32.mrb[0].mxu0
      %v309 = vadd.f32 0.0, %v308
      %v310 = vpop.f32.mrb[0].mxu0
      %v311 = vpop.f32.mrb[0].mxu0
      %v312 = vadd.f32 0.0, %v311
      %v313 = vpop.f32.mrb[0].mxu0
      %314 = vmatprep.mubr.bf16.mxu0 0
      %315 = vmatmul.mubr.bf16.gmra.mrb[0].mxu0 %v259
      %v316 = vpop.f32.mrb[0].mxu0
      %v317 = vadd.f32 0.0, %v316
      %v318 = vpop.f32.mrb[0].mxu0
      %v319 = vpop.f32.mrb[0].mxu0
      %v320 = vadd.f32 0.0, %v319
      %v321 = vpop.f32.mrb[0].mxu0
      %322 = vmatprep.mubr.bf16.mxu0 0
      %323 = vmatmul.mubr.bf16.gmra.mrb[0].mxu0 %v262
      %v324 = vpop.f32.mrb[0].mxu0
      %v325 = vadd.f32 0.0, %v324
      %v326 = vpop.f32.mrb[0].mxu0
      %v327 = vpop.f32.mrb[0].mxu0
      %v328 = vadd.f32 0.0, %v327
      %v329 = vpop.f32.mrb[0].mxu0
      %330 = vmatprep.mubr.bf16.mxu0 0
      %331 = vmatmul.mubr.bf16.gmra.mrb[0].mxu0 %v265
      %v332 = vpop.f32.mrb[0].mxu0
      %v333 = vadd.f32 0.0, %v332
      %v334 = vpop.f32.mrb[0].mxu0
      %v335 = vpop.f32.mrb[0].mxu0
      %v336 = vadd.f32 0.0, %v335
      %v337 = vpop.f32.mrb[0].mxu0
      %338 = vmatprep.mubr.bf16.mxu0 0
      %339 = vmatmul.mubr.bf16.gmra.mrb[0].mxu0 %v268
      %v340 = vpop.f32.mrb[0].mxu0
      %v341 = vadd.f32 0.0, %v340
      %v342 = vpop.f32.mrb[0].mxu0
      %v343 = vpop.f32.mrb[0].mxu0
      %v344 = vpop.f32.mrb[0].mxu0
      %345 = vdwg.mxu0
      %v348 = vunpack.c.l.b16 %v181
      %v349 = vunpack.c.l.b16 %v182
      %v350 = vpack.c.b16 %v349, %v348
      %v351 = vsel %vm254, %v204, 0
      %v353 = vsel %vm254, %v205, 0
      %v355 = vsel %vm254, %v206, 0
      %v357 = vsel %vm254, %v207, 0
      %v359 = vsel %vm254, %v208, 0
      %v362 = vsel %vm270, %v350, 0
      %364 = vmatprep.subr.bf16.mxu0 0
      %365 = vmatpush1.bf16.msra.mxu0 %v362
      %366 = vmatprep.subr.bf16.mxu0 0
      %367 = vmatpush1.bf16.msra.mxu0 0
      %368 = vmatprep.subr.bf16.mxu0 0
      %369 = vmatpush1.bf16.msra.mxu0 0
      %370 = vmatprep.subr.bf16.mxu0 0
      %371 = vmatpush1.bf16.msra.mxu0 0
      %372 = vmatprep.subr.bf16.mxu0 0
      %373 = vmatpush1.bf16.msra.mxu0 0
      %374 = vmatprep.subr.bf16.mxu0 0
      %375 = vmatpush1.bf16.msra.mxu0 0
      %376 = vmatprep.subr.bf16.mxu0 0
      %377 = vmatpush1.bf16.msra.mxu0 0
      %378 = vmatprep.subr.bf16.mxu0 0
      %379 = vmatpush1.bf16.msra.mxu0 0
      %380 = vmatprep.subr.bf16.mxu0 0
      %381 = vmatpush1.bf16.msra.mxu0 0
      %382 = vmatprep.subr.bf16.mxu0 0
      %383 = vmatpush1.bf16.msra.mxu0 0
      %384 = vmatprep.subr.bf16.mxu0 0
      %385 = vmatpush1.bf16.msra.mxu0 0
      %386 = vmatprep.subr.bf16.mxu0 0
      %387 = vmatpush1.bf16.msra.mxu0 0
      %388 = vmatprep.subr.bf16.mxu0 0
      %389 = vmatpush1.bf16.msra.mxu0 0
      %390 = vmatprep.subr.bf16.mxu0 0
      %391 = vmatpush1.bf16.msra.mxu0 0
      %392 = vmatprep.subr.bf16.mxu0 0
      %393 = vmatpush1.bf16.msra.mxu0 0
      %394 = vmatprep.subr.bf16.mxu0 0
      %395 = vmatpush1.bf16.msra.mxu0 0
      %396 = vmatprep.mubr.bf16.mxu0 0
      %397 = vmatmul.mubr.bf16.gmra.mrb[0].mxu0 %v351
      %v398 = vpop.f32.mrb[0].mxu0
      %v399 = vadd.f32 %v309, %v398
      %v400 = vpop.f32.mrb[0].mxu0
      %v401 = vpop.f32.mrb[0].mxu0
      %v402 = vadd.f32 %v312, %v401
      %v403 = vpop.f32.mrb[0].mxu0
      %404 = vmatprep.mubr.bf16.mxu0 0
      %405 = vmatmul.mubr.bf16.gmra.mrb[0].mxu0 %v353
      %v406 = vpop.f32.mrb[0].mxu0
      %v407 = vadd.f32 %v317, %v406
      %v408 = vpop.f32.mrb[0].mxu0
      %v409 = vpop.f32.mrb[0].mxu0
      %v410 = vadd.f32 %v320, %v409
      %v411 = vpop.f32.mrb[0].mxu0
      %412 = vmatprep.mubr.bf16.mxu0 0
      %413 = vmatmul.mubr.bf16.gmra.mrb[0].mxu0 %v355
      %v414 = vpop.f32.mrb[0].mxu0
      %v415 = vadd.f32 %v325, %v414
      %v416 = vpop.f32.mrb[0].mxu0
      %v417 = vpop.f32.mrb[0].mxu0
      %v418 = vadd.f32 %v328, %v417
      %v419 = vpop.f32.mrb[0].mxu0
      %420 = vmatprep.mubr.bf16.mxu0 0
      %421 = vmatmul.mubr.bf16.gmra.mrb[0].mxu0 %v357
      %v422 = vpop.f32.mrb[0].mxu0
      %v423 = vadd.f32 %v333, %v422
      %v424 = vpop.f32.mrb[0].mxu0
      %v425 = vpop.f32.mrb[0].mxu0
      %v426 = vadd.f32 %v336, %v425
      %v427 = vpop.f32.mrb[0].mxu0
      %428 = vmatprep.mubr.bf16.mxu0 0
      %429 = vmatmul.mubr.bf16.gmra.mrb[0].mxu0 %v359
      %v430 = vpop.f32.mrb[0].mxu0
      %v431 = vadd.f32 %v341, %v430
      %v432 = vpop.f32.mrb[0].mxu0
      %v433 = vpop.f32.mrb[0].mxu0
      %v434 = vpop.f32.mrb[0].mxu0
      %435 = vdwg.mxu0
      %v436 = vld [vmem:[%s165 + $0x4] sm:$0xf]
      %v437 = vld [vmem:[%s165 + $0x8] sm:$0xf]
      %v438 = vld [vmem:[%s165 + $0xc] sm:$0xf]
      %v439 = vld [vmem:[%s165 + $0x10] sm:$0xf]
      %v440 = vld [vmem:[%s165 + $0x14] sm:$0xf]
      %v441 = vld [vmem:[%s165 + $0x18] sm:$0xf]
      %v442 = vld [vmem:[%s165 + $0x1c] sm:$0xf]
      %v443 = vld [vmem:[%s165 + $0x20] sm:$0xf]
      %v444 = vld [vmem:[%s165 + $0x24] sm:$0xf]
      %s445 = scalar_lea.vmem %s1, 16
      %v446 = vld [vmem:[%s445] sm:$0xf]
      %v447 = vld [vmem:[%s445 + $0x4] sm:$0x3]
      %v457 = vunpack.c.l.b16 %v436
      %v458 = vunpack.c.l.b16 %v437
      %v459 = vunpack.c.l.b16 %v438
      %v460 = vunpack.c.l.b16 %v439
      %v461 = vunpack.c.l.b16 %v440
      %v462 = vunpack.c.l.b16 %v441
      %v463 = vunpack.c.l.b16 %v442
      %v464 = vunpack.c.l.b16 %v443
      %v465 = vunpack.c.l.b16 %v444
      %v466 = vpack.c.b16 %v458, %v457
      %v467 = vpack.c.b16 %v460, %v459
      %v468 = vpack.c.b16 %v462, %v461
      %v469 = vpack.c.b16 %v464, %v463
      %v470 = vpack.c.b16 %v465, %v465
      %v472 = vshrl.u32 %v466, 16
      %v474 = vshll.u32 %v466, 16
      %v476 = vrot.slane %v474, 1
      %v477 = vor.u32 %v472, %v476
      %v479 = vshll.u32 %v467, 16
      %v481 = vrot.slane %v479, 1
      %v482 = vsel %vm209, %v477, %v481
      %v483 = vshrl.u32 %v467, 16
      %v485 = vor.u32 %v483, %v481
      %v487 = vshll.u32 %v468, 16
      %v489 = vrot.slane %v487, 1
      %v490 = vsel %vm209, %v485, %v489
      %v491 = vshrl.u32 %v468, 16
      %v493 = vor.u32 %v491, %v489
      %v495 = vshll.u32 %v469, 16
      %v497 = vrot.slane %v495, 1
      %v498 = vsel %vm209, %v493, %v497
      %v499 = vshrl.u32 %v469, 16
      %v501 = vor.u32 %v499, %v497
      %v503 = vshll.u32 %v470, 16
      %v505 = vrot.slane %v503, 1
      %v506 = vsel %vm209, %v501, %v505
      %v507 = vshrl.u32 %v470, 16
      %v509 = vor.u32 %v507, %v505
      %v512 = vunpack.c.l.b16 %v446
      %v513 = vunpack.c.l.b16 %v447
      %v514 = vpack.c.b16 %v513, %v512
      %v516 = vsel %vm254, %v482, 0
      %v519 = vsel %vm254, %v490, 0
      %v522 = vsel %vm254, %v498, 0
      %v525 = vsel %vm254, %v506, 0
      %v528 = vsel %vm254, %v509, 0
      %v531 = vsel %vm270, %v514, 0
      %533 = vmatprep.subr.bf16.mxu0 0
      %534 = vmatpush1.bf16.msra.mxu0 %v531
      %535 = vmatprep.subr.bf16.mxu0 0
      %536 = vmatpush1.bf16.msra.mxu0 0
      %537 = vmatprep.subr.bf16.mxu0 0
      %538 = vmatpush1.bf16.msra.mxu0 0
      %539 = vmatprep.subr.bf16.mxu0 0
      %540 = vmatpush1.bf16.msra.mxu0 0
      %541 = vmatprep.subr.bf16.mxu0 0
      %542 = vmatpush1.bf16.msra.mxu0 0
      %543 = vmatprep.subr.bf16.mxu0 0
      %544 = vmatpush1.bf16.msra.mxu0 0
      %545 = vmatprep.subr.bf16.mxu0 0
      %546 = vmatpush1.bf16.msra.mxu0 0
      %547 = vmatprep.subr.bf16.mxu0 0
      %548 = vmatpush1.bf16.msra.mxu0 0
      %549 = vmatprep.subr.bf16.mxu0 0
      %550 = vmatpush1.bf16.msra.mxu0 0
      %551 = vmatprep.subr.bf16.mxu0 0
      %552 = vmatpush1.bf16.msra.mxu0 0
      %553 = vmatprep.subr.bf16.mxu0 0
      %554 = vmatpush1.bf16.msra.mxu0 0
      %555 = vmatprep.subr.bf16.mxu0 0
      %556 = vmatpush1.bf16.msra.mxu0 0
      %557 = vmatprep.subr.bf16.mxu0 0
      %558 = vmatpush1.bf16.msra.mxu0 0
      %559 = vmatprep.subr.bf16.mxu0 0
      %560 = vmatpush1.bf16.msra.mxu0 0
      %561 = vmatprep.subr.bf16.mxu0 0
      %562 = vmatpush1.bf16.msra.mxu0 0
      %563 = vmatprep.subr.bf16.mxu0 0
      %564 = vmatpush1.bf16.msra.mxu0 0
      %565 = vmatprep.mubr.bf16.mxu0 0
      %566 = vmatmul.mubr.bf16.gmra.mrb[0].mxu0 %v516
      %v567 = vpop.f32.mrb[0].mxu0
      %v568 = vadd.f32 0.0, %v567
      %v569 = vpop.f32.mrb[0].mxu0
      %v570 = vpop.f32.mrb[0].mxu0
      %v571 = vadd.f32 0.0, %v570
      %v572 = vpop.f32.mrb[0].mxu0
      %573 = vmatprep.mubr.bf16.mxu0 0
      %574 = vmatmul.mubr.bf16.gmra.mrb[0].mxu0 %v519
      %v575 = vpop.f32.mrb[0].mxu0
      %v576 = vadd.f32 0.0, %v575
      %v577 = vpop.f32.mrb[0].mxu0
      %v578 = vpop.f32.mrb[0].mxu0
      %v579 = vadd.f32 0.0, %v578
      %v580 = vpop.f32.mrb[0].mxu0
      %581 = vmatprep.mubr.bf16.mxu0 0
      %582 = vmatmul.mubr.bf16.gmra.mrb[0].mxu0 %v522
      %v583 = vpop.f32.mrb[0].mxu0
      %v584 = vadd.f32 0.0, %v583
      %v585 = vpop.f32.mrb[0].mxu0
      %v586 = vpop.f32.mrb[0].mxu0
      %v587 = vadd.f32 0.0, %v586
      %v588 = vpop.f32.mrb[0].mxu0
      %589 = vmatprep.mubr.bf16.mxu0 0
      %590 = vmatmul.mubr.bf16.gmra.mrb[0].mxu0 %v525
      %v591 = vpop.f32.mrb[0].mxu0
      %v592 = vadd.f32 0.0, %v591
      %v593 = vpop.f32.mrb[0].mxu0
      %v594 = vpop.f32.mrb[0].mxu0
      %v595 = vadd.f32 0.0, %v594
      %v596 = vpop.f32.mrb[0].mxu0
      %597 = vmatprep.mubr.bf16.mxu0 0
      %598 = vmatmul.mubr.bf16.gmra.mrb[0].mxu0 %v528
      %v599 = vpop.f32.mrb[0].mxu0
      %v600 = vadd.f32 0.0, %v599
      %v601 = vpop.f32.mrb[0].mxu0
      %v602 = vpop.f32.mrb[0].mxu0
      %v603 = vpop.f32.mrb[0].mxu0
      %604 = vdwg.mxu0
      %v605 = vadd.f32 %v399, %v568
      %v606 = vadd.f32 %v402, %v571
      %v607 = vadd.f32 %v407, %v576
      %v608 = vadd.f32 %v410, %v579
      %v609 = vadd.f32 %v415, %v584
      %v610 = vadd.f32 %v418, %v587
      %v611 = vadd.f32 %v423, %v592
      %v612 = vadd.f32 %v426, %v595
      %v613 = vadd.f32 %v431, %v600
      %v614 = vld [vmem:[%s165 + $0x4] sm:$0xe]
      %v615 = vld [vmem:[%s165 + $0x8] sm:$0xf]
      %v616 = vld [vmem:[%s165 + $0xc] sm:$0xf]
      %v617 = vld [vmem:[%s165 + $0x10] sm:$0xf]
      %v618 = vld [vmem:[%s165 + $0x14] sm:$0xf]
      %v619 = vld [vmem:[%s165 + $0x18] sm:$0xf]
      %v620 = vld [vmem:[%s165 + $0x1c] sm:$0xf]
      %v621 = vld [vmem:[%s165 + $0x20] sm:$0xf]
      %v622 = vld [vmem:[%s165 + $0x24] sm:$0xf]
      %v623 = vld [vmem:[%s165 + $0x28] sm:$0x1]
      %s624 = scalar_lea.vmem %s1, 24
      %v625 = vld [vmem:[%s624] sm:$0xf]
      %v626 = vld [vmem:[%s624 + $0x4] sm:$0x3]
      %v637 = vunpack.c.l.b16 %v614
      %v638 = vunpack.c.l.b16 %v615
      %v639 = vunpack.c.l.b16 %v616
      %v640 = vunpack.c.l.b16 %v617
      %v641 = vunpack.c.l.b16 %v618
      %v642 = vunpack.c.l.b16 %v619
      %v643 = vunpack.c.l.b16 %v620
      %v644 = vunpack.c.l.b16 %v621
      %v645 = vunpack.c.l.b16 %v622
      %v646 = vunpack.c.l.b16 %v623
      %v647 = vpack.c.b16 %v638, %v637
      %v648 = vpack.c.b16 %v640, %v639
      %v649 = vpack.c.b16 %v642, %v641
      %v650 = vpack.c.b16 %v644, %v643
      %v651 = vpack.c.b16 %v646, %v645
      %vm652 = vcmask 1046528
      %v653 = vrot.slane %v647, 1
      %v654 = vrot.slane %v648, 1
      %v655 = vsel %vm652, %v653, %v654
      %v656 = vrot.slane %v649, 1
      %v657 = vsel %vm652, %v654, %v656
      %v658 = vrot.slane %v650, 1
      %v659 = vsel %vm652, %v656, %v658
      %v660 = vrot.slane %v651, 1
      %v661 = vsel %vm652, %v658, %v660
      %v664 = vunpack.c.l.b16 %v625
      %v665 = vunpack.c.l.b16 %v626
      %v666 = vpack.c.b16 %v665, %v664
      %v668 = vsel %vm254, %v655, 0
      %v671 = vsel %vm254, %v657, 0
      %v674 = vsel %vm254, %v659, 0
      %v677 = vsel %vm254, %v661, 0
      %v680 = vsel %vm254, %v660, 0
      %v683 = vsel %vm270, %v666, 0
      %685 = vmatprep.subr.bf16.mxu0 0
      %686 = vmatpush1.bf16.msra.mxu0 %v683
      %687 = vmatprep.subr.bf16.mxu0 0
      %688 = vmatpush1.bf16.msra.mxu0 0
      %689 = vmatprep.subr.bf16.mxu0 0
      %690 = vmatpush1.bf16.msra.mxu0 0
      %691 = vmatprep.subr.bf16.mxu0 0
      %692 = vmatpush1.bf16.msra.mxu0 0
      %693 = vmatprep.subr.bf16.mxu0 0
      %694 = vmatpush1.bf16.msra.mxu0 0
      %695 = vmatprep.subr.bf16.mxu0 0
      %696 = vmatpush1.bf16.msra.mxu0 0
      %697 = vmatprep.subr.bf16.mxu0 0
      %698 = vmatpush1.bf16.msra.mxu0 0
      %699 = vmatprep.subr.bf16.mxu0 0
      %700 = vmatpush1.bf16.msra.mxu0 0
      %701 = vmatprep.subr.bf16.mxu0 0
      %702 = vmatpush1.bf16.msra.mxu0 0
      %703 = vmatprep.subr.bf16.mxu0 0
      %704 = vmatpush1.bf16.msra.mxu0 0
      %705 = vmatprep.subr.bf16.mxu0 0
      %706 = vmatpush1.bf16.msra.mxu0 0
      %707 = vmatprep.subr.bf16.mxu0 0
      %708 = vmatpush1.bf16.msra.mxu0 0
      %709 = vmatprep.subr.bf16.mxu0 0
      %710 = vmatpush1.bf16.msra.mxu0 0
      %711 = vmatprep.subr.bf16.mxu0 0
      %712 = vmatpush1.bf16.msra.mxu0 0
      %713 = vmatprep.subr.bf16.mxu0 0
      %714 = vmatpush1.bf16.msra.mxu0 0
      %715 = vmatprep.subr.bf16.mxu0 0
      %716 = vmatpush1.bf16.msra.mxu0 0
      %717 = vmatprep.mubr.bf16.mxu0 0
      %718 = vmatmul.mubr.bf16.gmra.mrb[0].mxu0 %v668
      %v719 = vpop.f32.mrb[0].mxu0
      %v720 = vadd.f32 0.0, %v719
      %v721 = vpop.f32.mrb[0].mxu0
      %v722 = vpop.f32.mrb[0].mxu0
      %v723 = vadd.f32 0.0, %v722
      %v724 = vpop.f32.mrb[0].mxu0
      %725 = vmatprep.mubr.bf16.mxu0 0
      %726 = vmatmul.mubr.bf16.gmra.mrb[0].mxu0 %v671
      %v727 = vpop.f32.mrb[0].mxu0
      %v728 = vadd.f32 0.0, %v727
      %v729 = vpop.f32.mrb[0].mxu0
      %v730 = vpop.f32.mrb[0].mxu0
      %v731 = vadd.f32 0.0, %v730
      %v732 = vpop.f32.mrb[0].mxu0
      %733 = vmatprep.mubr.bf16.mxu0 0
      %734 = vmatmul.mubr.bf16.gmra.mrb[0].mxu0 %v674
      %v735 = vpop.f32.mrb[0].mxu0
      %v736 = vadd.f32 0.0, %v735
      %v737 = vpop.f32.mrb[0].mxu0
      %v738 = vpop.f32.mrb[0].mxu0
      %v739 = vadd.f32 0.0, %v738
      %v740 = vpop.f32.mrb[0].mxu0
      %741 = vmatprep.mubr.bf16.mxu0 0
      %742 = vmatmul.mubr.bf16.gmra.mrb[0].mxu0 %v677
      %v743 = vpop.f32.mrb[0].mxu0
      %v744 = vadd.f32 0.0, %v743
      %v745 = vpop.f32.mrb[0].mxu0
      %v746 = vpop.f32.mrb[0].mxu0
      %v747 = vadd.f32 0.0, %v746
      %v748 = vpop.f32.mrb[0].mxu0
      %749 = vmatprep.mubr.bf16.mxu0 0
      %750 = vmatmul.mubr.bf16.gmra.mrb[0].mxu0 %v680
      %v751 = vpop.f32.mrb[0].mxu0
      %v752 = vadd.f32 0.0, %v751
      %v753 = vpop.f32.mrb[0].mxu0
      %v754 = vpop.f32.mrb[0].mxu0
      %v755 = vpop.f32.mrb[0].mxu0
      %756 = vdwg.mxu0
      %v757 = vadd.f32 %v605, %v720
      %v758 = vadd.f32 %v606, %v723
      %v759 = vadd.f32 %v607, %v728
      %v760 = vadd.f32 %v608, %v731
      %v761 = vadd.f32 %v609, %v736
      %v762 = vadd.f32 %v610, %v739
      %v763 = vadd.f32 %v611, %v744
      %v764 = vadd.f32 %v612, %v747
      %v765 = vadd.f32 %v613, %v752
      %v766 = vld [vmem:[%s2] sm:$0x1]
      %v768 = vlaneseq
      %v769 = vshrl.u32 %v768, 7
      %v770 = vsub.s32 0, %v769
      %v771 = vrot.slane %v766, %v770
      %v773 = vadd.f32 %v757, %v771
      %v774 = vadd.f32 %v758, %v771
      %v775 = vadd.f32 %v759, %v771
      %v776 = vadd.f32 %v760, %v771
      %v777 = vadd.f32 %v761, %v771
      %v778 = vadd.f32 %v762, %v771
      %v779 = vadd.f32 %v763, %v771
      %v780 = vadd.f32 %v764, %v771
      %v781 = vadd.f32 %v765, %v771
      %v782 = vxor.u32 %v773, 2147483648
      %v783 = vxor.u32 %v774, 2147483648
      %v784 = vxor.u32 %v775, 2147483648
      %v785 = vxor.u32 %v776, 2147483648
      %v786 = vxor.u32 %v777, 2147483648
      %v787 = vxor.u32 %v778, 2147483648
      %v788 = vxor.u32 %v779, 2147483648
      %v789 = vxor.u32 %v780, 2147483648
      %v790 = vxor.u32 %v781, 2147483648
      %v791 = vmul.f32 %v782, 1.442695
      %v792 = vpow.pop %v791
      %v793 = vmul.f32 %v783, 1.442695
      %v794 = vpow.pop %v793
      %v795 = vmul.f32 %v784, 1.442695
      %v796 = vpow.pop %v795
      %v797 = vmul.f32 %v785, 1.442695
      %v798 = vpow.pop %v797
      %v799 = vmul.f32 %v786, 1.442695
      %v800 = vpow.pop %v799
      %v801 = vmul.f32 %v787, 1.442695
      %v802 = vpow.pop %v801
      %v803 = vmul.f32 %v788, 1.442695
      %v804 = vpow.pop %v803
      %v805 = vmul.f32 %v789, 1.442695
      %v806 = vpow.pop %v805
      %v807 = vmul.f32 %v790, 1.442695
      %v808 = vpow.pop %v807
      %v809 = vadd.f32 %v792, 1.0
      %v810 = vadd.f32 %v794, 1.0
      %v811 = vadd.f32 %v796, 1.0
      %v812 = vadd.f32 %v798, 1.0
      %v813 = vadd.f32 %v800, 1.0
      %v814 = vadd.f32 %v802, 1.0
      %v815 = vadd.f32 %v804, 1.0
      %v816 = vadd.f32 %v806, 1.0
      %v817 = vadd.f32 %v808, 1.0
      %v818 = vrcp.pop %v809
      %v819 = vmul.f32 1.0, %v818
      %v820 = vrcp.pop %v810
      %v821 = vmul.f32 1.0, %v820
      %v822 = vrcp.pop %v811
      %v823 = vmul.f32 1.0, %v822
      %v824 = vrcp.pop %v812
      %v825 = vmul.f32 1.0, %v824
      %v826 = vrcp.pop %v813
      %v827 = vmul.f32 1.0, %v826
      %v828 = vrcp.pop %v814
      %v829 = vmul.f32 1.0, %v828
      %v830 = vrcp.pop %v815
      %v831 = vmul.f32 1.0, %v830
      %v832 = vrcp.pop %v816
      %v833 = vmul.f32 1.0, %v832
      %v834 = vrcp.pop %v817
      %v835 = vmul.f32 1.0, %v834
      %v836 = vmul.f32 %v773, %v819
      %v837 = vmul.f32 %v774, %v821
      %v838 = vmul.f32 %v775, %v823
      %v839 = vmul.f32 %v776, %v825
      %v840 = vmul.f32 %v777, %v827
      %v841 = vmul.f32 %v778, %v829
      %v842 = vmul.f32 %v779, %v831
      %v843 = vmul.f32 %v780, %v833
      %v844 = vmul.f32 %v781, %v835
      %v845 = vpack.c.bf16 %v837, %v836
      %v846 = vpack.c.bf16 %v839, %v838
      %v847 = vpack.c.bf16 %v841, %v840
      %v848 = vpack.c.bf16 %v843, %v842
      %v849 = vpack.c.bf16 %v844, %v844
      %v855 = vunpack.c.l.b16 %v845
      %v856 = vunpack.c.h.b16 %v845
      %v857 = vunpack.c.l.b16 %v846
      %v858 = vunpack.c.h.b16 %v846
      %v859 = vunpack.c.l.b16 %v847
      %v860 = vunpack.c.h.b16 %v847
      %v861 = vunpack.c.l.b16 %v848
      %v862 = vunpack.c.h.b16 %v848
      %v863 = vunpack.c.l.b16 %v849
      %v864 = vpack.c.b16 %v855, %v855
      %v865 = vpack.c.b16 %v856, %v856
      %v866 = vpack.c.b16 %v857, %v857
      %v867 = vpack.c.b16 %v858, %v858
      %v868 = vpack.c.b16 %v859, %v859
      %v869 = vpack.c.b16 %v860, %v860
      %v870 = vpack.c.b16 %v861, %v861
      %v871 = vpack.c.b16 %v862, %v862
      %v872 = vpack.c.b16 %v863, %v863
      %vm882 = vcmask 60416
      %883 = vst.msk [vmem:[%s170] sm:$0xf] %vm882, %v864
      %884 = vst.msk [vmem:[%s170 + $0x4] sm:$0xf] %vm882, %v865
      %885 = vst.msk [vmem:[%s170 + $0x8] sm:$0xf] %vm882, %v866
      %886 = vst.msk [vmem:[%s170 + $0xc] sm:$0xf] %vm882, %v867
      %887 = vst.msk [vmem:[%s170 + $0x10] sm:$0xf] %vm882, %v868
      %888 = vst.msk [vmem:[%s170 + $0x14] sm:$0xf] %vm882, %v869
      %889 = vst.msk [vmem:[%s170 + $0x18] sm:$0xf] %vm882, %v870
      %890 = vst.msk [vmem:[%s170 + $0x1c] sm:$0xf] %vm882, %v871
      %vm891 = vcmask 60416
      %vm892 = vsmask.f32 3328
      %vm893 = vmand %vm891, %vm892
      %v894 = vld [vmem:[%s170 + $0x20] sm:$0xf]
      %v895 = vsel %vm893, %v872, %v894
      %896 = vst [vmem:[%s170 + $0x20] sm:$0xf] %v895
      %p897 = scmp.lt.s32.totalorder %s14, 1
      %s898 = scalar_select %p897, %s14, 1
      %s899 = smul.addr %s898, 9
      %s900 = smul.addr %s899, 4
      %s901 = scalar_lea.vmem %s3, %s900
      // Predicated region
      $region33: #{yolo_forward.3} parent=31 // pred_check
        %p902 = pneg %p100
      $region34: #{yolo_forward.3} parent=31 // pred_check_branch
        %904 = sbr.rel (%p902) target = $region36
      $region35: #{yolo_forward.3} parent=31 // pred_region
        _
      $region36: #{yolo_forward.3} parent=31 // pred_fallthru
        _
    $region32: #{yolo_forward.3} parent=5 // pred_fallthru
      _
    %p905 = scmp.le.s32.totalorder 2, %s9
    // Predicated region
    $region37: #{yolo_forward.3} parent=5 // pred_check
      %p906 = pneg %p905
    $region38: #{yolo_forward.3} parent=5 // pred_check_branch
      %908 = sbr.rel (%p906) target = $region40
    $region39: #{yolo_forward.3} parent=5 // pred_region
      %s909 = ssub.s32 %s9, 2
      // Predicated region
      $region41: #{yolo_forward.3} parent=39 // pred_check
        %p910 = pneg %p106
      $region42: #{yolo_forward.3} parent=39 // pred_check_branch
        %912 = sbr.rel (%p910) target = $region44
      $region43: #{yolo_forward.3} parent=39 // pred_region
        %p913 = scmp.lt.s32.totalorder %s15, 1
        %s914 = scalar_select %p913, %s15, 1
        %s915 = smul.addr %s914, 9
        %s916 = smul.addr %s915, 4
        %s917 = scalar_lea.vmem %s3, %s916
      $region44: #{yolo_forward.3} parent=39 // pred_fallthru
        _
    $region40: #{yolo_forward.3} parent=5 // pred_fallthru
      _
  $region6: #{yolo_forward.3} parent=0 // loop_footer
    %s13 = sadd.s32 1, %s9
  $region7: #{yolo_forward.3} parent=0 // loop_footer_branch
    %8 = sbr.rel target = $region3
  $region8: #{yolo_forward.3} parent=0 // loop_exit
    _

// kernel: yolo_forward.5
$region0: #{yolo_forward.5}
  #allocation0 [shape = 'u32[]', space=smem, size = 0x4, offset = 0x4, fixed_abs, tag = 'smem constant byte address 0x4 - core index']
  #allocation1 [shape = 'u32[144,128]{1,0:T(1,128)}', space=vmem, size = 0x12000, scoped, tag = 'internal scratch']
  %s0 = inlined_call_operand.vmem [shape: bf16[2,36,16], index: 0, kind: input, shape index: {}]
  %s1 = inlined_call_operand.vmem [shape: bf16[9,16,16], index: 1, kind: input, shape index: {}]
  %s2 = inlined_call_operand.vmem [shape: f32[1,16], index: 2, kind: input, shape index: {}]
  %s3 = inlined_call_operand.vmem [shape: bf16[9,16], index: 3, kind: input, shape index: {}]
  %s4 = inlined_call_operand.vmem [shape: f32[9,1], index: 4, kind: input, shape index: {}]
  %s5 = inlined_call_operand.vmem [shape: bf16[2,9,22], index: 5, kind: output, shape index: {}]
  %s6 = sld [smem:[#allocation0]]
  $region53: #{yolo_forward.5} parent=0
    _
  %s8 = ssub.s32 1, %s6
  %s9 = scalar_select 0, %s8, %s6
  loop: start=0, step=1, limit=4
  $region2: #{yolo_forward.5} parent=0 // loop_pre_header
    _
  $region3: #{yolo_forward.5} parent=0 // loop_header
    %s11 = sphi 0, %s15
    %p12 = scmp.ge.s32.totalorder %s11, 4
    %s21 = sphi 0, %s23
    %s24 = sphi 0, %s21
    %s25 = sphi 0, %s24
    %s41 = sphi 0, %s25
    %s45 = sphi 0, %s45
    %s47 = sphi 0, %s45
    %s48 = sphi 0, %s47
    %s62 = sphi 0, %s48
    %s66 = sphi 0, %s66
    %s68 = sphi 0, %s66
    %s69 = sphi 0, %s68
    %s83 = sphi 0, %s69
    %s87 = sphi 0, %s87
    %s89 = sphi 0, %s87
    %s90 = sphi 0, %s89
    %s104 = sphi 0, %s90
    %s108 = sphi 0, %s108
    %s110 = sphi 0, %s108
    %s111 = sphi 0, %s110
    %s125 = sphi 0, %s111
    %s131 = sphi 0, %s133
    %s134 = sphi 0, %s131
    %s135 = sphi 0, %s134
    %s151 = sphi 0, %s135
  $region4: #{yolo_forward.5} parent=0 // loop_header_branch
    %14 = sbr.rel (%p12) target = $region8
  $region5: #{yolo_forward.5} parent=0 // loop_body
    %s16 = ssub.s32 %s11, 1
    %s17 = ssub.s32 %s11, 2
    %s18 = sadd.s32 %s11, 1
    %s19 = ssub.s32 %s11, %s18
    %p20 = scmp.eq.s32.totalorder %s19, 0
    %s22 = sadd.s32 %s21, 1
    %s23 = scalar_select %p20, %s21, %s22
    %p26 = pneg %p20
    %p27 = scmp.eq.s32.totalorder %s11, 1
    %p28 = por %p26, %p27
    %p29 = scmp.ne.s32.totalorder %s21, %s24
    %p30 = scmp.eq.s32.totalorder %s11, 0
    %p31 = por %p29, %p30
    %p32 = scmp.ne.s32.totalorder %s21, %s24
    %p33 = scmp.eq.s32.totalorder %s16, 1
    %p34 = por %p32, %p33
    %p35 = scmp.ne.s32.totalorder %s24, %s25
    %p36 = scmp.eq.s32.totalorder %s16, 0
    %p37 = por %p35, %p36
    %p38 = scmp.ne.s32.totalorder %s24, %s25
    %p39 = scmp.eq.s32.totalorder %s17, 1
    %p40 = por %p38, %p39
    %p42 = scmp.ne.s32.totalorder %s25, %s41
    %p43 = scmp.eq.s32.totalorder %s17, 0
    %p44 = por %p42, %p43
    %s46 = sadd.s32 %s45, 1
    %p49 = scmp.eq.s32.totalorder %s11, 1
    %p50 = scmp.ne.s32.totalorder %s45, %s47
    %p51 = scmp.eq.s32.totalorder %s11, 0
    %p52 = por %p50, %p51
    %p53 = scmp.ne.s32.totalorder %s45, %s47
    %p54 = scmp.eq.s32.totalorder %s16, 1
    %p55 = por %p53, %p54
    %p56 = scmp.ne.s32.totalorder %s47, %s48
    %p57 = scmp.eq.s32.totalorder %s16, 0
    %p58 = por %p56, %p57
    %p59 = scmp.ne.s32.totalorder %s47, %s48
    %p60 = scmp.eq.s32.totalorder %s17, 1
    %p61 = por %p59, %p60
    %p63 = scmp.ne.s32.totalorder %s48, %s62
    %p64 = scmp.eq.s32.totalorder %s17, 0
    %p65 = por %p63, %p64
    %s67 = sadd.s32 %s66, 1
    %p70 = scmp.eq.s32.totalorder %s11, 1
    %p71 = scmp.ne.s32.totalorder %s66, %s68
    %p72 = scmp.eq.s32.totalorder %s11, 0
    %p73 = por %p71, %p72
    %p74 = scmp.ne.s32.totalorder %s66, %s68
    %p75 = scmp.eq.s32.totalorder %s16, 1
    %p76 = por %p74, %p75
    %p77 = scmp.ne.s32.totalorder %s68, %s69
    %p78 = scmp.eq.s32.totalorder %s16, 0
    %p79 = por %p77, %p78
    %p80 = scmp.ne.s32.totalorder %s68, %s69
    %p81 = scmp.eq.s32.totalorder %s17, 1
    %p82 = por %p80, %p81
    %p84 = scmp.ne.s32.totalorder %s69, %s83
    %p85 = scmp.eq.s32.totalorder %s17, 0
    %p86 = por %p84, %p85
    %s88 = sadd.s32 %s87, 1
    %p91 = scmp.eq.s32.totalorder %s11, 1
    %p92 = scmp.ne.s32.totalorder %s87, %s89
    %p93 = scmp.eq.s32.totalorder %s11, 0
    %p94 = por %p92, %p93
    %p95 = scmp.ne.s32.totalorder %s87, %s89
    %p96 = scmp.eq.s32.totalorder %s16, 1
    %p97 = por %p95, %p96
    %p98 = scmp.ne.s32.totalorder %s89, %s90
    %p99 = scmp.eq.s32.totalorder %s16, 0
    %p100 = por %p98, %p99
    %p101 = scmp.ne.s32.totalorder %s89, %s90
    %p102 = scmp.eq.s32.totalorder %s17, 1
    %p103 = por %p101, %p102
    %p105 = scmp.ne.s32.totalorder %s90, %s104
    %p106 = scmp.eq.s32.totalorder %s17, 0
    %p107 = por %p105, %p106
    %s109 = sadd.s32 %s108, 1
    %p112 = scmp.eq.s32.totalorder %s11, 1
    %p113 = scmp.ne.s32.totalorder %s108, %s110
    %p114 = scmp.eq.s32.totalorder %s11, 0
    %p115 = por %p113, %p114
    %p116 = scmp.ne.s32.totalorder %s108, %s110
    %p117 = scmp.eq.s32.totalorder %s16, 1
    %p118 = por %p116, %p117
    %p119 = scmp.ne.s32.totalorder %s110, %s111
    %p120 = scmp.eq.s32.totalorder %s16, 0
    %p121 = por %p119, %p120
    %p122 = scmp.ne.s32.totalorder %s110, %s111
    %p123 = scmp.eq.s32.totalorder %s17, 1
    %p124 = por %p122, %p123
    %p126 = scmp.ne.s32.totalorder %s111, %s125
    %p127 = scmp.eq.s32.totalorder %s17, 0
    %p128 = por %p126, %p127
    %s129 = ssub.s32 %s11, %s18
    %p130 = scmp.eq.s32.totalorder %s129, 0
    %s132 = sadd.s32 %s131, 1
    %s133 = scalar_select %p130, %s131, %s132
    %p136 = pneg %p130
    %p137 = scmp.eq.s32.totalorder %s11, 1
    %p138 = por %p136, %p137
    %p139 = scmp.ne.s32.totalorder %s131, %s134
    %p140 = scmp.eq.s32.totalorder %s11, 0
    %p141 = por %p139, %p140
    %p142 = scmp.ne.s32.totalorder %s131, %s134
    %p143 = scmp.eq.s32.totalorder %s16, 1
    %p144 = por %p142, %p143
    %p145 = scmp.ne.s32.totalorder %s134, %s135
    %p146 = scmp.eq.s32.totalorder %s16, 0
    %p147 = por %p145, %p146
    %p148 = scmp.ne.s32.totalorder %s134, %s135
    %p149 = scmp.eq.s32.totalorder %s17, 1
    %p150 = por %p148, %p149
    %p152 = scmp.ne.s32.totalorder %s135, %s151
    %p153 = scmp.eq.s32.totalorder %s17, 0
    %p154 = por %p152, %p153
    %p155 = scmp.le.s32.totalorder 1, %s11
    %p156 = scmp.lt.s32.totalorder %s11, 3
    %p157 = pnand %p155, %p156
    %p158 = pneg %p157
    // Predicated region
    $region9: #{yolo_forward.5} parent=5 // pred_check
      _
    $region10: #{yolo_forward.5} parent=5 // pred_check_branch
      %160 = sbr.rel (%p157) target = $region12
    $region11: #{yolo_forward.5} parent=5 // pred_region
      %s161 = ssub.s32 %s11, 1
      // Predicated region
      $region13: #{yolo_forward.5} parent=11 // pred_check
        %p162 = pneg %p58
      $region14: #{yolo_forward.5} parent=11 // pred_check_branch
        %164 = sbr.rel (%p162) target = $region16
      $region15: #{yolo_forward.5} parent=11 // pred_region
        _
      $region16: #{yolo_forward.5} parent=11 // pred_fallthru
        _
      // Predicated region
      $region17: #{yolo_forward.5} parent=11 // pred_check
        %p165 = pneg %p79
      $region18: #{yolo_forward.5} parent=11 // pred_check_branch
        %167 = sbr.rel (%p165) target = $region20
      $region19: #{yolo_forward.5} parent=11 // pred_region
        _
      $region20: #{yolo_forward.5} parent=11 // pred_fallthru
        _
      // Predicated region
      $region21: #{yolo_forward.5} parent=11 // pred_check
        %p168 = pneg %p100
      $region22: #{yolo_forward.5} parent=11 // pred_check_branch
        %170 = sbr.rel (%p168) target = $region24
      $region23: #{yolo_forward.5} parent=11 // pred_region
        _
      $region24: #{yolo_forward.5} parent=11 // pred_fallthru
        _
      // Predicated region
      $region25: #{yolo_forward.5} parent=11 // pred_check
        %p171 = pneg %p121
      $region26: #{yolo_forward.5} parent=11 // pred_check_branch
        %173 = sbr.rel (%p171) target = $region28
      $region27: #{yolo_forward.5} parent=11 // pred_region
        _
      $region28: #{yolo_forward.5} parent=11 // pred_fallthru
        _
    $region12: #{yolo_forward.5} parent=5 // pred_fallthru
      _
    %p174 = scmp.lt.s32.totalorder %s11, 2
    // Predicated region
    $region29: #{yolo_forward.5} parent=5 // pred_check
      %p175 = pneg %p174
    $region30: #{yolo_forward.5} parent=5 // pred_check_branch
      %177 = sbr.rel (%p175) target = $region32
    $region31: #{yolo_forward.5} parent=5 // pred_region
      // Predicated region
      $region33: #{yolo_forward.5} parent=31 // pred_check
        %p178 = pneg %p31
      $region34: #{yolo_forward.5} parent=31 // pred_check_branch
        %180 = sbr.rel (%p178) target = $region36
      $region35: #{yolo_forward.5} parent=31 // pred_region
        %p181 = scmp.lt.s32.totalorder %s11, 1
        %s182 = scalar_select %p181, %s11, 1
        %s183 = smul.addr %s182, 5
        %s184 = smul.addr %s183, 4
        %s185 = scalar_lea.vmem %s0, %s184
      $region36: #{yolo_forward.5} parent=31 // pred_fallthru
        _
    $region32: #{yolo_forward.5} parent=5 // pred_fallthru
      _
    %p186 = scmp.le.s32.totalorder 1, %s11
    %p187 = scmp.lt.s32.totalorder %s11, 3
    %p188 = pnand %p186, %p187
    %p189 = pneg %p188
    // Predicated region
    $region37: #{yolo_forward.5} parent=5 // pred_check
      _
    $region38: #{yolo_forward.5} parent=5 // pred_check_branch
      %191 = sbr.rel (%p188) target = $region40
    $region39: #{yolo_forward.5} parent=5 // pred_region
      %s192 = ssub.s32 %s11, 1
      %p193 = scmp.lt.s32.totalorder %s16, 1
      %s194 = scalar_select %p193, %s16, 1
      %s195 = smul.addr %s194, 5
      %s196 = smul.addr %s195, 4
      %s197 = scalar_lea.vmem %s0, %s196
      %p198 = pneg %p37
      %p199 = pneg %p34
      %p200 = pneg %p58
      %p201 = pneg %p55
      %p202 = pneg %p79
      %p203 = pneg %p76
      %p204 = pneg %p100
      %p205 = pneg %p97
      %p206 = pneg %p121
      %p207 = pneg %p118
      %p208 = pneg %p147
      %p209 = pneg %p144
      %p210 = scmp.lt.s32.totalorder %s16, 1
      %s211 = scalar_select %p210, %s16, 1
      %s212 = smul.addr %s211, 2
      %s213 = smul.addr %s212, 4
      %s214 = scalar_lea.vmem %s5, %s213
      %p215 = scmp.lt.s32.totalorder %s16, 1
      %s216 = scalar_select %p215, %s16, 1
      %s217 = smul.addr %s216, 5
      %s218 = smul.addr %s217, 4
      %s219 = scalar_lea.vmem %s0, %s218
      %p220 = scmp.lt.s32.totalorder %s16, 1
      %s221 = scalar_select %p220, %s16, 1
      %s222 = smul.addr %s221, 2
      %s223 = smul.addr %s222, 4
      %s224 = scalar_lea.vmem %s5, %s223
      %v226 = vld [vmem:[%s219] sm:$0xf]
      %v227 = vld [vmem:[%s219 + $0x4] sm:$0xf]
      %v228 = vld [vmem:[%s219 + $0x8] sm:$0x7]
      %v229 = vld [vmem:[%s1] sm:$0xf]
      %v230 = vld [vmem:[%s1 + $0x4] sm:$0xf]
      %v231 = vld [vmem:[%s219 + $0x8] sm:$0xf]
      %s232 = scalar_lea.vmem %s1, 8
      %v233 = vld [vmem:[%s232] sm:$0xf]
      %v234 = vld [vmem:[%s232 + $0x4] sm:$0xf]
      %v238 = vunpack.c.l.b16 %v226
      %v239 = vunpack.c.l.b16 %v227
      %v240 = vunpack.c.l.b16 %v231
      %v241 = vpack.c.b16 %v239, %v238
      %v242 = vpack.c.b16 %v240, %v240
      %vm243 = vsmask.f32 7424
      %v245 = vshrl.u32 %v241, 16
      %v247 = vshll.u32 %v241, 16
      %v249 = vrot.slane %v247, 1
      %v250 = vor.u32 %v245, %v249
      %v252 = vshll.u32 %v242, 16
      %v254 = vrot.slane %v252, 1
      %v255 = vsel %vm243, %v250, %v254
      %v256 = vshrl.u32 %v242, 16
      %v258 = vor.u32 %v256, %v254
      %v261 = vunpack.c.l.b16 %v233
      %v262 = vunpack.c.l.b16 %v234
      %v263 = vpack.c.b16 %v262, %v261
      %vm265 = vcmask 130048
      %v267 = vsel %vm265, %v255, 0
      %v270 = vsel %vm265, %v258, 0
      %272 = vmatprep.subr.bf16.mxu0 0
      %273 = vmatpush1.bf16.msra.mxu0 %v263
      %274 = vmatprep.subr.bf16.mxu0 0
      %275 = vmatpush1.bf16.msra.mxu0 0
      %276 = vmatprep.subr.bf16.mxu0 0
      %277 = vmatpush1.bf16.msra.mxu0 0
      %278 = vmatprep.subr.bf16.mxu0 0
      %279 = vmatpush1.bf16.msra.mxu0 0
      %280 = vmatprep.subr.bf16.mxu0 0
      %281 = vmatpush1.bf16.msra.mxu0 0
      %282 = vmatprep.subr.bf16.mxu0 0
      %283 = vmatpush1.bf16.msra.mxu0 0
      %284 = vmatprep.subr.bf16.mxu0 0
      %285 = vmatpush1.bf16.msra.mxu0 0
      %286 = vmatprep.subr.bf16.mxu0 0
      %287 = vmatpush1.bf16.msra.mxu0 0
      %288 = vmatprep.subr.bf16.mxu0 0
      %289 = vmatpush1.bf16.msra.mxu0 0
      %290 = vmatprep.subr.bf16.mxu0 0
      %291 = vmatpush1.bf16.msra.mxu0 0
      %292 = vmatprep.subr.bf16.mxu0 0
      %293 = vmatpush1.bf16.msra.mxu0 0
      %294 = vmatprep.subr.bf16.mxu0 0
      %295 = vmatpush1.bf16.msra.mxu0 0
      %296 = vmatprep.subr.bf16.mxu0 0
      %297 = vmatpush1.bf16.msra.mxu0 0
      %298 = vmatprep.subr.bf16.mxu0 0
      %299 = vmatpush1.bf16.msra.mxu0 0
      %300 = vmatprep.subr.bf16.mxu0 0
      %301 = vmatpush1.bf16.msra.mxu0 0
      %302 = vmatprep.subr.bf16.mxu0 0
      %303 = vmatpush1.bf16.msra.mxu0 0
      %304 = vmatprep.mubr.bf16.mxu0 0
      %305 = vmatmul.mubr.bf16.gmra.mrb[0].mxu0 %v267
      %v306 = vpop.f32.mrb[0].mxu0
      %v307 = vadd.f32 0.0, %v306
      %v308 = vpop.f32.mrb[0].mxu0
      %v309 = vpop.f32.mrb[0].mxu0
      %v310 = vadd.f32 0.0, %v309
      %v311 = vpop.f32.mrb[0].mxu0
      %312 = vmatprep.mubr.bf16.mxu0 0
      %313 = vmatmul.mubr.bf16.gmra.mrb[0].mxu0 %v270
      %v314 = vpop.f32.mrb[0].mxu0
      %v315 = vadd.f32 0.0, %v314
      %v316 = vpop.f32.mrb[0].mxu0
      %v317 = vpop.f32.mrb[0].mxu0
      %v318 = vpop.f32.mrb[0].mxu0
      %319 = vdwg.mxu0
      %v321 = vunpack.c.l.b16 %v228
      %v322 = vpack.c.b16 %v321, %v321
      %v325 = vunpack.c.l.b16 %v229
      %v326 = vunpack.c.l.b16 %v230
      %v327 = vpack.c.b16 %v326, %v325
      %v329 = vsel %vm265, %v241, 0
      %v332 = vsel %vm265, %v322, 0
      %334 = vmatprep.subr.bf16.mxu0 0
      %335 = vmatpush1.bf16.msra.mxu0 %v327
      %336 = vmatprep.subr.bf16.mxu0 0
      %337 = vmatpush1.bf16.msra.mxu0 0
      %338 = vmatprep.subr.bf16.mxu0 0
      %339 = vmatpush1.bf16.msra.mxu0 0
      %340 = vmatprep.subr.bf16.mxu0 0
      %341 = vmatpush1.bf16.msra.mxu0 0
      %342 = vmatprep.subr.bf16.mxu0 0
      %343 = vmatpush1.bf16.msra.mxu0 0
      %344 = vmatprep.subr.bf16.mxu0 0
      %345 = vmatpush1.bf16.msra.mxu0 0
      %346 = vmatprep.subr.bf16.mxu0 0
      %347 = vmatpush1.bf16.msra.mxu0 0
      %348 = vmatprep.subr.bf16.mxu0 0
      %349 = vmatpush1.bf16.msra.mxu0 0
      %350 = vmatprep.subr.bf16.mxu0 0
      %351 = vmatpush1.bf16.msra.mxu0 0
      %352 = vmatprep.subr.bf16.mxu0 0
      %353 = vmatpush1.bf16.msra.mxu0 0
      %354 = vmatprep.subr.bf16.mxu0 0
      %355 = vmatpush1.bf16.msra.mxu0 0
      %356 = vmatprep.subr.bf16.mxu0 0
      %357 = vmatpush1.bf16.msra.mxu0 0
      %358 = vmatprep.subr.bf16.mxu0 0
      %359 = vmatpush1.bf16.msra.mxu0 0
      %360 = vmatprep.subr.bf16.mxu0 0
      %361 = vmatpush1.bf16.msra.mxu0 0
      %362 = vmatprep.subr.bf16.mxu0 0
      %363 = vmatpush1.bf16.msra.mxu0 0
      %364 = vmatprep.subr.bf16.mxu0 0
      %365 = vmatpush1.bf16.msra.mxu0 0
      %366 = vmatprep.mubr.bf16.mxu0 0
      %367 = vmatmul.mubr.bf16.gmra.mrb[0].mxu0 %v329
      %v368 = vpop.f32.mrb[0].mxu0
      %v369 = vadd.f32 %v307, %v368
      %v370 = vpop.f32.mrb[0].mxu0
      %v371 = vpop.f32.mrb[0].mxu0
      %v372 = vadd.f32 %v310, %v371
      %v373 = vpop.f32.mrb[0].mxu0
      %374 = vmatprep.mubr.bf16.mxu0 0
      %375 = vmatmul.mubr.bf16.gmra.mrb[0].mxu0 %v332
      %v376 = vpop.f32.mrb[0].mxu0
      %v377 = vadd.f32 %v315, %v376
      %v378 = vpop.f32.mrb[0].mxu0
      %v379 = vpop.f32.mrb[0].mxu0
      %v380 = vpop.f32.mrb[0].mxu0
      %381 = vdwg.mxu0
      %v382 = vld [vmem:[%s219] sm:$0xe]
      %s383 = scalar_lea.vmem %s1, 16
      %v384 = vld [vmem:[%s383] sm:$0xf]
      %v385 = vld [vmem:[%s383 + $0x4] sm:$0xf]
      %v387 = vunpack.c.l.b16 %v382
      %v388 = vpack.c.b16 %v239, %v387
      %vm389 = vcmask 1046528
      %v390 = vrot.slane %v388, 1
      %v391 = vrot.slane %v242, 1
      %v392 = vsel %vm389, %v390, %v391
      %v395 = vunpack.c.l.b16 %v384
      %v396 = vunpack.c.l.b16 %v385
      %v397 = vpack.c.b16 %v396, %v395
      %v400 = vsel %vm265, %v392, 0
      %v403 = vsel %vm265, %v391, 0
      %405 = vmatprep.subr.bf16.mxu0 0
      %406 = vmatpush1.bf16.msra.mxu0 %v397
      %407 = vmatprep.subr.bf16.mxu0 0
      %408 = vmatpush1.bf16.msra.mxu0 0
      %409 = vmatprep.subr.bf16.mxu0 0
      %410 = vmatpush1.bf16.msra.mxu0 0
      %411 = vmatprep.subr.bf16.mxu0 0
      %412 = vmatpush1.bf16.msra.mxu0 0
      %413 = vmatprep.subr.bf16.mxu0 0
      %414 = vmatpush1.bf16.msra.mxu0 0
      %415 = vmatprep.subr.bf16.mxu0 0
      %416 = vmatpush1.bf16.msra.mxu0 0
      %417 = vmatprep.subr.bf16.mxu0 0
      %418 = vmatpush1.bf16.msra.mxu0 0
      %419 = vmatprep.subr.bf16.mxu0 0
      %420 = vmatpush1.bf16.msra.mxu0 0
      %421 = vmatprep.subr.bf16.mxu0 0
      %422 = vmatpush1.bf16.msra.mxu0 0
      %423 = vmatprep.subr.bf16.mxu0 0
      %424 = vmatpush1.bf16.msra.mxu0 0
      %425 = vmatprep.subr.bf16.mxu0 0
      %426 = vmatpush1.bf16.msra.mxu0 0
      %427 = vmatprep.subr.bf16.mxu0 0
      %428 = vmatpush1.bf16.msra.mxu0 0
      %429 = vmatprep.subr.bf16.mxu0 0
      %430 = vmatpush1.bf16.msra.mxu0 0
      %431 = vmatprep.subr.bf16.mxu0 0
      %432 = vmatpush1.bf16.msra.mxu0 0
      %433 = vmatprep.subr.bf16.mxu0 0
      %434 = vmatpush1.bf16.msra.mxu0 0
      %435 = vmatprep.subr.bf16.mxu0 0
      %436 = vmatpush1.bf16.msra.mxu0 0
      %437 = vmatprep.mubr.bf16.mxu0 0
      %438 = vmatmul.mubr.bf16.gmra.mrb[0].mxu0 %v400
      %v439 = vpop.f32.mrb[0].mxu0
      %v440 = vadd.f32 0.0, %v439
      %v441 = vpop.f32.mrb[0].mxu0
      %v442 = vpop.f32.mrb[0].mxu0
      %v443 = vadd.f32 0.0, %v442
      %v444 = vpop.f32.mrb[0].mxu0
      %445 = vmatprep.mubr.bf16.mxu0 0
      %446 = vmatmul.mubr.bf16.gmra.mrb[0].mxu0 %v403
      %v447 = vpop.f32.mrb[0].mxu0
      %v448 = vadd.f32 0.0, %v447
      %v449 = vpop.f32.mrb[0].mxu0
      %v450 = vpop.f32.mrb[0].mxu0
      %v451 = vpop.f32.mrb[0].mxu0
      %452 = vdwg.mxu0
      %v453 = vadd.f32 %v369, %v440
      %v454 = vadd.f32 %v372, %v443
      %v455 = vadd.f32 %v377, %v448
      %v456 = vld [vmem:[%s219] sm:$0x8]
      %v457 = vld [vmem:[%s219 + $0x4] sm:$0xf]
      %v458 = vld [vmem:[%s219 + $0x8] sm:$0xf]
      %v459 = vld [vmem:[%s219 + $0xc] sm:$0x3]
      %s460 = scalar_lea.vmem %s1, 24
      %v461 = vld [vmem:[%s460] sm:$0xf]
      %v462 = vld [vmem:[%s460 + $0x4] sm:$0xf]
      %v467 = vunpack.c.l.b16 %v456
      %v468 = vunpack.c.l.b16 %v457
      %v469 = vunpack.c.l.b16 %v458
      %v470 = vunpack.c.l.b16 %v459
      %v471 = vpack.c.b16 %v468, %v467
      %v472 = vpack.c.b16 %v470, %v469
      %vm473 = vcmask 1044480
      %v474 = vrot.slane %v471, 3
      %v475 = vrot.slane %v472, 3
      %v476 = vsel %vm473, %v474, %v475
      %v479 = vunpack.c.l.b16 %v461
      %v480 = vunpack.c.l.b16 %v462
      %v481 = vpack.c.b16 %v480, %v479
      %v484 = vsel %vm265, %v476, 0
      %v487 = vsel %vm265, %v475, 0
      %489 = vmatprep.subr.bf16.mxu0 0
      %490 = vmatpush1.bf16.msra.mxu0 %v481
      %491 = vmatprep.subr.bf16.mxu0 0
      %492 = vmatpush1.bf16.msra.mxu0 0
      %493 = vmatprep.subr.bf16.mxu0 0
      %494 = vmatpush1.bf16.msra.mxu0 0
      %495 = vmatprep.subr.bf16.mxu0 0
      %496 = vmatpush1.bf16.msra.mxu0 0
      %497 = vmatprep.subr.bf16.mxu0 0
      %498 = vmatpush1.bf16.msra.mxu0 0
      %499 = vmatprep.subr.bf16.mxu0 0
      %500 = vmatpush1.bf16.msra.mxu0 0
      %501 = vmatprep.subr.bf16.mxu0 0
      %502 = vmatpush1.bf16.msra.mxu0 0
      %503 = vmatprep.subr.bf16.mxu0 0
      %504 = vmatpush1.bf16.msra.mxu0 0
      %505 = vmatprep.subr.bf16.mxu0 0
      %506 = vmatpush1.bf16.msra.mxu0 0
      %507 = vmatprep.subr.bf16.mxu0 0
      %508 = vmatpush1.bf16.msra.mxu0 0
      %509 = vmatprep.subr.bf16.mxu0 0
      %510 = vmatpush1.bf16.msra.mxu0 0
      %511 = vmatprep.subr.bf16.mxu0 0
      %512 = vmatpush1.bf16.msra.mxu0 0
      %513 = vmatprep.subr.bf16.mxu0 0
      %514 = vmatpush1.bf16.msra.mxu0 0
      %515 = vmatprep.subr.bf16.mxu0 0
      %516 = vmatpush1.bf16.msra.mxu0 0
      %517 = vmatprep.subr.bf16.mxu0 0
      %518 = vmatpush1.bf16.msra.mxu0 0
      %519 = vmatprep.subr.bf16.mxu0 0
      %520 = vmatpush1.bf16.msra.mxu0 0
      %521 = vmatprep.mubr.bf16.mxu0 0
      %522 = vmatmul.mubr.bf16.gmra.mrb[0].mxu0 %v484
      %v523 = vpop.f32.mrb[0].mxu0
      %v524 = vadd.f32 0.0, %v523
      %v525 = vpop.f32.mrb[0].mxu0
      %v526 = vpop.f32.mrb[0].mxu0
      %v527 = vadd.f32 0.0, %v526
      %v528 = vpop.f32.mrb[0].mxu0
      %529 = vmatprep.mubr.bf16.mxu0 0
      %530 = vmatmul.mubr.bf16.gmra.mrb[0].mxu0 %v487
      %v531 = vpop.f32.mrb[0].mxu0
      %v532 = vadd.f32 0.0, %v531
      %v533 = vpop.f32.mrb[0].mxu0
      %v534 = vpop.f32.mrb[0].mxu0
      %v535 = vpop.f32.mrb[0].mxu0
      %536 = vdwg.mxu0
      %v537 = vadd.f32 %v453, %v524
      %v538 = vadd.f32 %v454, %v527
      %v539 = vadd.f32 %v455, %v532
      %v540 = vld [vmem:[%s219 + $0xc] sm:$0x7]
      %s541 = scalar_lea.vmem %s1, 32
      %v542 = vld [vmem:[%s541] sm:$0xf]
      %v543 = vld [vmem:[%s541 + $0x4] sm:$0xf]
      %v545 = vunpack.c.l.b16 %v540
      %v546 = vpack.c.b16 %v545, %v469
      %vm547 = vsmask.f32 4352
      %v549 = vshrl.u32 %v471, 16
      %v551 = vrot.slane %v549, 3
      %v552 = vshll.u32 %v471, 16
      %v554 = vrot.slane %v552, 4
      %v555 = vor.u32 %v551, %v554
      %v557 = vshrl.u32 %v546, 16
      %v559 = vrot.slane %v557, 3
      %v560 = vshll.u32 %v546, 16
      %v562 = vrot.slane %v560, 4
      %v563 = vor.u32 %v559, %v562
      %v564 = vsel %vm547, %v555, %v563
      %v567 = vunpack.c.l.b16 %v542
      %v568 = vunpack.c.l.b16 %v543
      %v569 = vpack.c.b16 %v568, %v567
      %v572 = vsel %vm265, %v564, 0
      %v575 = vsel %vm265, %v563, 0
      %577 = vmatprep.subr.bf16.mxu0 0
      %578 = vmatpush1.bf16.msra.mxu0 %v569
      %579 = vmatprep.subr.bf16.mxu0 0
      %580 = vmatpush1.bf16.msra.mxu0 0
      %581 = vmatprep.subr.bf16.mxu0 0
      %582 = vmatpush1.bf16.msra.mxu0 0
      %583 = vmatprep.subr.bf16.mxu0 0
      %584 = vmatpush1.bf16.msra.mxu0 0
      %585 = vmatprep.subr.bf16.mxu0 0
      %586 = vmatpush1.bf16.msra.mxu0 0
      %587 = vmatprep.subr.bf16.mxu0 0
      %588 = vmatpush1.bf16.msra.mxu0 0
      %589 = vmatprep.subr.bf16.mxu0 0
      %590 = vmatpush1.bf16.msra.mxu0 0
      %591 = vmatprep.subr.bf16.mxu0 0
      %592 = vmatpush1.bf16.msra.mxu0 0
      %593 = vmatprep.subr.bf16.mxu0 0
      %594 = vmatpush1.bf16.msra.mxu0 0
      %595 = vmatprep.subr.bf16.mxu0 0
      %596 = vmatpush1.bf16.msra.mxu0 0
      %597 = vmatprep.subr.bf16.mxu0 0
      %598 = vmatpush1.bf16.msra.mxu0 0
      %599 = vmatprep.subr.bf16.mxu0 0
      %600 = vmatpush1.bf16.msra.mxu0 0
      %601 = vmatprep.subr.bf16.mxu0 0
      %602 = vmatpush1.bf16.msra.mxu0 0
      %603 = vmatprep.subr.bf16.mxu0 0
      %604 = vmatpush1.bf16.msra.mxu0 0
      %605 = vmatprep.subr.bf16.mxu0 0
      %606 = vmatpush1.bf16.msra.mxu0 0
      %607 = vmatprep.subr.bf16.mxu0 0
      %608 = vmatpush1.bf16.msra.mxu0 0
      %609 = vmatprep.mubr.bf16.mxu0 0
      %610 = vmatmul.mubr.bf16.gmra.mrb[0].mxu0 %v572
      %v611 = vpop.f32.mrb[0].mxu0
      %v612 = vadd.f32 0.0, %v611
      %v613 = vpop.f32.mrb[0].mxu0
      %v614 = vpop.f32.mrb[0].mxu0
      %v615 = vadd.f32 0.0, %v614
      %v616 = vpop.f32.mrb[0].mxu0
      %617 = vmatprep.mubr.bf16.mxu0 0
      %618 = vmatmul.mubr.bf16.gmra.mrb[0].mxu0 %v575
      %v619 = vpop.f32.mrb[0].mxu0
      %v620 = vadd.f32 0.0, %v619
      %v621 = vpop.f32.mrb[0].mxu0
      %v622 = vpop.f32.mrb[0].mxu0
      %v623 = vpop.f32.mrb[0].mxu0
      %624 = vdwg.mxu0
      %v625 = vadd.f32 %v537, %v612
      %v626 = vadd.f32 %v538, %v615
      %v627 = vadd.f32 %v539, %v620
      %s628 = scalar_lea.vmem %s1, 40
      %v629 = vld [vmem:[%s628] sm:$0xf]
      %v630 = vld [vmem:[%s628 + $0x4] sm:$0xf]
      %v631 = vpack.c.b16 %v469, %v468
      %v632 = vpack.c.b16 %v545, %v545
      %v635 = vunpack.c.l.b16 %v629
      %v636 = vunpack.c.l.b16 %v630
      %v637 = vpack.c.b16 %v636, %v635
      %v640 = vsel %vm265, %v631, 0
      %v643 = vsel %vm265, %v632, 0
      %645 = vmatprep.subr.bf16.mxu0 0
      %646 = vmatpush1.bf16.msra.mxu0 %v637
      %647 = vmatprep.subr.bf16.mxu0 0
      %648 = vmatpush1.bf16.msra.mxu0 0
      %649 = vmatprep.subr.bf16.mxu0 0
      %650 = vmatpush1.bf16.msra.mxu0 0
      %651 = vmatprep.subr.bf16.mxu0 0
      %652 = vmatpush1.bf16.msra.mxu0 0
      %653 = vmatprep.subr.bf16.mxu0 0
      %654 = vmatpush1.bf16.msra.mxu0 0
      %655 = vmatprep.subr.bf16.mxu0 0
      %656 = vmatpush1.bf16.msra.mxu0 0
      %657 = vmatprep.subr.bf16.mxu0 0
      %658 = vmatpush1.bf16.msra.mxu0 0
      %659 = vmatprep.subr.bf16.mxu0 0
      %660 = vmatpush1.bf16.msra.mxu0 0
      %661 = vmatprep.subr.bf16.mxu0 0
      %662 = vmatpush1.bf16.msra.mxu0 0
      %663 = vmatprep.subr.bf16.mxu0 0
      %664 = vmatpush1.bf16.msra.mxu0 0
      %665 = vmatprep.subr.bf16.mxu0 0
      %666 = vmatpush1.bf16.msra.mxu0 0
      %667 = vmatprep.subr.bf16.mxu0 0
      %668 = vmatpush1.bf16.msra.mxu0 0
      %669 = vmatprep.subr.bf16.mxu0 0
      %670 = vmatpush1.bf16.msra.mxu0 0
      %671 = vmatprep.subr.bf16.mxu0 0
      %672 = vmatpush1.bf16.msra.mxu0 0
      %673 = vmatprep.subr.bf16.mxu0 0
      %674 = vmatpush1.bf16.msra.mxu0 0
      %675 = vmatprep.subr.bf16.mxu0 0
      %676 = vmatpush1.bf16.msra.mxu0 0
      %677 = vmatprep.mubr.bf16.mxu0 0
      %678 = vmatmul.mubr.bf16.gmra.mrb[0].mxu0 %v640
      %v679 = vpop.f32.mrb[0].mxu0
      %v680 = vadd.f32 0.0, %v679
      %v681 = vpop.f32.mrb[0].mxu0
      %v682 = vpop.f32.mrb[0].mxu0
      %v683 = vadd.f32 0.0, %v682
      %v684 = vpop.f32.mrb[0].mxu0
      %685 = vmatprep.mubr.bf16.mxu0 0
      %686 = vmatmul.mubr.bf16.gmra.mrb[0].mxu0 %v643
      %v687 = vpop.f32.mrb[0].mxu0
      %v688 = vadd.f32 0.0, %v687
      %v689 = vpop.f32.mrb[0].mxu0
      %v690 = vpop.f32.mrb[0].mxu0
      %v691 = vpop.f32.mrb[0].mxu0
      %692 = vdwg.mxu0
      %v693 = vadd.f32 %v625, %v680
      %v694 = vadd.f32 %v626, %v683
      %v695 = vadd.f32 %v627, %v688
      %v696 = vld [vmem:[%s219 + $0x4] sm:$0xc]
      %v697 = vld [vmem:[%s219 + $0x8] sm:$0xf]
      %v698 = vld [vmem:[%s219 + $0xc] sm:$0xf]
      %v699 = vld [vmem:[%s219 + $0x10] sm:$0x1]
      %s700 = scalar_lea.vmem %s1, 48
      %v701 = vld [vmem:[%s700] sm:$0xf]
      %v702 = vld [vmem:[%s700 + $0x4] sm:$0xf]
      %v707 = vunpack.c.l.b16 %v696
      %v708 = vunpack.c.l.b16 %v697
      %v709 = vunpack.c.l.b16 %v698
      %v710 = vunpack.c.l.b16 %v699
      %v711 = vpack.c.b16 %v708, %v707
      %v712 = vpack.c.b16 %v710, %v709
      %vm713 = vcmask 1045504
      %v714 = vrot.slane %v711, 2
      %v715 = vrot.slane %v712, 2
      %v716 = vsel %vm713, %v714, %v715
      %v719 = vunpack.c.l.b16 %v701
      %v720 = vunpack.c.l.b16 %v702
      %v721 = vpack.c.b16 %v720, %v719
      %v724 = vsel %vm265, %v716, 0
      %v727 = vsel %vm265, %v715, 0
      %729 = vmatprep.subr.bf16.mxu0 0
      %730 = vmatpush1.bf16.msra.mxu0 %v721
      %731 = vmatprep.subr.bf16.mxu0 0
      %732 = vmatpush1.bf16.msra.mxu0 0
      %733 = vmatprep.subr.bf16.mxu0 0
      %734 = vmatpush1.bf16.msra.mxu0 0
      %735 = vmatprep.subr.bf16.mxu0 0
      %736 = vmatpush1.bf16.msra.mxu0 0
      %737 = vmatprep.subr.bf16.mxu0 0
      %738 = vmatpush1.bf16.msra.mxu0 0
      %739 = vmatprep.subr.bf16.mxu0 0
      %740 = vmatpush1.bf16.msra.mxu0 0
      %741 = vmatprep.subr.bf16.mxu0 0
      %742 = vmatpush1.bf16.msra.mxu0 0
      %743 = vmatprep.subr.bf16.mxu0 0
      %744 = vmatpush1.bf16.msra.mxu0 0
      %745 = vmatprep.subr.bf16.mxu0 0
      %746 = vmatpush1.bf16.msra.mxu0 0
      %747 = vmatprep.subr.bf16.mxu0 0
      %748 = vmatpush1.bf16.msra.mxu0 0
      %749 = vmatprep.subr.bf16.mxu0 0
      %750 = vmatpush1.bf16.msra.mxu0 0
      %751 = vmatprep.subr.bf16.mxu0 0
      %752 = vmatpush1.bf16.msra.mxu0 0
      %753 = vmatprep.subr.bf16.mxu0 0
      %754 = vmatpush1.bf16.msra.mxu0 0
      %755 = vmatprep.subr.bf16.mxu0 0
      %756 = vmatpush1.bf16.msra.mxu0 0
      %757 = vmatprep.subr.bf16.mxu0 0
      %758 = vmatpush1.bf16.msra.mxu0 0
      %759 = vmatprep.subr.bf16.mxu0 0
      %760 = vmatpush1.bf16.msra.mxu0 0
      %761 = vmatprep.mubr.bf16.mxu0 0
      %762 = vmatmul.mubr.bf16.gmra.mrb[0].mxu0 %v724
      %v763 = vpop.f32.mrb[0].mxu0
      %v764 = vadd.f32 0.0, %v763
      %v765 = vpop.f32.mrb[0].mxu0
      %v766 = vpop.f32.mrb[0].mxu0
      %v767 = vadd.f32 0.0, %v766
      %v768 = vpop.f32.mrb[0].mxu0
      %769 = vmatprep.mubr.bf16.mxu0 0
      %770 = vmatmul.mubr.bf16.gmra.mrb[0].mxu0 %v727
      %v771 = vpop.f32.mrb[0].mxu0
      %v772 = vadd.f32 0.0, %v771
      %v773 = vpop.f32.mrb[0].mxu0
      %v774 = vpop.f32.mrb[0].mxu0
      %v775 = vpop.f32.mrb[0].mxu0
      %776 = vdwg.mxu0
      %v777 = vadd.f32 %v693, %v764
      %v778 = vadd.f32 %v694, %v767
      %v779 = vadd.f32 %v695, %v772
      %v780 = vld [vmem:[%s219 + $0x10] sm:$0x3]
      %s781 = scalar_lea.vmem %s1, 56
      %v782 = vld [vmem:[%s781] sm:$0xf]
      %v783 = vld [vmem:[%s781 + $0x4] sm:$0xf]
      %v785 = vunpack.c.l.b16 %v780
      %v786 = vpack.c.b16 %v785, %v709
      %vm787 = vsmask.f32 5376
      %v789 = vshrl.u32 %v711, 16
      %v791 = vrot.slane %v789, 2
      %v792 = vshll.u32 %v711, 16
      %v794 = vrot.slane %v792, 3
      %v795 = vor.u32 %v791, %v794
      %v797 = vshrl.u32 %v786, 16
      %v799 = vrot.slane %v797, 2
      %v800 = vshll.u32 %v786, 16
      %v802 = vrot.slane %v800, 3
      %v803 = vor.u32 %v799, %v802
      %v804 = vsel %vm787, %v795, %v803
      %v807 = vunpack.c.l.b16 %v782
      %v808 = vunpack.c.l.b16 %v783
      %v809 = vpack.c.b16 %v808, %v807
      %v812 = vsel %vm265, %v804, 0
      %v815 = vsel %vm265, %v803, 0
      %817 = vmatprep.subr.bf16.mxu0 0
      %818 = vmatpush1.bf16.msra.mxu0 %v809
      %819 = vmatprep.subr.bf16.mxu0 0
      %820 = vmatpush1.bf16.msra.mxu0 0
      %821 = vmatprep.subr.bf16.mxu0 0
      %822 = vmatpush1.bf16.msra.mxu0 0
      %823 = vmatprep.subr.bf16.mxu0 0
      %824 = vmatpush1.bf16.msra.mxu0 0
      %825 = vmatprep.subr.bf16.mxu0 0
      %826 = vmatpush1.bf16.msra.mxu0 0
      %827 = vmatprep.subr.bf16.mxu0 0
      %828 = vmatpush1.bf16.msra.mxu0 0
      %829 = vmatprep.subr.bf16.mxu0 0
      %830 = vmatpush1.bf16.msra.mxu0 0
      %831 = vmatprep.subr.bf16.mxu0 0
      %832 = vmatpush1.bf16.msra.mxu0 0
      %833 = vmatprep.subr.bf16.mxu0 0
      %834 = vmatpush1.bf16.msra.mxu0 0
      %835 = vmatprep.subr.bf16.mxu0 0
      %836 = vmatpush1.bf16.msra.mxu0 0
      %837 = vmatprep.subr.bf16.mxu0 0
      %838 = vmatpush1.bf16.msra.mxu0 0
      %839 = vmatprep.subr.bf16.mxu0 0
      %840 = vmatpush1.bf16.msra.mxu0 0
      %841 = vmatprep.subr.bf16.mxu0 0
      %842 = vmatpush1.bf16.msra.mxu0 0
      %843 = vmatprep.subr.bf16.mxu0 0
      %844 = vmatpush1.bf16.msra.mxu0 0
      %845 = vmatprep.subr.bf16.mxu0 0
      %846 = vmatpush1.bf16.msra.mxu0 0
      %847 = vmatprep.subr.bf16.mxu0 0
      %848 = vmatpush1.bf16.msra.mxu0 0
      %849 = vmatprep.mubr.bf16.mxu0 0
      %850 = vmatmul.mubr.bf16.gmra.mrb[0].mxu0 %v812
      %v851 = vpop.f32.mrb[0].mxu0
      %v852 = vadd.f32 0.0, %v851
      %v853 = vpop.f32.mrb[0].mxu0
      %v854 = vpop.f32.mrb[0].mxu0
      %v855 = vadd.f32 0.0, %v854
      %v856 = vpop.f32.mrb[0].mxu0
      %857 = vmatprep.mubr.bf16.mxu0 0
      %858 = vmatmul.mubr.bf16.gmra.mrb[0].mxu0 %v815
      %v859 = vpop.f32.mrb[0].mxu0
      %v860 = vadd.f32 0.0, %v859
      %v861 = vpop.f32.mrb[0].mxu0
      %v862 = vpop.f32.mrb[0].mxu0
      %v863 = vpop.f32.mrb[0].mxu0
      %864 = vdwg.mxu0
      %v865 = vadd.f32 %v777, %v852
      %v866 = vadd.f32 %v778, %v855
      %v867 = vadd.f32 %v779, %v860
      %v868 = vld [vmem:[%s219 + $0x4] sm:$0x8]
      %s869 = scalar_lea.vmem %s1, 64
      %v870 = vld [vmem:[%s869] sm:$0xf]
      %v871 = vld [vmem:[%s869 + $0x4] sm:$0xf]
      %v873 = vunpack.c.l.b16 %v868
      %v874 = vpack.c.b16 %v708, %v873
      %v875 = vrot.slane %v874, 3
      %v876 = vrot.slane %v786, 3
      %v877 = vsel %vm473, %v875, %v876
      %v880 = vunpack.c.l.b16 %v870
      %v881 = vunpack.c.l.b16 %v871
      %v882 = vpack.c.b16 %v881, %v880
      %v885 = vsel %vm265, %v877, 0
      %v888 = vsel %vm265, %v876, 0
      %890 = vmatprep.subr.bf16.mxu0 0
      %891 = vmatpush1.bf16.msra.mxu0 %v882
      %892 = vmatprep.subr.bf16.mxu0 0
      %893 = vmatpush1.bf16.msra.mxu0 0
      %894 = vmatprep.subr.bf16.mxu0 0
      %895 = vmatpush1.bf16.msra.mxu0 0
      %896 = vmatprep.subr.bf16.mxu0 0
      %897 = vmatpush1.bf16.msra.mxu0 0
      %898 = vmatprep.subr.bf16.mxu0 0
      %899 = vmatpush1.bf16.msra.mxu0 0
      %900 = vmatprep.subr.bf16.mxu0 0
      %901 = vmatpush1.bf16.msra.mxu0 0
      %902 = vmatprep.subr.bf16.mxu0 0
      %903 = vmatpush1.bf16.msra.mxu0 0
      %904 = vmatprep.subr.bf16.mxu0 0
      %905 = vmatpush1.bf16.msra.mxu0 0
      %906 = vmatprep.subr.bf16.mxu0 0
      %907 = vmatpush1.bf16.msra.mxu0 0
      %908 = vmatprep.subr.bf16.mxu0 0
      %909 = vmatpush1.bf16.msra.mxu0 0
      %910 = vmatprep.subr.bf16.mxu0 0
      %911 = vmatpush1.bf16.msra.mxu0 0
      %912 = vmatprep.subr.bf16.mxu0 0
      %913 = vmatpush1.bf16.msra.mxu0 0
      %914 = vmatprep.subr.bf16.mxu0 0
      %915 = vmatpush1.bf16.msra.mxu0 0
      %916 = vmatprep.subr.bf16.mxu0 0
      %917 = vmatpush1.bf16.msra.mxu0 0
      %918 = vmatprep.subr.bf16.mxu0 0
      %919 = vmatpush1.bf16.msra.mxu0 0
      %920 = vmatprep.subr.bf16.mxu0 0
      %921 = vmatpush1.bf16.msra.mxu0 0
      %922 = vmatprep.mubr.bf16.mxu0 0
      %923 = vmatmul.mubr.bf16.gmra.mrb[0].mxu0 %v885
      %v924 = vpop.f32.mrb[0].mxu0
      %v925 = vadd.f32 0.0, %v924
      %v926 = vpop.f32.mrb[0].mxu0
      %v927 = vpop.f32.mrb[0].mxu0
      %v928 = vadd.f32 0.0, %v927
      %v929 = vpop.f32.mrb[0].mxu0
      %930 = vmatprep.mubr.bf16.mxu0 0
      %931 = vmatmul.mubr.bf16.gmra.mrb[0].mxu0 %v888
      %v932 = vpop.f32.mrb[0].mxu0
      %v933 = vadd.f32 0.0, %v932
      %v934 = vpop.f32.mrb[0].mxu0
      %v935 = vpop.f32.mrb[0].mxu0
      %v936 = vpop.f32.mrb[0].mxu0
      %937 = vdwg.mxu0
      %v938 = vadd.f32 %v865, %v925
      %v939 = vadd.f32 %v866, %v928
      %v940 = vadd.f32 %v867, %v933
      %v941 = vld [vmem:[%s2] sm:$0x1]
      %v943 = vlaneseq
      %v944 = vshrl.u32 %v943, 7
      %v945 = vsub.s32 0, %v944
      %v946 = vrot.slane %v941, %v945
      %v948 = vadd.f32 %v938, %v946
      %v949 = vadd.f32 %v939, %v946
      %v950 = vadd.f32 %v940, %v946
      %v951 = vxor.u32 %v948, 2147483648
      %v952 = vxor.u32 %v949, 2147483648
      %v953 = vxor.u32 %v950, 2147483648
      %v954 = vmul.f32 %v951, 1.442695
      %v955 = vpow.pop %v954
      %v956 = vmul.f32 %v952, 1.442695
      %v957 = vpow.pop %v956
      %v958 = vmul.f32 %v953, 1.442695
      %v959 = vpow.pop %v958
      %v960 = vadd.f32 %v955, 1.0
      %v961 = vadd.f32 %v957, 1.0
      %v962 = vadd.f32 %v959, 1.0
      %v963 = vrcp.pop %v960
      %v964 = vmul.f32 1.0, %v963
      %v965 = vrcp.pop %v961
      %v966 = vmul.f32 1.0, %v965
      %v967 = vrcp.pop %v962
      %v968 = vmul.f32 1.0, %v967
      %v969 = vmul.f32 %v948, %v964
      %v970 = vmul.f32 %v949, %v966
      %v971 = vmul.f32 %v950, %v968
      %v972 = vld [vmem:[%s3] sm:$0xf]
      %v973 = vld [vmem:[%s3 + $0x4] sm:$0x1]
      %v974 = vpack.c.bf16 %v970, %v969
      %v975 = vpack.c.bf16 %v971, %v971
      %v976 = vld [vmem:[%s4] sm:$0xff]
      %v977 = vld [vmem:[%s4 + $0x8] sm:$0x1]
      %979 = vset.pattern.permute.xlu0 0
      %980 = vperm.xlu0 %979, %v976
      %v981 = vpop.permute.xlu0 %980
      %984 = vset.pattern.permute.xlu0 0
      %985 = vperm.xlu0 %984, %v977
      %v986 = vpop.permute.xlu0 %985
      %v990 = vunpack.c.l.b16 %v972
      %v991 = vunpack.c.l.b16 %v973
      %v992 = vpack.c.b16 %v991, %v990
      %v994 = vsel %vm265, %v992, 0
      %v997 = vsel %vm265, %v974, 0
      %v1000 = vsel %vm265, %v975, 0
      %1002 = vmatprep.subr.bf16.mxu0 0
      %1003 = vmatpush1.bf16.xpose.msra.mxu0 %v997
      %1004 = vmatprep.subr.bf16.mxu0 0
      %1005 = vmatpush1.bf16.xpose.msra.mxu0 %v1000
      %1006 = vmatprep.subr.bf16.mxu0 0
      %1007 = vmatpush1.bf16.xpose.msra.mxu0 0
      %1008 = vmatprep.subr.bf16.mxu0 0
      %1009 = vmatpush1.bf16.xpose.msra.mxu0 0
      %1010 = vmatprep.subr.bf16.mxu0 0
      %1011 = vmatpush1.bf16.xpose.msra.mxu0 0
      %1012 = vmatprep.subr.bf16.mxu0 0
      %1013 = vmatpush1.bf16.xpose.msra.mxu0 0
      %1014 = vmatprep.subr.bf16.mxu0 0
      %1015 = vmatpush1.bf16.xpose.msra.mxu0 0
      %1016 = vmatprep.subr.bf16.mxu0 0
      %1017 = vmatpush1.bf16.xpose.msra.mxu0 0
      %1018 = vmatprep.subr.bf16.mxu0 0
      %1019 = vmatpush1.bf16.xpose.msra.mxu0 0
      %1020 = vmatprep.subr.bf16.mxu0 0
      %1021 = vmatpush1.bf16.xpose.msra.mxu0 0
      %1022 = vmatprep.subr.bf16.mxu0 0
      %1023 = vmatpush1.bf16.xpose.msra.mxu0 0
      %1024 = vmatprep.subr.bf16.mxu0 0
      %1025 = vmatpush1.bf16.xpose.msra.mxu0 0
      %1026 = vmatprep.subr.bf16.mxu0 0
      %1027 = vmatpush1.bf16.xpose.msra.mxu0 0
      %1028 = vmatprep.subr.bf16.mxu0 0
      %1029 = vmatpush1.bf16.xpose.msra.mxu0 0
      %1030 = vmatprep.subr.bf16.mxu0 0
      %1031 = vmatpush1.bf16.xpose.msra.mxu0 0
      %1032 = vmatprep.subr.bf16.mxu0 0
      %1033 = vmatpush1.bf16.xpose.msra.mxu0 0
      %1034 = vmatprep.mubr.bf16.mxu0 0
      %1035 = vmatmul.mubr.bf16.gmra.mrb[0].mxu0 %v994
      %v1036 = vpop.f32.mrb[0].mxu0
      %v1037 = vadd.f32 %v981, %v1036
      %v1038 = vpop.f32.mrb[0].mxu0
      %v1039 = vpop.f32.mrb[0].mxu0
      %v1040 = vadd.f32 %v986, %v1039
      %v1041 = vpop.f32.mrb[0].mxu0
      %1042 = vdwg.mxu0
      %v1043 = vpack.c.bf16 %v1040, %v1037
      %v1045 = vunpack.c.l.b16 %v1043
      %v1046 = vunpack.c.h.b16 %v1043
      %v1047 = vpack.c.b16 %v1045, %v1045
      %v1048 = vpack.c.b16 %v1046, %v1046
      %vm1051 = vcmask 175104
      %1052 = vst.msk [vmem:[%s224] sm:$0xf] %vm1051, %v1047
      %vm1053 = vcmask 172032
      %vm1054 = vsmask.f32 256
      %vm1055 = vmand %vm1053, %vm1054
      %v1056 = vld [vmem:[%s224 + $0x4] sm:$0x1]
      %v1057 = vsel %vm1055, %v1048, %v1056
      %1058 = vst [vmem:[%s224 + $0x4] sm:$0x1] %v1057
      %p1059 = scmp.lt.s32.totalorder %s16, 1
      %s1060 = scalar_select %p1059, %s16, 1
      %s1061 = smul.addr %s1060, 2
      %s1062 = smul.addr %s1061, 4
      %s1063 = scalar_lea.vmem %s5, %s1062
      // Predicated region
      $region41: #{yolo_forward.5} parent=39 // pred_check
        %p1064 = pneg %p144
      $region42: #{yolo_forward.5} parent=39 // pred_check_branch
        %1066 = sbr.rel (%p1064) target = $region44
      $region43: #{yolo_forward.5} parent=39 // pred_region
        _
      $region44: #{yolo_forward.5} parent=39 // pred_fallthru
        _
    $region40: #{yolo_forward.5} parent=5 // pred_fallthru
      _
    %p1067 = scmp.le.s32.totalorder 2, %s11
    // Predicated region
    $region45: #{yolo_forward.5} parent=5 // pred_check
      %p1068 = pneg %p1067
    $region46: #{yolo_forward.5} parent=5 // pred_check_branch
      %1070 = sbr.rel (%p1068) target = $region48
    $region47: #{yolo_forward.5} parent=5 // pred_region
      %s1071 = ssub.s32 %s11, 2
      // Predicated region
      $region49: #{yolo_forward.5} parent=47 // pred_check
        %p1072 = pneg %p150
      $region50: #{yolo_forward.5} parent=47 // pred_check_branch
        %1074 = sbr.rel (%p1072) target = $region52
      $region51: #{yolo_forward.5} parent=47 // pred_region
        %p1075 = scmp.lt.s32.totalorder %s17, 1
        %s1076 = scalar_select %p1075, %s17, 1
        %s1077 = smul.addr %s1076, 2
        %s1078 = smul.addr %s1077, 4
        %s1079 = scalar_lea.vmem %s5, %s1078
      $region52: #{yolo_forward.5} parent=47 // pred_fallthru
        _
    $region48: #{yolo_forward.5} parent=5 // pred_fallthru
      _
  $region6: #{yolo_forward.5} parent=0 // loop_footer
    %s15 = sadd.s32 1, %s11
  $region7: #{yolo_forward.5} parent=0 // loop_footer_branch
    %10 = sbr.rel target = $region3
  $region8: #{yolo_forward.5} parent=0 // loop_exit
    _

</llo_original>
